<compile_context>
chip_gen: v7x
topology: tpu7x:2x2x1
jax: 0.10.0
libtpu: 0.0.40
codegen_flags: <defaults>
</compile_context>

<pallas_src>
import functools

import numpy as np
import jax
import jax.numpy as jnp
from jax import lax
from jax.experimental import pallas as pl
from jax.experimental.pallas import tpu as pltpu


# ----------------------------- shared math helpers -----------------------------
def _layernorm(x, gamma, beta, eps=1e-5):
    mu = jnp.mean(x, axis=-1, keepdims=True)
    var = jnp.mean(jnp.square(x - mu), axis=-1, keepdims=True)
    return (x - mu) * lax.rsqrt(var + eps) * gamma + beta


def _softmax_kernel(x, axis):
    """Softmax with the divide routed to the EUP via pl.reciprocal (kernel-only)."""
    m = jnp.max(x, axis=axis, keepdims=True)
    e = jnp.exp(x - m)
    s = jnp.sum(e, axis=axis, keepdims=True)
    return e * pl.reciprocal(s, approx=True)


def _mm(a, b):
    """Token-wise matmul: bf16 operands, f32 accumulation (MXU-friendly)."""
    return jnp.dot(a.astype(jnp.bfloat16), b.astype(jnp.bfloat16),
                   preferred_element_type=jnp.float32)


# --------------------------------- Pallas kernel --------------------------------
def cross_attention_block_kernel(
    x1_ref, x2_ref,            # [block_b, N, C] f32 each
    g1_ref, b1_ref,            # norm1 (shared by x1 and x2), [1, C]
    wrp_ref, brp_ref,          # 1x1 reprojection conv: weight [C, 2C] bf16, bias [1, 2C]
    ga_ref, ba_ref,            # LayerNorm inside Cross_Attention (2C)
    g2_ref, b2_ref,            # norm2 (2C)
    w_fc1_ref, b_fc1_ref,      # MixFFN fc1 [2C, 4C] bf16, bias [1, 4C]
    w_dw_ref, b_dw_ref,        # depthwise 3x3 weights [9, 4C] f32, bias [1, 4C]
    w_fc2_ref, b_fc2_ref,      # MixFFN fc2 [4C, 2C] bf16, bias [1, 2C]
    mask_ref,                  # [9, R, 1] dw-dtype validity masks (precomputed)
    out_ref,                   # [block_b, N, 2C] f32
    *, W, dw_dtype,
):
    bblk, N, C = x1_ref.shape
    C2 = 2 * C
    R = bblk * N

    x1 = x1_ref[...]                                      # [bblk, N, C]
    x2 = x2_ref[...]
    g1 = g1_ref[0]
    b1 = b1_ref[0]

    # ---- norm1 on both streams (shared LayerNorm, as in the torch module) ----
    n1 = _layernorm(x1, g1, b1)                           # value stream
    n2 = _layernorm(x2, g1, b1)                           # query/key stream

    # ---- Cross_Attention (efficient/linear attention, per image) ----
    query = _softmax_kernel(n2, axis=-1)                  # torch softmax(dim=2)
    key = _softmax_kernel(n2, axis=-2)                    # torch softmax(dim=1)
    # sim[b] = query[b]^T @ key[b] : [bblk, C, C]
    sim = jnp.einsum("bnc,bnd->bcd",
                     query.astype(jnp.bfloat16), key.astype(jnp.bfloat16),
                     preferred_element_type=jnp.float32)
    # token-major att^T: att_t[b,n,c] = sum_d value[b,n,d] * sim[b,c,d]
    att_t = jnp.einsum("bnd,bcd->bnc",
                       n1.astype(jnp.bfloat16), sim.astype(jnp.bfloat16),
                       preferred_element_type=jnp.float32)

    # 1x1 reprojection conv == dense matmul over flattened (batch*token) rows
    rp = _mm(att_t.reshape(R, C), wrp_ref[...]) + brp_ref[0]          # [R, 2C]
    attn_out = _layernorm(rp, ga_ref[0], ba_ref[0])

    # ---- residual: concat(x1, x2) done once in VMEM ----
    resid = jnp.concatenate([x1.reshape(R, C), x2.reshape(R, C)], axis=-1)
    tx = resid + attn_out                                             # [R, 2C]

    # ---- MixFFN: fc1 -> depthwise 3x3 -> GELU -> fc2 ----
    n3 = _layernorm(tx, g2_ref[0], b2_ref[0])
    h = _mm(n3, w_fc1_ref[...]) + b_fc1_ref[0]                        # [R, 4C] f32

    # Depthwise 3x3 (pad=1) as nine row shifts of the flattened [R, 4C]
    # activation.  Row index i = b*N + r*W + c; shifting by delta = dy*W + dx
    # reaches neighbour (r+dy, c+dx).  pltpu.roll wraps; the precomputed mask
    # zeroes rows whose neighbour is outside the image (which also covers any
    # wrap across batch boundaries).  Accumulation runs in dw_dtype (bf16 on
    # v6e/v7x, f32 on v5e); cast-after-roll == cast-before-roll numerically.
    w_dw = w_dw_ref[...].astype(dw_dtype)                 # [9, 4C]
    masks = mask_ref[...]                                 # [9, R, 1]
    acc = h.astype(dw_dtype) * w_dw[4]                    # centre tap: always valid
    k = 0
    for dy in (-1, 0, 1):
        for dx in (-1, 0, 1):
            if dy == 0 and dx == 0:
                k += 1
                continue
            delta = dy * W + dx
            shifted = pltpu.roll(h, shift=(-delta) % R, axis=0)   # out[i] = h[i+delta]
            acc = acc + shifted.astype(dw_dtype) * masks[k] * w_dw[k]
            k += 1

    h2 = jax.nn.gelu(acc.astype(jnp.float32) + b_dw_ref[0])
    mlp_out = _mm(h2, w_fc2_ref[...]) + b_fc2_ref[0]                  # [R, 2C]

    out_ref[...] = (tx + mlp_out).reshape(bblk, N, C2).astype(out_ref.dtype)


PARAM_ORDER = ["g1", "b1", "wrp", "brp", "ga", "ba", "g2", "b2",
               "w_fc1", "b_fc1", "w_dw", "b_dw", "w_fc2", "b_fc2"]


def _dw_compute_dtype():
    """bf16 depthwise accumulation only on chips with a bf16 VPU (v6e and later)."""
    try:
        kind = jax.devices()[0].device_kind.lower()
    except Exception:
        return jnp.float32
    if any(t in kind for t in ("v2", "v3", "v4", "v5")):
        return jnp.float32
    return jnp.bfloat16


def _dw_valid_masks(H, W):
    """[9, N] {0,1} masks: tap (dy,dx) valid for token (r,c) iff neighbour in image."""
    rr, cc = np.divmod(np.arange(H * W), W)
    ms = []
    for dy in (-1, 0, 1):
        for dx in (-1, 0, 1):
            ms.append((rr + dy >= 0) & (rr + dy < H) & (cc + dx >= 0) & (cc + dx < W))
    return np.stack(ms).astype(np.float32)


def cross_attention_block(x1, x2, params, H, W, block_b=None, dw_dtype=None):
    B, N, C = x1.shape
    assert N == H * W
    C2, C4 = 2 * C, 4 * C
    if dw_dtype is None:
        dw_dtype = _dw_compute_dtype()

    # ---- batch blocking: biggest block within the VMEM row budget, while
    # keeping >= 2 grid steps so v7x's second TensorCore isn't idle. ----
    per_row_bytes = 4 * (4 * C4 + 6 * C2)                 # rough live f32 temps per row
    row_budget = max(N, (24 << 20) // per_row_bytes)      # ~24 MiB target (v7x-safe)
    cap_b = max(1, B // 2) if B >= 2 else B
    if block_b is None:
        block_b = 1
        for d in range(1, B + 1):
            if B % d == 0 and d <= cap_b and d * N <= row_budget:
                block_b = d
    grid = (B // block_b,)
    R = block_b * N

    ordered = [params[name] for name in PARAM_ORDER]

    # Precomputed depthwise validity masks, tiled over the batch fold: [9, R, 1].
    mask_n = _dw_valid_masks(H, W)
    mask_flat = jnp.asarray(np.tile(mask_n, (1, block_b))[..., None], dtype=dw_dtype)

    x_spec = pl.BlockSpec((block_b, N, C), lambda b: (b, 0, 0))
    out_spec = pl.BlockSpec((block_b, N, C2), lambda b: (b, 0, 0))

    def full_spec(a):
        nd = a.ndim
        return pl.BlockSpec(a.shape, lambda b, _nd=nd: (0,) * _nd)

    in_specs = ([x_spec, x_spec] + [full_spec(a) for a in ordered]
                + [full_spec(mask_flat)])

    flops = int(2 * B * N * (2 * C * C + C * C2 + C2 * C4 + C4 * C2)
                + 9 * 2 * B * N * C4)
    transcendentals = int(B * N * (2 * C + C4))
    bytes_accessed = int(2 * B * N * C * 4 + B * N * C2 * 4
                         + sum(int(a.size) * a.dtype.itemsize for a in ordered))

    # VMEM: double-buffered I/O blocks + params/masks + live temps, with headroom,
    # clamped to a window that is safe on every generation (v7x has 64 MiB total).
    io_bytes = 2 * (2 * R * C * 4) + 2 * (R * C2 * 4)
    param_bytes = int(sum(int(a.size) * a.dtype.itemsize for a in ordered)
                      + mask_flat.size * mask_flat.dtype.itemsize)
    vmem_est = io_bytes + param_bytes + per_row_bytes * R
    vmem_limit = int(min(max(2 * vmem_est, 32 << 20), 48 << 20))

    kernel = functools.partial(cross_attention_block_kernel, W=W, dw_dtype=dw_dtype)

    return pl.pallas_call(
        kernel,
        out_shape=jax.ShapeDtypeStruct((B, N, C2), jnp.float32),
        grid=grid,
        in_specs=in_specs,
        out_specs=out_spec,
        compiler_params=pltpu.CompilerParams(
            dimension_semantics=("parallel",),
            vmem_limit_bytes=vmem_limit),
        cost_estimate=pl.CostEstimate(flops=flops,
                                      transcendentals=transcendentals,
                                      bytes_accessed=bytes_accessed),
    )(x1, x2, *ordered, mask_flat)


# ------------------------------ plain-JAX glue ----------------------------------
def init_params(key, D):
    C2, C4 = 2 * D, 4 * D
    ks = jax.random.split(key, 8)
    f32, bf16 = jnp.float32, jnp.bfloat16
    return dict(
        g1=jnp.ones((1, D), f32), b1=jnp.zeros((1, D), f32),
        wrp=(0.1 * jax.random.normal(ks[0], (D, C2), f32)).astype(bf16),
        brp=0.1 * jax.random.normal(ks[1], (1, C2), f32),
        ga=jnp.ones((1, C2), f32), ba=jnp.zeros((1, C2), f32),
        g2=jnp.ones((1, C2), f32), b2=jnp.zeros((1, C2), f32),
        w_fc1=(0.1 * jax.random.normal(ks[2], (C2, C4), f32)).astype(bf16),
        b_fc1=0.1 * jax.random.normal(ks[3], (1, C4), f32),
        w_dw=0.1 * jax.random.normal(ks[4], (9, C4), f32),
        b_dw=0.1 * jax.random.normal(ks[5], (1, C4), f32),
        w_fc2=(0.1 * jax.random.normal(ks[6], (C4, C2), f32)).astype(bf16),
        b_fc2=0.1 * jax.random.normal(ks[7], (1, C2), f32),
    )


def _softmax_ref(x, axis):
    m = jnp.max(x, axis=axis, keepdims=True)
    e = jnp.exp(x - m)
    return e / jnp.sum(e, axis=axis, keepdims=True)


def _dwconv3x3_ref(h, w_dw, H, W):
    """Reference depthwise 3x3 conv (pad=1) via 2D padding — formulation-independent
    of the kernel's flattened roll+mask trick (same accumulation dtype policy)."""
    B, N, Cm = h.shape
    img = h.reshape(B, H, W, Cm)
    padded = jnp.pad(img, ((0, 0), (1, 1), (1, 1), (0, 0)))
    acc = jnp.zeros_like(img)
    k = 0
    for dy in (-1, 0, 1):
        for dx in (-1, 0, 1):
            acc = acc + padded[:, 1 + dy:1 + dy + H, 1 + dx:1 + dx + W, :] * w_dw[k]
            k += 1
    return acc.reshape(B, N, Cm)


def reference(x1, x2, p, H, W, dw_dtype):
    """Pure-JAX mirror of the forward pass (same bf16-operand matmul / dw policy)."""
    bf16, f32 = jnp.bfloat16, jnp.float32
    g1, b1 = p["g1"][0], p["b1"][0]
    n1 = _layernorm(x1, g1, b1)
    n2 = _layernorm(x2, g1, b1)
    q = _softmax_ref(n2, axis=2)
    k = _softmax_ref(n2, axis=1)
    sim = jnp.einsum("bnc,bnd->bcd", q.astype(bf16), k.astype(bf16),
                     preferred_element_type=f32)
    att_t = jnp.einsum("bnd,bcd->bnc", n1.astype(bf16), sim.astype(bf16),
                       preferred_element_type=f32)
    rp = jnp.einsum("bnc,co->bno", att_t.astype(bf16), p["wrp"],
                    preferred_element_type=f32) + p["brp"][0]
    attn_out = _layernorm(rp, p["ga"][0], p["ba"][0])
    tx = jnp.concatenate([x1, x2], axis=-1) + attn_out
    n3 = _layernorm(tx, p["g2"][0], p["b2"][0])
    h = jnp.einsum("bnc,co->bno", n3.astype(bf16), p["w_fc1"],
                   preferred_element_type=f32) + p["b_fc1"][0]
    hd = _dwconv3x3_ref(h.astype(dw_dtype), p["w_dw"].astype(dw_dtype), H, W)
    h2 = jax.nn.gelu(hd.astype(f32) + p["b_dw"][0])
    mlp = jnp.einsum("bnc,co->bno", h2.astype(bf16), p["w_fc2"],
                     preferred_element_type=f32) + p["b_fc2"][0]
    return tx + mlp


if __name__ == "__main__":
    # D=64 is a realistic MISSFormer bridge width -> 2C=128 / 4C=256 (lane-dense).
    B, D, H, W = 2, 64, 8, 8
    N = H * W

    key = jax.random.PRNGKey(0)
    k_x1, k_x2, k_p = jax.random.split(key, 3)
    x1 = jax.random.normal(k_x1, (B, N, D), jnp.float32)
    x2 = jax.random.normal(k_x2, (B, N, D), jnp.float32)
    params = init_params(k_p, D)

    dw_dtype = _dw_compute_dtype()
    out = cross_attention_block(x1, x2, params, H, W, dw_dtype=dw_dtype)
    out = jax.block_until_ready(out)

    ref = reference(x1, x2, params, H, W, dw_dtype)
    assert out.shape == (B, N, 2 * D), out.shape
    max_err = float(jnp.max(jnp.abs(out - ref)))
    assert bool(jnp.allclose(out, ref, rtol=2e-2, atol=2e-2)), max_err
    print("KERNEL_OK")
</pallas_src>

<mosaic_0001>
module attributes {stable_mosaic.version = 11 : i64} {
  func.func @cross_attention_block_kernel(%arg0: i32, %arg1: memref<1x64x64xf32, #tpu.memory_space<vmem>>, %arg2: memref<1x64x64xf32, #tpu.memory_space<vmem>>, %arg3: memref<1x64xf32, #tpu.memory_space<vmem>>, %arg4: memref<1x64xf32, #tpu.memory_space<vmem>>, %arg5: memref<64x128xbf16, #tpu.memory_space<vmem>>, %arg6: memref<1x128xf32, #tpu.memory_space<vmem>>, %arg7: memref<1x128xf32, #tpu.memory_space<vmem>>, %arg8: memref<1x128xf32, #tpu.memory_space<vmem>>, %arg9: memref<1x128xf32, #tpu.memory_space<vmem>>, %arg10: memref<1x128xf32, #tpu.memory_space<vmem>>, %arg11: memref<128x256xbf16, #tpu.memory_space<vmem>>, %arg12: memref<1x256xf32, #tpu.memory_space<vmem>>, %arg13: memref<9x256xf32, #tpu.memory_space<vmem>>, %arg14: memref<1x256xf32, #tpu.memory_space<vmem>>, %arg15: memref<256x128xbf16, #tpu.memory_space<vmem>>, %arg16: memref<1x128xf32, #tpu.memory_space<vmem>>, %arg17: memref<9x64x1xbf16, #tpu.memory_space<vmem>>, %arg18: memref<1x64x128xf32, #tpu.memory_space<vmem>>) attributes {dimension_semantics = [#tpu.dimension_semantics<parallel>], iteration_bounds = array<i64: 2>, scalar_prefetch = 0 : i64, scratch_operands = 0 : i64, tpu.core_type = #tpu.core_type<tc>, window_params = [{transform_indices = @transform_0, window_bounds = array<i64: 1, 64, 64>}, {transform_indices = @transform_1, window_bounds = array<i64: 1, 64, 64>}, {pipeline_mode = #tpu.pipeline_mode<synchronous>, transform_indices = @transform_2, window_bounds = array<i64: 1, 64>}, {pipeline_mode = #tpu.pipeline_mode<synchronous>, transform_indices = @transform_3, window_bounds = array<i64: 1, 64>}, {pipeline_mode = #tpu.pipeline_mode<synchronous>, transform_indices = @transform_4, window_bounds = array<i64: 64, 128>}, {pipeline_mode = #tpu.pipeline_mode<synchronous>, transform_indices = @transform_5, window_bounds = array<i64: 1, 128>}, {pipeline_mode = #tpu.pipeline_mode<synchronous>, transform_indices = @transform_6, window_bounds = array<i64: 1, 128>}, {pipeline_mode = #tpu.pipeline_mode<synchronous>, transform_indices = @transform_7, window_bounds = array<i64: 1, 128>}, {pipeline_mode = #tpu.pipeline_mode<synchronous>, transform_indices = @transform_8, window_bounds = array<i64: 1, 128>}, {pipeline_mode = #tpu.pipeline_mode<synchronous>, transform_indices = @transform_9, window_bounds = array<i64: 1, 128>}, {pipeline_mode = #tpu.pipeline_mode<synchronous>, transform_indices = @transform_10, window_bounds = array<i64: 128, 256>}, {pipeline_mode = #tpu.pipeline_mode<synchronous>, transform_indices = @transform_11, window_bounds = array<i64: 1, 256>}, {pipeline_mode = #tpu.pipeline_mode<synchronous>, transform_indices = @transform_12, window_bounds = array<i64: 9, 256>}, {pipeline_mode = #tpu.pipeline_mode<synchronous>, transform_indices = @transform_13, window_bounds = array<i64: 1, 256>}, {pipeline_mode = #tpu.pipeline_mode<synchronous>, transform_indices = @transform_14, window_bounds = array<i64: 256, 128>}, {pipeline_mode = #tpu.pipeline_mode<synchronous>, transform_indices = @transform_15, window_bounds = array<i64: 1, 128>}, {pipeline_mode = #tpu.pipeline_mode<synchronous>, transform_indices = @transform_16, window_bounds = array<i64: 9, 64, 1>}, {transform_indices = @transform_17, window_bounds = array<i64: 1, 64, 128>}]} {
    %c0 = arith.constant 0 : index
    %c0_0 = arith.constant 0 : index
    %c0_1 = arith.constant 0 : index
    %0 = vector.load %arg1[%c0, %c0_0, %c0_1] : memref<1x64x64xf32, #tpu.memory_space<vmem>>, vector<1x64x64xf32>
    %c0_2 = arith.constant 0 : index
    %c0_3 = arith.constant 0 : index
    %c0_4 = arith.constant 0 : index
    %1 = vector.load %arg2[%c0_2, %c0_3, %c0_4] : memref<1x64x64xf32, #tpu.memory_space<vmem>>, vector<1x64x64xf32>
    %c0_5 = arith.constant 0 : index
    %c0_6 = arith.constant 0 : index
    %2 = vector.load %arg3[%c0_5, %c0_6] : memref<1x64xf32, #tpu.memory_space<vmem>>, vector<1x64xf32>
    %3 = vector.shape_cast %2 : vector<1x64xf32> to vector<64xf32>
    %c0_7 = arith.constant 0 : index
    %c0_8 = arith.constant 0 : index
    %4 = vector.load %arg4[%c0_7, %c0_8] : memref<1x64xf32, #tpu.memory_space<vmem>>, vector<1x64xf32>
    %5 = vector.shape_cast %4 : vector<1x64xf32> to vector<64xf32>
    %cst = arith.constant dense<0.000000e+00> : vector<1x64xf32>
    %6 = vector.multi_reduction <add>, %0, %cst [2] : vector<1x64x64xf32> to vector<1x64xf32>
    %7 = vector.shape_cast %6 : vector<1x64xf32> to vector<1x64x1xf32>
    %cst_9 = arith.constant 6.400000e+01 : f32
    %8 = vector.broadcast %cst_9 : f32 to vector<1x64x1xf32>
    %9 = arith.divf %7, %8 : vector<1x64x1xf32>
    %10 = vector.broadcast %9 : vector<1x64x1xf32> to vector<1x64x64xf32>
    %11 = arith.subf %0, %10 : vector<1x64x64xf32>
    %12 = arith.mulf %11, %11 : vector<1x64x64xf32>
    %cst_10 = arith.constant dense<0.000000e+00> : vector<1x64xf32>
    %13 = vector.multi_reduction <add>, %12, %cst_10 [2] : vector<1x64x64xf32> to vector<1x64xf32>
    %14 = vector.shape_cast %13 : vector<1x64xf32> to vector<1x64x1xf32>
    %cst_11 = arith.constant 6.400000e+01 : f32
    %15 = vector.broadcast %cst_11 : f32 to vector<1x64x1xf32>
    %16 = arith.divf %14, %15 : vector<1x64x1xf32>
    %17 = vector.broadcast %9 : vector<1x64x1xf32> to vector<1x64x64xf32>
    %18 = arith.subf %0, %17 : vector<1x64x64xf32>
    %cst_12 = arith.constant 9.99999974E-6 : f32
    %19 = vector.broadcast %cst_12 : f32 to vector<1x64x1xf32>
    %20 = arith.addf %16, %19 : vector<1x64x1xf32>
    %21 = math.rsqrt %20 : vector<1x64x1xf32>
    %22 = vector.broadcast %21 : vector<1x64x1xf32> to vector<1x64x64xf32>
    %23 = arith.mulf %18, %22 : vector<1x64x64xf32>
    %24 = vector.shape_cast %3 : vector<64xf32> to vector<1x1x64xf32>
    %25 = vector.broadcast %24 : vector<1x1x64xf32> to vector<1x64x64xf32>
    %26 = arith.mulf %23, %25 : vector<1x64x64xf32>
    %27 = vector.shape_cast %5 : vector<64xf32> to vector<1x1x64xf32>
    %28 = vector.broadcast %27 : vector<1x1x64xf32> to vector<1x64x64xf32>
    %29 = arith.addf %26, %28 : vector<1x64x64xf32>
    %cst_13 = arith.constant dense<0.000000e+00> : vector<1x64xf32>
    %30 = vector.multi_reduction <add>, %1, %cst_13 [2] : vector<1x64x64xf32> to vector<1x64xf32>
    %31 = vector.shape_cast %30 : vector<1x64xf32> to vector<1x64x1xf32>
    %cst_14 = arith.constant 6.400000e+01 : f32
    %32 = vector.broadcast %cst_14 : f32 to vector<1x64x1xf32>
    %33 = arith.divf %31, %32 : vector<1x64x1xf32>
    %34 = vector.broadcast %33 : vector<1x64x1xf32> to vector<1x64x64xf32>
    %35 = arith.subf %1, %34 : vector<1x64x64xf32>
    %36 = arith.mulf %35, %35 : vector<1x64x64xf32>
    %cst_15 = arith.constant dense<0.000000e+00> : vector<1x64xf32>
    %37 = vector.multi_reduction <add>, %36, %cst_15 [2] : vector<1x64x64xf32> to vector<1x64xf32>
    %38 = vector.shape_cast %37 : vector<1x64xf32> to vector<1x64x1xf32>
    %cst_16 = arith.constant 6.400000e+01 : f32
    %39 = vector.broadcast %cst_16 : f32 to vector<1x64x1xf32>
    %40 = arith.divf %38, %39 : vector<1x64x1xf32>
    %41 = vector.broadcast %33 : vector<1x64x1xf32> to vector<1x64x64xf32>
    %42 = arith.subf %1, %41 : vector<1x64x64xf32>
    %cst_17 = arith.constant 9.99999974E-6 : f32
    %43 = vector.broadcast %cst_17 : f32 to vector<1x64x1xf32>
    %44 = arith.addf %40, %43 : vector<1x64x1xf32>
    %45 = math.rsqrt %44 : vector<1x64x1xf32>
    %46 = vector.broadcast %45 : vector<1x64x1xf32> to vector<1x64x64xf32>
    %47 = arith.mulf %42, %46 : vector<1x64x64xf32>
    %48 = vector.shape_cast %3 : vector<64xf32> to vector<1x1x64xf32>
    %49 = vector.broadcast %48 : vector<1x1x64xf32> to vector<1x64x64xf32>
    %50 = arith.mulf %47, %49 : vector<1x64x64xf32>
    %51 = vector.shape_cast %5 : vector<64xf32> to vector<1x1x64xf32>
    %52 = vector.broadcast %51 : vector<1x1x64xf32> to vector<1x64x64xf32>
    %53 = arith.addf %50, %52 : vector<1x64x64xf32>
    %cst_18 = arith.constant dense<0xFF800000> : vector<1x64xf32>
    %54 = vector.multi_reduction <maximumf>, %53, %cst_18 [2] : vector<1x64x64xf32> to vector<1x64xf32>
    %55 = vector.shape_cast %54 : vector<1x64xf32> to vector<1x64x1xf32>
    %56 = vector.broadcast %55 : vector<1x64x1xf32> to vector<1x64x64xf32>
    %57 = arith.subf %53, %56 : vector<1x64x64xf32>
    %58 = math.exp %57 : vector<1x64x64xf32>
    %cst_19 = arith.constant dense<0.000000e+00> : vector<1x64xf32>
    %59 = vector.multi_reduction <add>, %58, %cst_19 [2] : vector<1x64x64xf32> to vector<1x64xf32>
    %60 = vector.shape_cast %59 : vector<1x64xf32> to vector<1x64x1xf32>
    %61 = tpu.reciprocal %60 {approx = true} : vector<1x64x1xf32> -> vector<1x64x1xf32>
    %62 = vector.broadcast %61 : vector<1x64x1xf32> to vector<1x64x64xf32>
    %63 = arith.mulf %58, %62 : vector<1x64x64xf32>
    %cst_20 = arith.constant dense<0xFF800000> : vector<1x64xf32>
    %64 = vector.multi_reduction <maximumf>, %53, %cst_20 [1] : vector<1x64x64xf32> to vector<1x64xf32>
    %65 = vector.shape_cast %64 : vector<1x64xf32> to vector<1x1x64xf32>
    %66 = vector.broadcast %65 : vector<1x1x64xf32> to vector<1x64x64xf32>
    %67 = arith.subf %53, %66 : vector<1x64x64xf32>
    %68 = math.exp %67 : vector<1x64x64xf32>
    %cst_21 = arith.constant dense<0.000000e+00> : vector<1x64xf32>
    %69 = vector.multi_reduction <add>, %68, %cst_21 [1] : vector<1x64x64xf32> to vector<1x64xf32>
    %70 = vector.shape_cast %69 : vector<1x64xf32> to vector<1x1x64xf32>
    %71 = tpu.reciprocal %70 {approx = true} : vector<1x1x64xf32> -> vector<1x1x64xf32>
    %72 = vector.broadcast %71 : vector<1x1x64xf32> to vector<1x64x64xf32>
    %73 = arith.mulf %68, %72 : vector<1x64x64xf32>
    %74 = arith.truncf %63 : vector<1x64x64xf32> to vector<1x64x64xbf16>
    %75 = arith.truncf %73 : vector<1x64x64xf32> to vector<1x64x64xbf16>
    "tpu.trace_start"() <{level = 10 : i32, message = "bnc,bnd->bcd"}> : () -> ()
    %cst_22 = arith.constant dense<0.000000e+00> : vector<1x64x64xf32>
    %76 = tpu.matmul %74, %75, %cst_22 {dimension_numbers = #tpu.dot_dimension_numbers<[1], [1], [2], [2], [0, 0, 0, 2, 1, 2], [0], [0]>} : vector<1x64x64xbf16>, vector<1x64x64xbf16>, vector<1x64x64xf32> -> vector<1x64x64xf32>
    "tpu.trace_stop"() : () -> ()
    %77 = arith.truncf %29 : vector<1x64x64xf32> to vector<1x64x64xbf16>
    %78 = arith.truncf %76 : vector<1x64x64xf32> to vector<1x64x64xbf16>
    "tpu.trace_start"() <{level = 10 : i32, message = "bnd,bcd->bnc"}> : () -> ()
    %cst_23 = arith.constant dense<0.000000e+00> : vector<1x64x64xf32>
    %79 = tpu.matmul %77, %78, %cst_23 {dimension_numbers = #tpu.dot_dimension_numbers<[2], [2], [1], [1], [0, 0, 0, 1, 1, 1], [0], [0]>} : vector<1x64x64xbf16>, vector<1x64x64xbf16>, vector<1x64x64xf32> -> vector<1x64x64xf32>
    "tpu.trace_stop"() : () -> ()
    %80 = vector.shape_cast %79 : vector<1x64x64xf32> to vector<64x64xf32>
    %c0_24 = arith.constant 0 : index
    %c0_25 = arith.constant 0 : index
    %81 = vector.load %arg5[%c0_24, %c0_25] : memref<64x128xbf16, #tpu.memory_space<vmem>>, vector<64x128xbf16>
    %82 = arith.truncf %80 : vector<64x64xf32> to vector<64x64xbf16>
    %cst_26 = arith.constant dense<0.000000e+00> : vector<64x128xf32>
    %83 = tpu.matmul %82, %81, %cst_26 {dimension_numbers = #tpu.dot_dimension_numbers<[1], [0], [0], [1], [0, 0, 1, 1], [], []>} : vector<64x64xbf16>, vector<64x128xbf16>, vector<64x128xf32> -> vector<64x128xf32>
    %c0_27 = arith.constant 0 : index
    %c0_28 = arith.constant 0 : index
    %84 = vector.load %arg6[%c0_27, %c0_28] : memref<1x128xf32, #tpu.memory_space<vmem>>, vector<1x128xf32>
    %85 = vector.shape_cast %84 : vector<1x128xf32> to vector<128xf32>
    %86 = vector.shape_cast %85 : vector<128xf32> to vector<1x128xf32>
    %87 = vector.broadcast %86 : vector<1x128xf32> to vector<64x128xf32>
    %88 = arith.addf %83, %87 : vector<64x128xf32>
    %c0_29 = arith.constant 0 : index
    %c0_30 = arith.constant 0 : index
    %89 = vector.load %arg7[%c0_29, %c0_30] : memref<1x128xf32, #tpu.memory_space<vmem>>, vector<1x128xf32>
    %90 = vector.shape_cast %89 : vector<1x128xf32> to vector<128xf32>
    %c0_31 = arith.constant 0 : index
    %c0_32 = arith.constant 0 : index
    %91 = vector.load %arg8[%c0_31, %c0_32] : memref<1x128xf32, #tpu.memory_space<vmem>>, vector<1x128xf32>
    %92 = vector.shape_cast %91 : vector<1x128xf32> to vector<128xf32>
    %cst_33 = arith.constant dense<0.000000e+00> : vector<64xf32>
    %93 = vector.multi_reduction <add>, %88, %cst_33 [1] : vector<64x128xf32> to vector<64xf32>
    %94 = vector.shape_cast %93 : vector<64xf32> to vector<64x1xf32>
    %cst_34 = arith.constant 1.280000e+02 : f32
    %95 = vector.broadcast %cst_34 : f32 to vector<64x1xf32>
    %96 = arith.divf %94, %95 : vector<64x1xf32>
    %97 = vector.broadcast %96 : vector<64x1xf32> to vector<64x128xf32>
    %98 = arith.subf %88, %97 : vector<64x128xf32>
    %99 = arith.mulf %98, %98 : vector<64x128xf32>
    %cst_35 = arith.constant dense<0.000000e+00> : vector<64xf32>
    %100 = vector.multi_reduction <add>, %99, %cst_35 [1] : vector<64x128xf32> to vector<64xf32>
    %101 = vector.shape_cast %100 : vector<64xf32> to vector<64x1xf32>
    %cst_36 = arith.constant 1.280000e+02 : f32
    %102 = vector.broadcast %cst_36 : f32 to vector<64x1xf32>
    %103 = arith.divf %101, %102 : vector<64x1xf32>
    %104 = vector.broadcast %96 : vector<64x1xf32> to vector<64x128xf32>
    %105 = arith.subf %88, %104 : vector<64x128xf32>
    %cst_37 = arith.constant 9.99999974E-6 : f32
    %106 = vector.broadcast %cst_37 : f32 to vector<64x1xf32>
    %107 = arith.addf %103, %106 : vector<64x1xf32>
    %108 = math.rsqrt %107 : vector<64x1xf32>
    %109 = vector.broadcast %108 : vector<64x1xf32> to vector<64x128xf32>
    %110 = arith.mulf %105, %109 : vector<64x128xf32>
    %111 = vector.shape_cast %90 : vector<128xf32> to vector<1x128xf32>
    %112 = vector.broadcast %111 : vector<1x128xf32> to vector<64x128xf32>
    %113 = arith.mulf %110, %112 : vector<64x128xf32>
    %114 = vector.shape_cast %92 : vector<128xf32> to vector<1x128xf32>
    %115 = vector.broadcast %114 : vector<1x128xf32> to vector<64x128xf32>
    %116 = arith.addf %113, %115 : vector<64x128xf32>
    %117 = vector.shape_cast %0 : vector<1x64x64xf32> to vector<64x64xf32>
    %118 = vector.shape_cast %1 : vector<1x64x64xf32> to vector<64x64xf32>
    %119 = tpu.concatenate %117, %118 in 1 : vector<64x64xf32>, vector<64x64xf32> -> vector<64x128xf32>
    %120 = arith.addf %119, %116 : vector<64x128xf32>
    %c0_38 = arith.constant 0 : index
    %c0_39 = arith.constant 0 : index
    %121 = vector.load %arg9[%c0_38, %c0_39] : memref<1x128xf32, #tpu.memory_space<vmem>>, vector<1x128xf32>
    %122 = vector.shape_cast %121 : vector<1x128xf32> to vector<128xf32>
    %c0_40 = arith.constant 0 : index
    %c0_41 = arith.constant 0 : index
    %123 = vector.load %arg10[%c0_40, %c0_41] : memref<1x128xf32, #tpu.memory_space<vmem>>, vector<1x128xf32>
    %124 = vector.shape_cast %123 : vector<1x128xf32> to vector<128xf32>
    %cst_42 = arith.constant dense<0.000000e+00> : vector<64xf32>
    %125 = vector.multi_reduction <add>, %120, %cst_42 [1] : vector<64x128xf32> to vector<64xf32>
    %126 = vector.shape_cast %125 : vector<64xf32> to vector<64x1xf32>
    %cst_43 = arith.constant 1.280000e+02 : f32
    %127 = vector.broadcast %cst_43 : f32 to vector<64x1xf32>
    %128 = arith.divf %126, %127 : vector<64x1xf32>
    %129 = vector.broadcast %128 : vector<64x1xf32> to vector<64x128xf32>
    %130 = arith.subf %120, %129 : vector<64x128xf32>
    %131 = arith.mulf %130, %130 : vector<64x128xf32>
    %cst_44 = arith.constant dense<0.000000e+00> : vector<64xf32>
    %132 = vector.multi_reduction <add>, %131, %cst_44 [1] : vector<64x128xf32> to vector<64xf32>
    %133 = vector.shape_cast %132 : vector<64xf32> to vector<64x1xf32>
    %cst_45 = arith.constant 1.280000e+02 : f32
    %134 = vector.broadcast %cst_45 : f32 to vector<64x1xf32>
    %135 = arith.divf %133, %134 : vector<64x1xf32>
    %136 = vector.broadcast %128 : vector<64x1xf32> to vector<64x128xf32>
    %137 = arith.subf %120, %136 : vector<64x128xf32>
    %cst_46 = arith.constant 9.99999974E-6 : f32
    %138 = vector.broadcast %cst_46 : f32 to vector<64x1xf32>
    %139 = arith.addf %135, %138 : vector<64x1xf32>
    %140 = math.rsqrt %139 : vector<64x1xf32>
    %141 = vector.broadcast %140 : vector<64x1xf32> to vector<64x128xf32>
    %142 = arith.mulf %137, %141 : vector<64x128xf32>
    %143 = vector.shape_cast %122 : vector<128xf32> to vector<1x128xf32>
    %144 = vector.broadcast %143 : vector<1x128xf32> to vector<64x128xf32>
    %145 = arith.mulf %142, %144 : vector<64x128xf32>
    %146 = vector.shape_cast %124 : vector<128xf32> to vector<1x128xf32>
    %147 = vector.broadcast %146 : vector<1x128xf32> to vector<64x128xf32>
    %148 = arith.addf %145, %147 : vector<64x128xf32>
    %c0_47 = arith.constant 0 : index
    %c0_48 = arith.constant 0 : index
    %149 = vector.load %arg11[%c0_47, %c0_48] : memref<128x256xbf16, #tpu.memory_space<vmem>>, vector<128x256xbf16>
    %150 = arith.truncf %148 : vector<64x128xf32> to vector<64x128xbf16>
    %cst_49 = arith.constant dense<0.000000e+00> : vector<64x256xf32>
    %151 = tpu.matmul %150, %149, %cst_49 {dimension_numbers = #tpu.dot_dimension_numbers<[1], [0], [0], [1], [0, 0, 1, 1], [], []>} : vector<64x128xbf16>, vector<128x256xbf16>, vector<64x256xf32> -> vector<64x256xf32>
    %c0_50 = arith.constant 0 : index
    %c0_51 = arith.constant 0 : index
    %152 = vector.load %arg12[%c0_50, %c0_51] : memref<1x256xf32, #tpu.memory_space<vmem>>, vector<1x256xf32>
    %153 = vector.shape_cast %152 : vector<1x256xf32> to vector<256xf32>
    %154 = vector.shape_cast %153 : vector<256xf32> to vector<1x256xf32>
    %155 = vector.broadcast %154 : vector<1x256xf32> to vector<64x256xf32>
    %156 = arith.addf %151, %155 : vector<64x256xf32>
    %c0_52 = arith.constant 0 : index
    %c0_53 = arith.constant 0 : index
    %157 = vector.load %arg13[%c0_52, %c0_53] : memref<9x256xf32, #tpu.memory_space<vmem>>, vector<9x256xf32>
    %158 = arith.truncf %157 : vector<9x256xf32> to vector<9x256xbf16>
    %c0_54 = arith.constant 0 : index
    %c0_55 = arith.constant 0 : index
    %c0_56 = arith.constant 0 : index
    %159 = vector.load %arg17[%c0_54, %c0_55, %c0_56] : memref<9x64x1xbf16, #tpu.memory_space<vmem>>, vector<9x64x1xbf16>
    %160 = arith.truncf %156 : vector<64x256xf32> to vector<64x256xbf16>
    %161 = vector.extract_strided_slice %158 {offsets = [4, 0], sizes = [1, 256], strides = [1, 1]} : vector<9x256xbf16> to vector<1x256xbf16>
    %162 = vector.shape_cast %161 : vector<1x256xbf16> to vector<256xbf16>
    %163 = vector.shape_cast %162 : vector<256xbf16> to vector<1x256xbf16>
    %164 = vector.broadcast %163 : vector<1x256xbf16> to vector<64x256xbf16>
    %165 = arith.mulf %160, %164 : vector<64x256xbf16>
    %c9_i32 = arith.constant 9 : i32
    %166 = tpu.dynamic_rotate %156 by %c9_i32 dim 0 : vector<64x256xf32>, i32 -> vector<64x256xf32>
    %167 = arith.truncf %166 : vector<64x256xf32> to vector<64x256xbf16>
    %168 = vector.extract_strided_slice %159 {offsets = [0, 0, 0], sizes = [1, 64, 1], strides = [1, 1, 1]} : vector<9x64x1xbf16> to vector<1x64x1xbf16>
    %169 = vector.shape_cast %168 : vector<1x64x1xbf16> to vector<64x1xbf16>
    %170 = vector.broadcast %169 : vector<64x1xbf16> to vector<64x256xbf16>
    %171 = arith.mulf %167, %170 : vector<64x256xbf16>
    %172 = vector.extract_strided_slice %158 {offsets = [0, 0], sizes = [1, 256], strides = [1, 1]} : vector<9x256xbf16> to vector<1x256xbf16>
    %173 = vector.shape_cast %172 : vector<1x256xbf16> to vector<256xbf16>
    %174 = vector.shape_cast %173 : vector<256xbf16> to vector<1x256xbf16>
    %175 = vector.broadcast %174 : vector<1x256xbf16> to vector<64x256xbf16>
    %176 = arith.mulf %171, %175 : vector<64x256xbf16>
    %177 = arith.addf %165, %176 : vector<64x256xbf16>
    %c8_i32 = arith.constant 8 : i32
    %178 = tpu.dynamic_rotate %156 by %c8_i32 dim 0 : vector<64x256xf32>, i32 -> vector<64x256xf32>
    %179 = arith.truncf %178 : vector<64x256xf32> to vector<64x256xbf16>
    %180 = vector.extract_strided_slice %159 {offsets = [1, 0, 0], sizes = [1, 64, 1], strides = [1, 1, 1]} : vector<9x64x1xbf16> to vector<1x64x1xbf16>
    %181 = vector.shape_cast %180 : vector<1x64x1xbf16> to vector<64x1xbf16>
    %182 = vector.broadcast %181 : vector<64x1xbf16> to vector<64x256xbf16>
    %183 = arith.mulf %179, %182 : vector<64x256xbf16>
    %184 = vector.extract_strided_slice %158 {offsets = [1, 0], sizes = [1, 256], strides = [1, 1]} : vector<9x256xbf16> to vector<1x256xbf16>
    %185 = vector.shape_cast %184 : vector<1x256xbf16> to vector<256xbf16>
    %186 = vector.shape_cast %185 : vector<256xbf16> to vector<1x256xbf16>
    %187 = vector.broadcast %186 : vector<1x256xbf16> to vector<64x256xbf16>
    %188 = arith.mulf %183, %187 : vector<64x256xbf16>
    %189 = arith.addf %177, %188 : vector<64x256xbf16>
    %c7_i32 = arith.constant 7 : i32
    %190 = tpu.dynamic_rotate %156 by %c7_i32 dim 0 : vector<64x256xf32>, i32 -> vector<64x256xf32>
    %191 = arith.truncf %190 : vector<64x256xf32> to vector<64x256xbf16>
    %192 = vector.extract_strided_slice %159 {offsets = [2, 0, 0], sizes = [1, 64, 1], strides = [1, 1, 1]} : vector<9x64x1xbf16> to vector<1x64x1xbf16>
    %193 = vector.shape_cast %192 : vector<1x64x1xbf16> to vector<64x1xbf16>
    %194 = vector.broadcast %193 : vector<64x1xbf16> to vector<64x256xbf16>
    %195 = arith.mulf %191, %194 : vector<64x256xbf16>
    %196 = vector.extract_strided_slice %158 {offsets = [2, 0], sizes = [1, 256], strides = [1, 1]} : vector<9x256xbf16> to vector<1x256xbf16>
    %197 = vector.shape_cast %196 : vector<1x256xbf16> to vector<256xbf16>
    %198 = vector.shape_cast %197 : vector<256xbf16> to vector<1x256xbf16>
    %199 = vector.broadcast %198 : vector<1x256xbf16> to vector<64x256xbf16>
    %200 = arith.mulf %195, %199 : vector<64x256xbf16>
    %201 = arith.addf %189, %200 : vector<64x256xbf16>
    %c1_i32 = arith.constant 1 : i32
    %202 = tpu.dynamic_rotate %156 by %c1_i32 dim 0 : vector<64x256xf32>, i32 -> vector<64x256xf32>
    %203 = arith.truncf %202 : vector<64x256xf32> to vector<64x256xbf16>
    %204 = vector.extract_strided_slice %159 {offsets = [3, 0, 0], sizes = [1, 64, 1], strides = [1, 1, 1]} : vector<9x64x1xbf16> to vector<1x64x1xbf16>
    %205 = vector.shape_cast %204 : vector<1x64x1xbf16> to vector<64x1xbf16>
    %206 = vector.broadcast %205 : vector<64x1xbf16> to vector<64x256xbf16>
    %207 = arith.mulf %203, %206 : vector<64x256xbf16>
    %208 = vector.extract_strided_slice %158 {offsets = [3, 0], sizes = [1, 256], strides = [1, 1]} : vector<9x256xbf16> to vector<1x256xbf16>
    %209 = vector.shape_cast %208 : vector<1x256xbf16> to vector<256xbf16>
    %210 = vector.shape_cast %209 : vector<256xbf16> to vector<1x256xbf16>
    %211 = vector.broadcast %210 : vector<1x256xbf16> to vector<64x256xbf16>
    %212 = arith.mulf %207, %211 : vector<64x256xbf16>
    %213 = arith.addf %201, %212 : vector<64x256xbf16>
    %c63_i32 = arith.constant 63 : i32
    %214 = tpu.dynamic_rotate %156 by %c63_i32 dim 0 : vector<64x256xf32>, i32 -> vector<64x256xf32>
    %215 = arith.truncf %214 : vector<64x256xf32> to vector<64x256xbf16>
    %216 = vector.extract_strided_slice %159 {offsets = [5, 0, 0], sizes = [1, 64, 1], strides = [1, 1, 1]} : vector<9x64x1xbf16> to vector<1x64x1xbf16>
    %217 = vector.shape_cast %216 : vector<1x64x1xbf16> to vector<64x1xbf16>
    %218 = vector.broadcast %217 : vector<64x1xbf16> to vector<64x256xbf16>
    %219 = arith.mulf %215, %218 : vector<64x256xbf16>
    %220 = vector.extract_strided_slice %158 {offsets = [5, 0], sizes = [1, 256], strides = [1, 1]} : vector<9x256xbf16> to vector<1x256xbf16>
    %221 = vector.shape_cast %220 : vector<1x256xbf16> to vector<256xbf16>
    %222 = vector.shape_cast %221 : vector<256xbf16> to vector<1x256xbf16>
    %223 = vector.broadcast %222 : vector<1x256xbf16> to vector<64x256xbf16>
    %224 = arith.mulf %219, %223 : vector<64x256xbf16>
    %225 = arith.addf %213, %224 : vector<64x256xbf16>
    %c57_i32 = arith.constant 57 : i32
    %226 = tpu.dynamic_rotate %156 by %c57_i32 dim 0 : vector<64x256xf32>, i32 -> vector<64x256xf32>
    %227 = arith.truncf %226 : vector<64x256xf32> to vector<64x256xbf16>
    %228 = vector.extract_strided_slice %159 {offsets = [6, 0, 0], sizes = [1, 64, 1], strides = [1, 1, 1]} : vector<9x64x1xbf16> to vector<1x64x1xbf16>
    %229 = vector.shape_cast %228 : vector<1x64x1xbf16> to vector<64x1xbf16>
    %230 = vector.broadcast %229 : vector<64x1xbf16> to vector<64x256xbf16>
    %231 = arith.mulf %227, %230 : vector<64x256xbf16>
    %232 = vector.extract_strided_slice %158 {offsets = [6, 0], sizes = [1, 256], strides = [1, 1]} : vector<9x256xbf16> to vector<1x256xbf16>
    %233 = vector.shape_cast %232 : vector<1x256xbf16> to vector<256xbf16>
    %234 = vector.shape_cast %233 : vector<256xbf16> to vector<1x256xbf16>
    %235 = vector.broadcast %234 : vector<1x256xbf16> to vector<64x256xbf16>
    %236 = arith.mulf %231, %235 : vector<64x256xbf16>
    %237 = arith.addf %225, %236 : vector<64x256xbf16>
    %c56_i32 = arith.constant 56 : i32
    %238 = tpu.dynamic_rotate %156 by %c56_i32 dim 0 : vector<64x256xf32>, i32 -> vector<64x256xf32>
    %239 = arith.truncf %238 : vector<64x256xf32> to vector<64x256xbf16>
    %240 = vector.extract_strided_slice %159 {offsets = [7, 0, 0], sizes = [1, 64, 1], strides = [1, 1, 1]} : vector<9x64x1xbf16> to vector<1x64x1xbf16>
    %241 = vector.shape_cast %240 : vector<1x64x1xbf16> to vector<64x1xbf16>
    %242 = vector.broadcast %241 : vector<64x1xbf16> to vector<64x256xbf16>
    %243 = arith.mulf %239, %242 : vector<64x256xbf16>
    %244 = vector.extract_strided_slice %158 {offsets = [7, 0], sizes = [1, 256], strides = [1, 1]} : vector<9x256xbf16> to vector<1x256xbf16>
    %245 = vector.shape_cast %244 : vector<1x256xbf16> to vector<256xbf16>
    %246 = vector.shape_cast %245 : vector<256xbf16> to vector<1x256xbf16>
    %247 = vector.broadcast %246 : vector<1x256xbf16> to vector<64x256xbf16>
    %248 = arith.mulf %243, %247 : vector<64x256xbf16>
    %249 = arith.addf %237, %248 : vector<64x256xbf16>
    %c55_i32 = arith.constant 55 : i32
    %250 = tpu.dynamic_rotate %156 by %c55_i32 dim 0 : vector<64x256xf32>, i32 -> vector<64x256xf32>
    %251 = arith.truncf %250 : vector<64x256xf32> to vector<64x256xbf16>
    %252 = vector.extract_strided_slice %159 {offsets = [8, 0, 0], sizes = [1, 64, 1], strides = [1, 1, 1]} : vector<9x64x1xbf16> to vector<1x64x1xbf16>
    %253 = vector.shape_cast %252 : vector<1x64x1xbf16> to vector<64x1xbf16>
    %254 = vector.broadcast %253 : vector<64x1xbf16> to vector<64x256xbf16>
    %255 = arith.mulf %251, %254 : vector<64x256xbf16>
    %256 = vector.extract_strided_slice %158 {offsets = [8, 0], sizes = [1, 256], strides = [1, 1]} : vector<9x256xbf16> to vector<1x256xbf16>
    %257 = vector.shape_cast %256 : vector<1x256xbf16> to vector<256xbf16>
    %258 = vector.shape_cast %257 : vector<256xbf16> to vector<1x256xbf16>
    %259 = vector.broadcast %258 : vector<1x256xbf16> to vector<64x256xbf16>
    %260 = arith.mulf %255, %259 : vector<64x256xbf16>
    %261 = arith.addf %249, %260 : vector<64x256xbf16>
    %262 = arith.extf %261 : vector<64x256xbf16> to vector<64x256xf32>
    %c0_57 = arith.constant 0 : index
    %c0_58 = arith.constant 0 : index
    %263 = vector.load %arg14[%c0_57, %c0_58] : memref<1x256xf32, #tpu.memory_space<vmem>>, vector<1x256xf32>
    %264 = vector.shape_cast %263 : vector<1x256xf32> to vector<256xf32>
    %265 = vector.shape_cast %264 : vector<256xf32> to vector<1x256xf32>
    %266 = vector.broadcast %265 : vector<1x256xf32> to vector<64x256xf32>
    %267 = arith.addf %262, %266 : vector<64x256xf32>
    %268 = arith.mulf %267, %267 : vector<64x256xf32>
    %269 = arith.mulf %267, %268 : vector<64x256xf32>
    %cst_59 = arith.constant 4.471500e-02 : f32
    %270 = vector.broadcast %cst_59 : f32 to vector<64x256xf32>
    %271 = arith.mulf %270, %269 : vector<64x256xf32>
    %272 = arith.addf %267, %271 : vector<64x256xf32>
    %cst_60 = arith.constant 0.797884583 : f32
    %273 = vector.broadcast %cst_60 : f32 to vector<64x256xf32>
    %274 = arith.mulf %273, %272 : vector<64x256xf32>
    %275 = math.tanh %274 : vector<64x256xf32>
    %cst_61 = arith.constant 1.000000e+00 : f32
    %276 = vector.broadcast %cst_61 : f32 to vector<64x256xf32>
    %277 = arith.addf %276, %275 : vector<64x256xf32>
    %cst_62 = arith.constant 5.000000e-01 : f32
    %278 = vector.broadcast %cst_62 : f32 to vector<64x256xf32>
    %279 = arith.mulf %278, %277 : vector<64x256xf32>
    %280 = arith.mulf %267, %279 : vector<64x256xf32>
    %c0_63 = arith.constant 0 : index
    %c0_64 = arith.constant 0 : index
    %281 = vector.load %arg15[%c0_63, %c0_64] : memref<256x128xbf16, #tpu.memory_space<vmem>>, vector<256x128xbf16>
    %282 = arith.truncf %280 : vector<64x256xf32> to vector<64x256xbf16>
    %cst_65 = arith.constant dense<0.000000e+00> : vector<64x128xf32>
    %283 = tpu.matmul %282, %281, %cst_65 {dimension_numbers = #tpu.dot_dimension_numbers<[1], [0], [0], [1], [0, 0, 1, 1], [], []>} : vector<64x256xbf16>, vector<256x128xbf16>, vector<64x128xf32> -> vector<64x128xf32>
    %c0_66 = arith.constant 0 : index
    %c0_67 = arith.constant 0 : index
    %284 = vector.load %arg16[%c0_66, %c0_67] : memref<1x128xf32, #tpu.memory_space<vmem>>, vector<1x128xf32>
    %285 = vector.shape_cast %284 : vector<1x128xf32> to vector<128xf32>
    %286 = vector.shape_cast %285 : vector<128xf32> to vector<1x128xf32>
    %287 = vector.broadcast %286 : vector<1x128xf32> to vector<64x128xf32>
    %288 = arith.addf %283, %287 : vector<64x128xf32>
    %289 = arith.addf %120, %288 : vector<64x128xf32>
    %290 = vector.shape_cast %289 : vector<64x128xf32> to vector<1x64x128xf32>
    %c0_68 = arith.constant 0 : index
    %c0_69 = arith.constant 0 : index
    %c0_70 = arith.constant 0 : index
    %291 = vector.load %arg18[%c0_68, %c0_69, %c0_70] : memref<1x64x128xf32, #tpu.memory_space<vmem>>, vector<1x64x128xf32>
    tpu.vector_store %arg18[%c0_68, %c0_69, %c0_70], %290 {strides = array<i32>} : memref<1x64x128xf32, #tpu.memory_space<vmem>>, vector<1x64x128xf32>,
    return
  }
  func.func @transform_0(%arg0: i32) -> (i32, i32, i32) {
    %c0_i32 = arith.constant 0 : i32
    %c0_i32_0 = arith.constant 0 : i32
    %c0_i32_1 = arith.constant 0 : i32
    return %arg0, %c0_i32, %c0_i32_0 : i32, i32, i32
  }
  func.func @transform_1(%arg0: i32) -> (i32, i32, i32) {
    %c0_i32 = arith.constant 0 : i32
    %c0_i32_0 = arith.constant 0 : i32
    %c0_i32_1 = arith.constant 0 : i32
    return %arg0, %c0_i32, %c0_i32_0 : i32, i32, i32
  }
  func.func @transform_2(%arg0: i32) -> (i32, i32) {
    %c0_i32 = arith.constant 0 : i32
    %c0_i32_0 = arith.constant 0 : i32
    %c0_i32_1 = arith.constant 0 : i32
    return %c0_i32, %c0_i32_0 : i32, i32
  }
  func.func @transform_3(%arg0: i32) -> (i32, i32) {
    %c0_i32 = arith.constant 0 : i32
    %c0_i32_0 = arith.constant 0 : i32
    %c0_i32_1 = arith.constant 0 : i32
    return %c0_i32, %c0_i32_0 : i32, i32
  }
  func.func @transform_4(%arg0: i32) -> (i32, i32) {
    %c0_i32 = arith.constant 0 : i32
    %c0_i32_0 = arith.constant 0 : i32
    %c0_i32_1 = arith.constant 0 : i32
    return %c0_i32, %c0_i32_0 : i32, i32
  }
  func.func @transform_5(%arg0: i32) -> (i32, i32) {
    %c0_i32 = arith.constant 0 : i32
    %c0_i32_0 = arith.constant 0 : i32
    %c0_i32_1 = arith.constant 0 : i32
    return %c0_i32, %c0_i32_0 : i32, i32
  }
  func.func @transform_6(%arg0: i32) -> (i32, i32) {
    %c0_i32 = arith.constant 0 : i32
    %c0_i32_0 = arith.constant 0 : i32
    %c0_i32_1 = arith.constant 0 : i32
    return %c0_i32, %c0_i32_0 : i32, i32
  }
  func.func @transform_7(%arg0: i32) -> (i32, i32) {
    %c0_i32 = arith.constant 0 : i32
    %c0_i32_0 = arith.constant 0 : i32
    %c0_i32_1 = arith.constant 0 : i32
    return %c0_i32, %c0_i32_0 : i32, i32
  }
  func.func @transform_8(%arg0: i32) -> (i32, i32) {
    %c0_i32 = arith.constant 0 : i32
    %c0_i32_0 = arith.constant 0 : i32
    %c0_i32_1 = arith.constant 0 : i32
    return %c0_i32, %c0_i32_0 : i32, i32
  }
  func.func @transform_9(%arg0: i32) -> (i32, i32) {
    %c0_i32 = arith.constant 0 : i32
    %c0_i32_0 = arith.constant 0 : i32
    %c0_i32_1 = arith.constant 0 : i32
    return %c0_i32, %c0_i32_0 : i32, i32
  }
  func.func @transform_10(%arg0: i32) -> (i32, i32) {
    %c0_i32 = arith.constant 0 : i32
    %c0_i32_0 = arith.constant 0 : i32
    %c0_i32_1 = arith.constant 0 : i32
    return %c0_i32, %c0_i32_0 : i32, i32
  }
  func.func @transform_11(%arg0: i32) -> (i32, i32) {
    %c0_i32 = arith.constant 0 : i32
    %c0_i32_0 = arith.constant 0 : i32
    %c0_i32_1 = arith.constant 0 : i32
    return %c0_i32, %c0_i32_0 : i32, i32
  }
  func.func @transform_12(%arg0: i32) -> (i32, i32) {
    %c0_i32 = arith.constant 0 : i32
    %c0_i32_0 = arith.constant 0 : i32
    %c0_i32_1 = arith.constant 0 : i32
    return %c0_i32, %c0_i32_0 : i32, i32
  }
  func.func @transform_13(%arg0: i32) -> (i32, i32) {
    %c0_i32 = arith.constant 0 : i32
    %c0_i32_0 = arith.constant 0 : i32
    %c0_i32_1 = arith.constant 0 : i32
    return %c0_i32, %c0_i32_0 : i32, i32
  }
  func.func @transform_14(%arg0: i32) -> (i32, i32) {
    %c0_i32 = arith.constant 0 : i32
    %c0_i32_0 = arith.constant 0 : i32
    %c0_i32_1 = arith.constant 0 : i32
    return %c0_i32, %c0_i32_0 : i32, i32
  }
  func.func @transform_15(%arg0: i32) -> (i32, i32) {
    %c0_i32 = arith.constant 0 : i32
    %c0_i32_0 = arith.constant 0 : i32
    %c0_i32_1 = arith.constant 0 : i32
    return %c0_i32, %c0_i32_0 : i32, i32
  }
  func.func @transform_16(%arg0: i32) -> (i32, i32, i32) {
    %c0_i32 = arith.constant 0 : i32
    %c0_i32_0 = arith.constant 0 : i32
    %c0_i32_1 = arith.constant 0 : i32
    %c0_i32_2 = arith.constant 0 : i32
    return %c0_i32, %c0_i32_0, %c0_i32_1 : i32, i32, i32
  }
  func.func @transform_17(%arg0: i32) -> (i32, i32, i32) {
    %c0_i32 = arith.constant 0 : i32
    %c0_i32_0 = arith.constant 0 : i32
    %c0_i32_1 = arith.constant 0 : i32
    return %arg0, %c0_i32, %c0_i32_0 : i32, i32, i32
  }
}

</mosaic_0001>

<llo_original>
// kernel: tpu_custom_call.1
$region0: #{tpu_custom_call.1}
  #allocation0 [shape = 'u32[]', space=smem, size = 0x4, offset = 0x4, fixed_abs, tag = 'smem constant byte address 0x4 - core index']
  #allocation1 [shape = 'u32[144,128]{1,0:T(1,128)}', space=vmem, size = 0x12000, scoped, tag = 'internal scratch']
  %s0 = inlined_call_operand.vmem [shape: f32[2,64,64], index: 0, kind: input, shape index: {}]
  %s1 = inlined_call_operand.vmem [shape: f32[2,64,64], index: 1, kind: input, shape index: {}]
  %s2 = inlined_call_operand.hbm [shape: f32[1,64], index: 2, kind: input, shape index: {}]
  %s3 = inlined_call_operand.hbm [shape: f32[1,64], index: 3, kind: input, shape index: {}]
  %s4 = inlined_call_operand.vmem [shape: bf16[64,128], index: 4, kind: input, shape index: {}]
  %s5 = inlined_call_operand.hbm [shape: f32[1,128], index: 5, kind: input, shape index: {}]
  %s6 = inlined_call_operand.hbm [shape: f32[1,128], index: 6, kind: input, shape index: {}]
  %s7 = inlined_call_operand.hbm [shape: f32[1,128], index: 7, kind: input, shape index: {}]
  %s8 = inlined_call_operand.hbm [shape: f32[1,128], index: 8, kind: input, shape index: {}]
  %s9 = inlined_call_operand.hbm [shape: f32[1,128], index: 9, kind: input, shape index: {}]
  %s10 = inlined_call_operand.hbm [shape: bf16[128,256], index: 10, kind: input, shape index: {}]
  %s11 = inlined_call_operand.vmem [shape: f32[1,256], index: 11, kind: input, shape index: {}]
  %s12 = inlined_call_operand.vmem [shape: f32[9,256], index: 12, kind: input, shape index: {}]
  %s13 = inlined_call_operand.vmem [shape: f32[1,256], index: 13, kind: input, shape index: {}]
  %s14 = inlined_call_operand.hbm [shape: bf16[256,128], index: 14, kind: input, shape index: {}]
  %s15 = inlined_call_operand.vmem [shape: f32[1,128], index: 15, kind: input, shape index: {}]
  %s16 = inlined_call_operand.vmem [shape: bf16[9,64,1], index: 16, kind: input, shape index: {}]
  %s17 = inlined_call_operand.hbm [shape: f32[2,64,128], index: 17, kind: output, shape index: {}]
  %s18 = sld [smem:[#allocation0]]
  $region137: #{tpu_custom_call.1} parent=0
    _
  %s20 = ssub.s32 1, %s18
  %s21 = scalar_select 0, %s20, %s18
  $region1: #{tpu_custom_call.1} parent=0
    #allocation2 [shape = 'u8[512]{0}', space=vmem, size = 0x400, scoped, tag = 'input window, operand 2, single buffered']
    #allocation3 [shape = 's32[2]{0}', space=sflag, size = 0x8, scoped, tag = 'scoped memory for tpu_custom_call.1']
    #allocation4 [shape = 's32[2]{0}', space=sflag, size = 0x8, scoped, tag = 'scoped memory for tpu_custom_call.1']
    #allocation5 [shape = 'u8[512]{0}', space=vmem, size = 0x400, scoped, tag = 'input window, operand 3, single buffered']
    #allocation6 [shape = 's32[1]{0}', space=sflag, size = 0x4, scoped, tag = 'scoped memory for tpu_custom_call.1']
    #allocation7 [shape = 'u8[512]{0}', space=vmem, size = 0x400, scoped, tag = 'input window, operand 5, single buffered']
    #allocation8 [shape = 'u8[512]{0}', space=vmem, size = 0x400, scoped, tag = 'input window, operand 6, single buffered']
    #allocation9 [shape = 's32[1]{0}', space=sflag, size = 0x4, scoped, tag = 'scoped memory for tpu_custom_call.1']
    #allocation10 [shape = 'u8[512]{0}', space=vmem, size = 0x400, scoped, tag = 'input window, operand 7, single buffered']
    #allocation11 [shape = 'u8[512]{0}', space=vmem, size = 0x400, scoped, tag = 'input window, operand 8, single buffered']
    #allocation12 [shape = 's32[1]{0}', space=sflag, size = 0x4, scoped, tag = 'scoped memory for tpu_custom_call.1']
    #allocation13 [shape = 'u8[512]{0}', space=vmem, size = 0x400, scoped, tag = 'input window, operand 9, single buffered']
    #allocation14 [shape = 'u8[65536]{0}', space=vmem, size = 0x10000, scoped, tag = 'input window, operand 10, single buffered']
    #allocation15 [shape = 's32[1]{0}', space=sflag, size = 0x4, scoped, tag = 'scoped memory for tpu_custom_call.1']
    #allocation16 [shape = 'u8[65536]{0}', space=vmem, size = 0x10000, scoped, tag = 'input window, operand 14, single buffered']
    #allocation17 [shape = 'u8[65536]{0}', space=vmem, size = 0x10000, scoped, tag = 'output window, operand 0']
    %22 = vsyncpa [#allocation3], 0
    %23 = vsyncpa [#allocation6], 0
    %24 = vsyncpa [#allocation9], 0
    %25 = vsyncpa [#allocation12], 0
    %26 = vsyncpa [#allocation15], 0
    %27 = vsyncpa [#allocation4], 0
    %s28 = scalar_lea.sflag [#allocation4], 1
    %29 = vsyncpa %s28, 0
    loop: start=0, step=1, limit=4
    $region2: #{tpu_custom_call.1} parent=1 // loop_pre_header
      _
    $region3: #{tpu_custom_call.1} parent=1 // loop_header
      %s31 = sphi 0, %s35
      %p32 = scmp.ge.s32.totalorder %s31, 4
      %s41 = sphi 0, %s43
      %s44 = sphi 0, %s41
      %s45 = sphi 0, %s44
      %s61 = sphi 0, %s45
      %s67 = sphi 0, %s69
      %s70 = sphi 0, %s67
      %s71 = sphi 0, %s70
      %s87 = sphi 0, %s71
      %s91 = sphi 0, %s91
      %s93 = sphi 0, %s91
      %s94 = sphi 0, %s93
      %s108 = sphi 0, %s94
      %s112 = sphi 0, %s112
      %s114 = sphi 0, %s112
      %s115 = sphi 0, %s114
      %s129 = sphi 0, %s115
      %s133 = sphi 0, %s133
      %s135 = sphi 0, %s133
      %s136 = sphi 0, %s135
      %s150 = sphi 0, %s136
      %s154 = sphi 0, %s154
      %s156 = sphi 0, %s154
      %s157 = sphi 0, %s156
      %s171 = sphi 0, %s157
      %s175 = sphi 0, %s175
      %s177 = sphi 0, %s175
      %s178 = sphi 0, %s177
      %s192 = sphi 0, %s178
      %s196 = sphi 0, %s196
      %s198 = sphi 0, %s196
      %s199 = sphi 0, %s198
      %s213 = sphi 0, %s199
      %s217 = sphi 0, %s217
      %s219 = sphi 0, %s217
      %s220 = sphi 0, %s219
      %s234 = sphi 0, %s220
      %s238 = sphi 0, %s238
      %s240 = sphi 0, %s238
      %s241 = sphi 0, %s240
      %s255 = sphi 0, %s241
      %s259 = sphi 0, %s259
      %s261 = sphi 0, %s259
      %s262 = sphi 0, %s261
      %s276 = sphi 0, %s262
      %s280 = sphi 0, %s280
      %s282 = sphi 0, %s280
      %s283 = sphi 0, %s282
      %s297 = sphi 0, %s283
      %s301 = sphi 0, %s301
      %s303 = sphi 0, %s301
      %s304 = sphi 0, %s303
      %s318 = sphi 0, %s304
      %s322 = sphi 0, %s322
      %s324 = sphi 0, %s322
      %s325 = sphi 0, %s324
      %s339 = sphi 0, %s325
      %s343 = sphi 0, %s343
      %s345 = sphi 0, %s343
      %s346 = sphi 0, %s345
      %s360 = sphi 0, %s346
      %s364 = sphi 0, %s364
      %s366 = sphi 0, %s364
      %s367 = sphi 0, %s366
      %s381 = sphi 0, %s367
      %s385 = sphi 0, %s385
      %s387 = sphi 0, %s385
      %s388 = sphi 0, %s387
      %s402 = sphi 0, %s388
      %s408 = sphi 0, %s410
      %s411 = sphi 0, %s408
      %s412 = sphi 0, %s411
      %s428 = sphi 0, %s412
    $region4: #{tpu_custom_call.1} parent=1 // loop_header_branch
      %34 = sbr.rel (%p32) target = $region8
    $region5: #{tpu_custom_call.1} parent=1 // loop_body
      %s36 = ssub.s32 %s31, 1
      %s37 = ssub.s32 %s31, 2
      %s38 = sadd.s32 %s31, 1
      %s39 = ssub.s32 %s31, %s38
      %p40 = scmp.eq.s32.totalorder %s39, 0
      %s42 = sadd.s32 %s41, 1
      %s43 = scalar_select %p40, %s41, %s42
      %p46 = pneg %p40
      %p47 = scmp.eq.s32.totalorder %s31, 1
      %p48 = por %p46, %p47
      %p49 = scmp.ne.s32.totalorder %s41, %s44
      %p50 = scmp.eq.s32.totalorder %s31, 0
      %p51 = por %p49, %p50
      %p52 = scmp.ne.s32.totalorder %s41, %s44
      %p53 = scmp.eq.s32.totalorder %s36, 1
      %p54 = por %p52, %p53
      %p55 = scmp.ne.s32.totalorder %s44, %s45
      %p56 = scmp.eq.s32.totalorder %s36, 0
      %p57 = por %p55, %p56
      %p58 = scmp.ne.s32.totalorder %s44, %s45
      %p59 = scmp.eq.s32.totalorder %s37, 1
      %p60 = por %p58, %p59
      %p62 = scmp.ne.s32.totalorder %s45, %s61
      %p63 = scmp.eq.s32.totalorder %s37, 0
      %p64 = por %p62, %p63
      %s65 = ssub.s32 %s31, %s38
      %p66 = scmp.eq.s32.totalorder %s65, 0
      %s68 = sadd.s32 %s67, 1
      %s69 = scalar_select %p66, %s67, %s68
      %p72 = pneg %p66
      %p73 = scmp.eq.s32.totalorder %s31, 1
      %p74 = por %p72, %p73
      %p75 = scmp.ne.s32.totalorder %s67, %s70
      %p76 = scmp.eq.s32.totalorder %s31, 0
      %p77 = por %p75, %p76
      %p78 = scmp.ne.s32.totalorder %s67, %s70
      %p79 = scmp.eq.s32.totalorder %s36, 1
      %p80 = por %p78, %p79
      %p81 = scmp.ne.s32.totalorder %s70, %s71
      %p82 = scmp.eq.s32.totalorder %s36, 0
      %p83 = por %p81, %p82
      %p84 = scmp.ne.s32.totalorder %s70, %s71
      %p85 = scmp.eq.s32.totalorder %s37, 1
      %p86 = por %p84, %p85
      %p88 = scmp.ne.s32.totalorder %s71, %s87
      %p89 = scmp.eq.s32.totalorder %s37, 0
      %p90 = por %p88, %p89
      %s92 = sadd.s32 %s91, 1
      %p95 = scmp.eq.s32.totalorder %s31, 1
      %p96 = scmp.ne.s32.totalorder %s91, %s93
      %p97 = scmp.eq.s32.totalorder %s31, 0
      %p98 = por %p96, %p97
      %p99 = scmp.ne.s32.totalorder %s91, %s93
      %p100 = scmp.eq.s32.totalorder %s36, 1
      %p101 = por %p99, %p100
      %p102 = scmp.ne.s32.totalorder %s93, %s94
      %p103 = scmp.eq.s32.totalorder %s36, 0
      %p104 = por %p102, %p103
      %p105 = scmp.ne.s32.totalorder %s93, %s94
      %p106 = scmp.eq.s32.totalorder %s37, 1
      %p107 = por %p105, %p106
      %p109 = scmp.ne.s32.totalorder %s94, %s108
      %p110 = scmp.eq.s32.totalorder %s37, 0
      %p111 = por %p109, %p110
      %s113 = sadd.s32 %s112, 1
      %p116 = scmp.eq.s32.totalorder %s31, 1
      %p117 = scmp.ne.s32.totalorder %s112, %s114
      %p118 = scmp.eq.s32.totalorder %s31, 0
      %p119 = por %p117, %p118
      %p120 = scmp.ne.s32.totalorder %s112, %s114
      %p121 = scmp.eq.s32.totalorder %s36, 1
      %p122 = por %p120, %p121
      %p123 = scmp.ne.s32.totalorder %s114, %s115
      %p124 = scmp.eq.s32.totalorder %s36, 0
      %p125 = por %p123, %p124
      %p126 = scmp.ne.s32.totalorder %s114, %s115
      %p127 = scmp.eq.s32.totalorder %s37, 1
      %p128 = por %p126, %p127
      %p130 = scmp.ne.s32.totalorder %s115, %s129
      %p131 = scmp.eq.s32.totalorder %s37, 0
      %p132 = por %p130, %p131
      %s134 = sadd.s32 %s133, 1
      %p137 = scmp.eq.s32.totalorder %s31, 1
      %p138 = scmp.ne.s32.totalorder %s133, %s135
      %p139 = scmp.eq.s32.totalorder %s31, 0
      %p140 = por %p138, %p139
      %p141 = scmp.ne.s32.totalorder %s133, %s135
      %p142 = scmp.eq.s32.totalorder %s36, 1
      %p143 = por %p141, %p142
      %p144 = scmp.ne.s32.totalorder %s135, %s136
      %p145 = scmp.eq.s32.totalorder %s36, 0
      %p146 = por %p144, %p145
      %p147 = scmp.ne.s32.totalorder %s135, %s136
      %p148 = scmp.eq.s32.totalorder %s37, 1
      %p149 = por %p147, %p148
      %p151 = scmp.ne.s32.totalorder %s136, %s150
      %p152 = scmp.eq.s32.totalorder %s37, 0
      %p153 = por %p151, %p152
      %s155 = sadd.s32 %s154, 1
      %p158 = scmp.eq.s32.totalorder %s31, 1
      %p159 = scmp.ne.s32.totalorder %s154, %s156
      %p160 = scmp.eq.s32.totalorder %s31, 0
      %p161 = por %p159, %p160
      %p162 = scmp.ne.s32.totalorder %s154, %s156
      %p163 = scmp.eq.s32.totalorder %s36, 1
      %p164 = por %p162, %p163
      %p165 = scmp.ne.s32.totalorder %s156, %s157
      %p166 = scmp.eq.s32.totalorder %s36, 0
      %p167 = por %p165, %p166
      %p168 = scmp.ne.s32.totalorder %s156, %s157
      %p169 = scmp.eq.s32.totalorder %s37, 1
      %p170 = por %p168, %p169
      %p172 = scmp.ne.s32.totalorder %s157, %s171
      %p173 = scmp.eq.s32.totalorder %s37, 0
      %p174 = por %p172, %p173
      %s176 = sadd.s32 %s175, 1
      %p179 = scmp.eq.s32.totalorder %s31, 1
      %p180 = scmp.ne.s32.totalorder %s175, %s177
      %p181 = scmp.eq.s32.totalorder %s31, 0
      %p182 = por %p180, %p181
      %p183 = scmp.ne.s32.totalorder %s175, %s177
      %p184 = scmp.eq.s32.totalorder %s36, 1
      %p185 = por %p183, %p184
      %p186 = scmp.ne.s32.totalorder %s177, %s178
      %p187 = scmp.eq.s32.totalorder %s36, 0
      %p188 = por %p186, %p187
      %p189 = scmp.ne.s32.totalorder %s177, %s178
      %p190 = scmp.eq.s32.totalorder %s37, 1
      %p191 = por %p189, %p190
      %p193 = scmp.ne.s32.totalorder %s178, %s192
      %p194 = scmp.eq.s32.totalorder %s37, 0
      %p195 = por %p193, %p194
      %s197 = sadd.s32 %s196, 1
      %p200 = scmp.eq.s32.totalorder %s31, 1
      %p201 = scmp.ne.s32.totalorder %s196, %s198
      %p202 = scmp.eq.s32.totalorder %s31, 0
      %p203 = por %p201, %p202
      %p204 = scmp.ne.s32.totalorder %s196, %s198
      %p205 = scmp.eq.s32.totalorder %s36, 1
      %p206 = por %p204, %p205
      %p207 = scmp.ne.s32.totalorder %s198, %s199
      %p208 = scmp.eq.s32.totalorder %s36, 0
      %p209 = por %p207, %p208
      %p210 = scmp.ne.s32.totalorder %s198, %s199
      %p211 = scmp.eq.s32.totalorder %s37, 1
      %p212 = por %p210, %p211
      %p214 = scmp.ne.s32.totalorder %s199, %s213
      %p215 = scmp.eq.s32.totalorder %s37, 0
      %p216 = por %p214, %p215
      %s218 = sadd.s32 %s217, 1
      %p221 = scmp.eq.s32.totalorder %s31, 1
      %p222 = scmp.ne.s32.totalorder %s217, %s219
      %p223 = scmp.eq.s32.totalorder %s31, 0
      %p224 = por %p222, %p223
      %p225 = scmp.ne.s32.totalorder %s217, %s219
      %p226 = scmp.eq.s32.totalorder %s36, 1
      %p227 = por %p225, %p226
      %p228 = scmp.ne.s32.totalorder %s219, %s220
      %p229 = scmp.eq.s32.totalorder %s36, 0
      %p230 = por %p228, %p229
      %p231 = scmp.ne.s32.totalorder %s219, %s220
      %p232 = scmp.eq.s32.totalorder %s37, 1
      %p233 = por %p231, %p232
      %p235 = scmp.ne.s32.totalorder %s220, %s234
      %p236 = scmp.eq.s32.totalorder %s37, 0
      %p237 = por %p235, %p236
      %s239 = sadd.s32 %s238, 1
      %p242 = scmp.eq.s32.totalorder %s31, 1
      %p243 = scmp.ne.s32.totalorder %s238, %s240
      %p244 = scmp.eq.s32.totalorder %s31, 0
      %p245 = por %p243, %p244
      %p246 = scmp.ne.s32.totalorder %s238, %s240
      %p247 = scmp.eq.s32.totalorder %s36, 1
      %p248 = por %p246, %p247
      %p249 = scmp.ne.s32.totalorder %s240, %s241
      %p250 = scmp.eq.s32.totalorder %s36, 0
      %p251 = por %p249, %p250
      %p252 = scmp.ne.s32.totalorder %s240, %s241
      %p253 = scmp.eq.s32.totalorder %s37, 1
      %p254 = por %p252, %p253
      %p256 = scmp.ne.s32.totalorder %s241, %s255
      %p257 = scmp.eq.s32.totalorder %s37, 0
      %p258 = por %p256, %p257
      %s260 = sadd.s32 %s259, 1
      %p263 = scmp.eq.s32.totalorder %s31, 1
      %p264 = scmp.ne.s32.totalorder %s259, %s261
      %p265 = scmp.eq.s32.totalorder %s31, 0
      %p266 = por %p264, %p265
      %p267 = scmp.ne.s32.totalorder %s259, %s261
      %p268 = scmp.eq.s32.totalorder %s36, 1
      %p269 = por %p267, %p268
      %p270 = scmp.ne.s32.totalorder %s261, %s262
      %p271 = scmp.eq.s32.totalorder %s36, 0
      %p272 = por %p270, %p271
      %p273 = scmp.ne.s32.totalorder %s261, %s262
      %p274 = scmp.eq.s32.totalorder %s37, 1
      %p275 = por %p273, %p274
      %p277 = scmp.ne.s32.totalorder %s262, %s276
      %p278 = scmp.eq.s32.totalorder %s37, 0
      %p279 = por %p277, %p278
      %s281 = sadd.s32 %s280, 1
      %p284 = scmp.eq.s32.totalorder %s31, 1
      %p285 = scmp.ne.s32.totalorder %s280, %s282
      %p286 = scmp.eq.s32.totalorder %s31, 0
      %p287 = por %p285, %p286
      %p288 = scmp.ne.s32.totalorder %s280, %s282
      %p289 = scmp.eq.s32.totalorder %s36, 1
      %p290 = por %p288, %p289
      %p291 = scmp.ne.s32.totalorder %s282, %s283
      %p292 = scmp.eq.s32.totalorder %s36, 0
      %p293 = por %p291, %p292
      %p294 = scmp.ne.s32.totalorder %s282, %s283
      %p295 = scmp.eq.s32.totalorder %s37, 1
      %p296 = por %p294, %p295
      %p298 = scmp.ne.s32.totalorder %s283, %s297
      %p299 = scmp.eq.s32.totalorder %s37, 0
      %p300 = por %p298, %p299
      %s302 = sadd.s32 %s301, 1
      %p305 = scmp.eq.s32.totalorder %s31, 1
      %p306 = scmp.ne.s32.totalorder %s301, %s303
      %p307 = scmp.eq.s32.totalorder %s31, 0
      %p308 = por %p306, %p307
      %p309 = scmp.ne.s32.totalorder %s301, %s303
      %p310 = scmp.eq.s32.totalorder %s36, 1
      %p311 = por %p309, %p310
      %p312 = scmp.ne.s32.totalorder %s303, %s304
      %p313 = scmp.eq.s32.totalorder %s36, 0
      %p314 = por %p312, %p313
      %p315 = scmp.ne.s32.totalorder %s303, %s304
      %p316 = scmp.eq.s32.totalorder %s37, 1
      %p317 = por %p315, %p316
      %p319 = scmp.ne.s32.totalorder %s304, %s318
      %p320 = scmp.eq.s32.totalorder %s37, 0
      %p321 = por %p319, %p320
      %s323 = sadd.s32 %s322, 1
      %p326 = scmp.eq.s32.totalorder %s31, 1
      %p327 = scmp.ne.s32.totalorder %s322, %s324
      %p328 = scmp.eq.s32.totalorder %s31, 0
      %p329 = por %p327, %p328
      %p330 = scmp.ne.s32.totalorder %s322, %s324
      %p331 = scmp.eq.s32.totalorder %s36, 1
      %p332 = por %p330, %p331
      %p333 = scmp.ne.s32.totalorder %s324, %s325
      %p334 = scmp.eq.s32.totalorder %s36, 0
      %p335 = por %p333, %p334
      %p336 = scmp.ne.s32.totalorder %s324, %s325
      %p337 = scmp.eq.s32.totalorder %s37, 1
      %p338 = por %p336, %p337
      %p340 = scmp.ne.s32.totalorder %s325, %s339
      %p341 = scmp.eq.s32.totalorder %s37, 0
      %p342 = por %p340, %p341
      %s344 = sadd.s32 %s343, 1
      %p347 = scmp.eq.s32.totalorder %s31, 1
      %p348 = scmp.ne.s32.totalorder %s343, %s345
      %p349 = scmp.eq.s32.totalorder %s31, 0
      %p350 = por %p348, %p349
      %p351 = scmp.ne.s32.totalorder %s343, %s345
      %p352 = scmp.eq.s32.totalorder %s36, 1
      %p353 = por %p351, %p352
      %p354 = scmp.ne.s32.totalorder %s345, %s346
      %p355 = scmp.eq.s32.totalorder %s36, 0
      %p356 = por %p354, %p355
      %p357 = scmp.ne.s32.totalorder %s345, %s346
      %p358 = scmp.eq.s32.totalorder %s37, 1
      %p359 = por %p357, %p358
      %p361 = scmp.ne.s32.totalorder %s346, %s360
      %p362 = scmp.eq.s32.totalorder %s37, 0
      %p363 = por %p361, %p362
      %s365 = sadd.s32 %s364, 1
      %p368 = scmp.eq.s32.totalorder %s31, 1
      %p369 = scmp.ne.s32.totalorder %s364, %s366
      %p370 = scmp.eq.s32.totalorder %s31, 0
      %p371 = por %p369, %p370
      %p372 = scmp.ne.s32.totalorder %s364, %s366
      %p373 = scmp.eq.s32.totalorder %s36, 1
      %p374 = por %p372, %p373
      %p375 = scmp.ne.s32.totalorder %s366, %s367
      %p376 = scmp.eq.s32.totalorder %s36, 0
      %p377 = por %p375, %p376
      %p378 = scmp.ne.s32.totalorder %s366, %s367
      %p379 = scmp.eq.s32.totalorder %s37, 1
      %p380 = por %p378, %p379
      %p382 = scmp.ne.s32.totalorder %s367, %s381
      %p383 = scmp.eq.s32.totalorder %s37, 0
      %p384 = por %p382, %p383
      %s386 = sadd.s32 %s385, 1
      %p389 = scmp.eq.s32.totalorder %s31, 1
      %p390 = scmp.ne.s32.totalorder %s385, %s387
      %p391 = scmp.eq.s32.totalorder %s31, 0
      %p392 = por %p390, %p391
      %p393 = scmp.ne.s32.totalorder %s385, %s387
      %p394 = scmp.eq.s32.totalorder %s36, 1
      %p395 = por %p393, %p394
      %p396 = scmp.ne.s32.totalorder %s387, %s388
      %p397 = scmp.eq.s32.totalorder %s36, 0
      %p398 = por %p396, %p397
      %p399 = scmp.ne.s32.totalorder %s387, %s388
      %p400 = scmp.eq.s32.totalorder %s37, 1
      %p401 = por %p399, %p400
      %p403 = scmp.ne.s32.totalorder %s388, %s402
      %p404 = scmp.eq.s32.totalorder %s37, 0
      %p405 = por %p403, %p404
      %s406 = ssub.s32 %s31, %s38
      %p407 = scmp.eq.s32.totalorder %s406, 0
      %s409 = sadd.s32 %s408, 1
      %s410 = scalar_select %p407, %s408, %s409
      %p413 = pneg %p407
      %p414 = scmp.eq.s32.totalorder %s31, 1
      %p415 = por %p413, %p414
      %p416 = scmp.ne.s32.totalorder %s408, %s411
      %p417 = scmp.eq.s32.totalorder %s31, 0
      %p418 = por %p416, %p417
      %p419 = scmp.ne.s32.totalorder %s408, %s411
      %p420 = scmp.eq.s32.totalorder %s36, 1
      %p421 = por %p419, %p420
      %p422 = scmp.ne.s32.totalorder %s411, %s412
      %p423 = scmp.eq.s32.totalorder %s36, 0
      %p424 = por %p422, %p423
      %p425 = scmp.ne.s32.totalorder %s411, %s412
      %p426 = scmp.eq.s32.totalorder %s37, 1
      %p427 = por %p425, %p426
      %p429 = scmp.ne.s32.totalorder %s412, %s428
      %p430 = scmp.eq.s32.totalorder %s37, 0
      %p431 = por %p429, %p430
      %p432 = scmp.le.s32.totalorder 1, %s31
      %p433 = scmp.lt.s32.totalorder %s31, 3
      %p434 = pnand %p432, %p433
      %p435 = pneg %p434
      // Predicated region
      $region9: #{tpu_custom_call.1} parent=5 // pred_check
        _
      $region10: #{tpu_custom_call.1} parent=5 // pred_check_branch
        %437 = sbr.rel (%p434) target = $region12
      $region11: #{tpu_custom_call.1} parent=5 // pred_region
        %s438 = ssub.s32 %s31, 1
        // Predicated region
        $region13: #{tpu_custom_call.1} parent=11 // pred_check
          %p439 = pneg %p104
        $region14: #{tpu_custom_call.1} parent=11 // pred_check_branch
          %441 = sbr.rel (%p439) target = $region16
        $region15: #{tpu_custom_call.1} parent=11 // pred_region
          %s443 = ssub.s32 16, 16
          %444 = vsyncadd [#allocation3], %s443
          %s446 = sshll.u32 [#allocation2], 4
          %s447 = int_to_ptr.vmem [resolvable:$true] %s446
          %449 = dma.hbm_to_vmem [thread:$0]  %s2, 16, %s447, [#allocation3]
        $region16: #{tpu_custom_call.1} parent=11 // pred_fallthru
          _
        // Predicated region
        $region17: #{tpu_custom_call.1} parent=11 // pred_check
          %p450 = pneg %p125
        $region18: #{tpu_custom_call.1} parent=11 // pred_check_branch
          %452 = sbr.rel (%p450) target = $region20
        $region19: #{tpu_custom_call.1} parent=11 // pred_region
          %s454 = ssub.s32 16, 16
          %455 = vsyncadd [#allocation6], %s454
          %s457 = sshll.u32 [#allocation5], 4
          %s458 = int_to_ptr.vmem [resolvable:$true] %s457
          %460 = dma.hbm_to_vmem [thread:$0]  %s3, 16, %s458, [#allocation6]
        $region20: #{tpu_custom_call.1} parent=11 // pred_fallthru
          _
        // Predicated region
        $region21: #{tpu_custom_call.1} parent=11 // pred_check
          %p461 = pneg %p146
        $region22: #{tpu_custom_call.1} parent=11 // pred_check_branch
          %463 = sbr.rel (%p461) target = $region24
        $region23: #{tpu_custom_call.1} parent=11 // pred_region
          _
        $region24: #{tpu_custom_call.1} parent=11 // pred_fallthru
          _
        // Predicated region
        $region25: #{tpu_custom_call.1} parent=11 // pred_check
          %p464 = pneg %p167
        $region26: #{tpu_custom_call.1} parent=11 // pred_check_branch
          %466 = sbr.rel (%p464) target = $region28
        $region27: #{tpu_custom_call.1} parent=11 // pred_region
          %s468 = ssub.s32 16, 16
          %469 = vsyncadd [#allocation6], %s468
          %s471 = sshll.u32 [#allocation7], 4
          %s472 = int_to_ptr.vmem [resolvable:$true] %s471
          %474 = dma.hbm_to_vmem [thread:$0]  %s5, 16, %s472, [#allocation6]
        $region28: #{tpu_custom_call.1} parent=11 // pred_fallthru
          _
        // Predicated region
        $region29: #{tpu_custom_call.1} parent=11 // pred_check
          %p475 = pneg %p188
        $region30: #{tpu_custom_call.1} parent=11 // pred_check_branch
          %477 = sbr.rel (%p475) target = $region32
        $region31: #{tpu_custom_call.1} parent=11 // pred_region
          %s479 = ssub.s32 16, 16
          %480 = vsyncadd [#allocation9], %s479
          %s482 = sshll.u32 [#allocation8], 4
          %s483 = int_to_ptr.vmem [resolvable:$true] %s482
          %485 = dma.hbm_to_vmem [thread:$0]  %s6, 16, %s483, [#allocation9]
        $region32: #{tpu_custom_call.1} parent=11 // pred_fallthru
          _
        // Predicated region
        $region33: #{tpu_custom_call.1} parent=11 // pred_check
          %p486 = pneg %p209
        $region34: #{tpu_custom_call.1} parent=11 // pred_check_branch
          %488 = sbr.rel (%p486) target = $region36
        $region35: #{tpu_custom_call.1} parent=11 // pred_region
          %s490 = ssub.s32 16, 16
          %491 = vsyncadd [#allocation9], %s490
          %s493 = sshll.u32 [#allocation10], 4
          %s494 = int_to_ptr.vmem [resolvable:$true] %s493
          %496 = dma.hbm_to_vmem [thread:$0]  %s7, 16, %s494, [#allocation9]
        $region36: #{tpu_custom_call.1} parent=11 // pred_fallthru
          _
        // Predicated region
        $region37: #{tpu_custom_call.1} parent=11 // pred_check
          %p497 = pneg %p230
        $region38: #{tpu_custom_call.1} parent=11 // pred_check_branch
          %499 = sbr.rel (%p497) target = $region40
        $region39: #{tpu_custom_call.1} parent=11 // pred_region
          %s501 = ssub.s32 16, 16
          %502 = vsyncadd [#allocation12], %s501
          %s504 = sshll.u32 [#allocation11], 4
          %s505 = int_to_ptr.vmem [resolvable:$true] %s504
          %507 = dma.hbm_to_vmem [thread:$0]  %s8, 16, %s505, [#allocation12]
        $region40: #{tpu_custom_call.1} parent=11 // pred_fallthru
          _
        // Predicated region
        $region41: #{tpu_custom_call.1} parent=11 // pred_check
          %p508 = pneg %p251
        $region42: #{tpu_custom_call.1} parent=11 // pred_check_branch
          %510 = sbr.rel (%p508) target = $region44
        $region43: #{tpu_custom_call.1} parent=11 // pred_region
          %s512 = ssub.s32 16, 16
          %513 = vsyncadd [#allocation12], %s512
          %s515 = sshll.u32 [#allocation13], 4
          %s516 = int_to_ptr.vmem [resolvable:$true] %s515
          %518 = dma.hbm_to_vmem [thread:$0]  %s9, 16, %s516, [#allocation12]
        $region44: #{tpu_custom_call.1} parent=11 // pred_fallthru
          _
        // Predicated region
        $region45: #{tpu_custom_call.1} parent=11 // pred_check
          %p519 = pneg %p272
        $region46: #{tpu_custom_call.1} parent=11 // pred_check_branch
          %521 = sbr.rel (%p519) target = $region48
        $region47: #{tpu_custom_call.1} parent=11 // pred_region
          %s523 = ssub.s32 2048, 2048
          %524 = vsyncadd [#allocation15], %s523
          %s525 = sshll.u32 [#allocation14], 4
          %s526 = int_to_ptr.vmem [resolvable:$true] %s525
          %531 = dma.hbm_to_vmem [thread:$0]  %s10, 2048, %s526, [#allocation15], 128, 128, 8
        $region48: #{tpu_custom_call.1} parent=11 // pred_fallthru
          _
        // Predicated region
        $region49: #{tpu_custom_call.1} parent=11 // pred_check
          %p532 = pneg %p293
        $region50: #{tpu_custom_call.1} parent=11 // pred_check_branch
          %534 = sbr.rel (%p532) target = $region52
        $region51: #{tpu_custom_call.1} parent=11 // pred_region
          _
        $region52: #{tpu_custom_call.1} parent=11 // pred_fallthru
          _
        // Predicated region
        $region53: #{tpu_custom_call.1} parent=11 // pred_check
          %p535 = pneg %p314
        $region54: #{tpu_custom_call.1} parent=11 // pred_check_branch
          %537 = sbr.rel (%p535) target = $region56
        $region55: #{tpu_custom_call.1} parent=11 // pred_region
          _
        $region56: #{tpu_custom_call.1} parent=11 // pred_fallthru
          _
        // Predicated region
        $region57: #{tpu_custom_call.1} parent=11 // pred_check
          %p538 = pneg %p335
        $region58: #{tpu_custom_call.1} parent=11 // pred_check_branch
          %540 = sbr.rel (%p538) target = $region60
        $region59: #{tpu_custom_call.1} parent=11 // pred_region
          _
        $region60: #{tpu_custom_call.1} parent=11 // pred_fallthru
          _
        // Predicated region
        $region61: #{tpu_custom_call.1} parent=11 // pred_check
          %p541 = pneg %p356
        $region62: #{tpu_custom_call.1} parent=11 // pred_check_branch
          %543 = sbr.rel (%p541) target = $region64
        $region63: #{tpu_custom_call.1} parent=11 // pred_region
          %s545 = ssub.s32 2048, 2048
          %546 = vsyncadd [#allocation15], %s545
          %s547 = sshll.u32 [#allocation16], 4
          %s548 = int_to_ptr.vmem [resolvable:$true] %s547
          %553 = dma.hbm_to_vmem [thread:$0]  %s14, 2048, %s548, [#allocation15], 64, 64, 4
        $region64: #{tpu_custom_call.1} parent=11 // pred_fallthru
          _
        // Predicated region
        $region65: #{tpu_custom_call.1} parent=11 // pred_check
          %p554 = pneg %p377
        $region66: #{tpu_custom_call.1} parent=11 // pred_check_branch
          %556 = sbr.rel (%p554) target = $region68
        $region67: #{tpu_custom_call.1} parent=11 // pred_region
          _
        $region68: #{tpu_custom_call.1} parent=11 // pred_fallthru
          _
        // Predicated region
        $region69: #{tpu_custom_call.1} parent=11 // pred_check
          %p557 = pneg %p398
        $region70: #{tpu_custom_call.1} parent=11 // pred_check_branch
          %559 = sbr.rel (%p557) target = $region72
        $region71: #{tpu_custom_call.1} parent=11 // pred_region
          _
        $region72: #{tpu_custom_call.1} parent=11 // pred_fallthru
          _
      $region12: #{tpu_custom_call.1} parent=5 // pred_fallthru
        _
      %p560 = scmp.lt.s32.totalorder %s31, 2
      // Predicated region
      $region73: #{tpu_custom_call.1} parent=5 // pred_check
        %p561 = pneg %p560
      $region74: #{tpu_custom_call.1} parent=5 // pred_check_branch
        %563 = sbr.rel (%p561) target = $region76
      $region75: #{tpu_custom_call.1} parent=5 // pred_region
        // Predicated region
        $region77: #{tpu_custom_call.1} parent=75 // pred_check
          %p564 = pneg %p51
        $region78: #{tpu_custom_call.1} parent=75 // pred_check_branch
          %566 = sbr.rel (%p564) target = $region80
        $region79: #{tpu_custom_call.1} parent=75 // pred_region
          %p567 = scmp.lt.s32.totalorder %s31, 1
          %s568 = scalar_select %p567, %s31, 1
          %s569 = smul.addr %s568, 8
          %s570 = smul.addr %s569, 8
          %s571 = scalar_lea.vmem %s0, %s570
        $region80: #{tpu_custom_call.1} parent=75 // pred_fallthru
          _
        // Predicated region
        $region81: #{tpu_custom_call.1} parent=75 // pred_check
          %p572 = pneg %p77
        $region82: #{tpu_custom_call.1} parent=75 // pred_check_branch
          %574 = sbr.rel (%p572) target = $region84
        $region83: #{tpu_custom_call.1} parent=75 // pred_region
          %p575 = scmp.lt.s32.totalorder %s31, 1
          %s576 = scalar_select %p575, %s31, 1
          %s577 = smul.addr %s576, 8
          %s578 = smul.addr %s577, 8
          %s579 = scalar_lea.vmem %s1, %s578
        $region84: #{tpu_custom_call.1} parent=75 // pred_fallthru
          _
      $region76: #{tpu_custom_call.1} parent=5 // pred_fallthru
        _
      %p580 = scmp.le.s32.totalorder 1, %s31
      %p581 = scmp.lt.s32.totalorder %s31, 3
      %p582 = pnand %p580, %p581
      %p583 = pneg %p582
      // Predicated region
      $region85: #{tpu_custom_call.1} parent=5 // pred_check
        _
      $region86: #{tpu_custom_call.1} parent=5 // pred_check_branch
        %585 = sbr.rel (%p582) target = $region88
      $region87: #{tpu_custom_call.1} parent=5 // pred_region
        %s586 = ssub.s32 %s31, 1
        // Predicated region
        $region89: #{tpu_custom_call.1} parent=87 // pred_check
          %p587 = pneg %p104
        $region90: #{tpu_custom_call.1} parent=87 // pred_check_branch
          %589 = sbr.rel (%p587) target = $region92
        $region91: #{tpu_custom_call.1} parent=87 // pred_region
          %590 = dma.done [#allocation3], 16
        $region92: #{tpu_custom_call.1} parent=87 // pred_fallthru
          _
        // Predicated region
        $region93: #{tpu_custom_call.1} parent=87 // pred_check
          %p591 = pneg %p125
        $region94: #{tpu_custom_call.1} parent=87 // pred_check_branch
          %593 = sbr.rel (%p591) target = $region96
        $region95: #{tpu_custom_call.1} parent=87 // pred_region
          %594 = dma.done [#allocation6], 16
        $region96: #{tpu_custom_call.1} parent=87 // pred_fallthru
          _
        // Predicated region
        $region97: #{tpu_custom_call.1} parent=87 // pred_check
          %p595 = pneg %p167
        $region98: #{tpu_custom_call.1} parent=87 // pred_check_branch
          %597 = sbr.rel (%p595) target = $region100
        $region99: #{tpu_custom_call.1} parent=87 // pred_region
          %598 = dma.done [#allocation6], 16
        $region100: #{tpu_custom_call.1} parent=87 // pred_fallthru
          _
        // Predicated region
        $region101: #{tpu_custom_call.1} parent=87 // pred_check
          %p599 = pneg %p188
        $region102: #{tpu_custom_call.1} parent=87 // pred_check_branch
          %601 = sbr.rel (%p599) target = $region104
        $region103: #{tpu_custom_call.1} parent=87 // pred_region
          %602 = dma.done [#allocation9], 16
        $region104: #{tpu_custom_call.1} parent=87 // pred_fallthru
          _
        // Predicated region
        $region105: #{tpu_custom_call.1} parent=87 // pred_check
          %p603 = pneg %p209
        $region106: #{tpu_custom_call.1} parent=87 // pred_check_branch
          %605 = sbr.rel (%p603) target = $region108
        $region107: #{tpu_custom_call.1} parent=87 // pred_region
          %606 = dma.done [#allocation9], 16
        $region108: #{tpu_custom_call.1} parent=87 // pred_fallthru
          _
        // Predicated region
        $region109: #{tpu_custom_call.1} parent=87 // pred_check
          %p607 = pneg %p230
        $region110: #{tpu_custom_call.1} parent=87 // pred_check_branch
          %609 = sbr.rel (%p607) target = $region112
        $region111: #{tpu_custom_call.1} parent=87 // pred_region
          %610 = dma.done [#allocation12], 16
        $region112: #{tpu_custom_call.1} parent=87 // pred_fallthru
          _
        // Predicated region
        $region113: #{tpu_custom_call.1} parent=87 // pred_check
          %p611 = pneg %p251
        $region114: #{tpu_custom_call.1} parent=87 // pred_check_branch
          %613 = sbr.rel (%p611) target = $region116
        $region115: #{tpu_custom_call.1} parent=87 // pred_region
          %614 = dma.done [#allocation12], 16
        $region116: #{tpu_custom_call.1} parent=87 // pred_fallthru
          _
        // Predicated region
        $region117: #{tpu_custom_call.1} parent=87 // pred_check
          %p615 = pneg %p272
        $region118: #{tpu_custom_call.1} parent=87 // pred_check_branch
          %617 = sbr.rel (%p615) target = $region120
        $region119: #{tpu_custom_call.1} parent=87 // pred_region
          %618 = dma.done [#allocation15], 2048
        $region120: #{tpu_custom_call.1} parent=87 // pred_fallthru
          _
        // Predicated region
        $region121: #{tpu_custom_call.1} parent=87 // pred_check
          %p619 = pneg %p356
        $region122: #{tpu_custom_call.1} parent=87 // pred_check_branch
          %621 = sbr.rel (%p619) target = $region124
        $region123: #{tpu_custom_call.1} parent=87 // pred_region
          %622 = dma.done [#allocation15], 2048
        $region124: #{tpu_custom_call.1} parent=87 // pred_fallthru
          _
        %p623 = scmp.lt.s32.totalorder %s36, 1
        %s624 = scalar_select %p623, %s36, 1
        %s625 = smul.addr %s624, 8
        %s626 = smul.addr %s625, 8
        %s627 = scalar_lea.vmem %s0, %s626
        %p628 = pneg %p57
        %p629 = pneg %p54
        %p630 = scmp.lt.s32.totalorder %s36, 1
        %s631 = scalar_select %p630, %s36, 1
        %s632 = smul.addr %s631, 8
        %s633 = smul.addr %s632, 8
        %s634 = scalar_lea.vmem %s1, %s633
        %p635 = pneg %p83
        %p636 = pneg %p80
        %p637 = pneg %p104
        %p638 = pneg %p101
        %p639 = pneg %p125
        %p640 = pneg %p122
        %p641 = pneg %p146
        %p642 = pneg %p143
        %p643 = pneg %p167
        %p644 = pneg %p164
        %p645 = pneg %p188
        %p646 = pneg %p185
        %p647 = pneg %p209
        %p648 = pneg %p206
        %p649 = pneg %p230
        %p650 = pneg %p227
        %p651 = pneg %p251
        %p652 = pneg %p248
        %p653 = pneg %p272
        %p654 = pneg %p269
        %p655 = pneg %p293
        %p656 = pneg %p290
        %p657 = pneg %p314
        %p658 = pneg %p311
        %p659 = pneg %p335
        %p660 = pneg %p332
        %p661 = pneg %p356
        %p662 = pneg %p353
        %p663 = pneg %p377
        %p664 = pneg %p374
        %p665 = pneg %p398
        %p666 = pneg %p395
        %p667 = pneg %p424
        %p668 = pneg %p421
        %s669 = sand.u32 %s411, 1
        %s670 = scalar_lea.sflag [#allocation4], %s669
        %s671 = sand.u32 %s411, 1
        %s672 = smul.addr %s671, 64
        %s673 = scalar_lea.vmem [#allocation17], %s672
        %p674 = scmp.lt.s32.totalorder %s36, 1
        %s675 = scalar_select %p674, %s36, 1
        %s676 = smul.addr %s675, 8
        %s677 = smul.addr %s676, 8
        %s678 = scalar_lea.vmem %s0, %s677
        %p679 = scmp.lt.s32.totalorder %s36, 1
        %s680 = scalar_select %p679, %s36, 1
        %s681 = smul.addr %s680, 8
        %s682 = smul.addr %s681, 8
        %s683 = scalar_lea.vmem %s1, %s682
        %v685 = vld [vmem:[%s678] sm:$0xff]
        %v686 = vld [vmem:[%s678 + $0x8] sm:$0xff]
        %v687 = vld [vmem:[%s678 + $0x10] sm:$0xff]
        %v688 = vld [vmem:[%s678 + $0x18] sm:$0xff]
        %v689 = vld [vmem:[%s678 + $0x20] sm:$0xff]
        %v690 = vld [vmem:[%s678 + $0x28] sm:$0xff]
        %v691 = vld [vmem:[%s678 + $0x30] sm:$0xff]
        %v692 = vld [vmem:[%s678 + $0x38] sm:$0xff]
        %v693 = vld [vmem:[%s683] sm:$0xff]
        %v694 = vld [vmem:[%s683 + $0x8] sm:$0xff]
        %v695 = vld [vmem:[%s683 + $0x10] sm:$0xff]
        %v696 = vld [vmem:[%s683 + $0x18] sm:$0xff]
        %v697 = vld [vmem:[%s683 + $0x20] sm:$0xff]
        %v698 = vld [vmem:[%s683 + $0x28] sm:$0xff]
        %v699 = vld [vmem:[%s683 + $0x30] sm:$0xff]
        %v700 = vld [vmem:[%s683 + $0x38] sm:$0xff]
        %v701 = vld [vmem:[#allocation2] sm:$0x1]
        %v702 = vld [vmem:[#allocation5] sm:$0x1]
        %vm703 = vcmask 523264
        %v704 = vsel %vm703, %v685, 0.0
        %705 = vadd.xlane.f32.xlu0 %v704
        %v706 = vpop.xlane.xlu0 %705
        %v707 = vsel %vm703, %v686, 0.0
        %708 = vadd.xlane.f32.xlu0 %v707
        %v709 = vpop.xlane.xlu0 %708
        %v710 = vsel %vm703, %v687, 0.0
        %711 = vadd.xlane.f32.xlu0 %v710
        %v712 = vpop.xlane.xlu0 %711
        %v713 = vsel %vm703, %v688, 0.0
        %714 = vadd.xlane.f32.xlu0 %v713
        %v715 = vpop.xlane.xlu0 %714
        %v716 = vsel %vm703, %v689, 0.0
        %717 = vadd.xlane.f32.xlu0 %v716
        %v718 = vpop.xlane.xlu0 %717
        %v719 = vsel %vm703, %v690, 0.0
        %720 = vadd.xlane.f32.xlu0 %v719
        %v721 = vpop.xlane.xlu0 %720
        %v722 = vsel %vm703, %v691, 0.0
        %723 = vadd.xlane.f32.xlu0 %v722
        %v724 = vpop.xlane.xlu0 %723
        %v725 = vsel %vm703, %v692, 0.0
        %726 = vadd.xlane.f32.xlu0 %v725
        %v727 = vpop.xlane.xlu0 %726
        %v728 = vrcp.pop 64.0
        %v729 = vmul.f32 %v706, %v728
        %v730 = vmul.f32 %v709, %v728
        %v731 = vmul.f32 %v712, %v728
        %v732 = vmul.f32 %v715, %v728
        %v733 = vmul.f32 %v718, %v728
        %v734 = vmul.f32 %v721, %v728
        %v735 = vmul.f32 %v724, %v728
        %v736 = vmul.f32 %v727, %v728
        %v737 = vsub.f32 %v685, %v729
        %v738 = vsub.f32 %v686, %v730
        %v739 = vsub.f32 %v687, %v731
        %v740 = vsub.f32 %v688, %v732
        %v741 = vsub.f32 %v689, %v733
        %v742 = vsub.f32 %v690, %v734
        %v743 = vsub.f32 %v691, %v735
        %v744 = vsub.f32 %v692, %v736
        %v745 = vmul.f32 %v737, %v737
        %v746 = vmul.f32 %v738, %v738
        %v747 = vmul.f32 %v739, %v739
        %v748 = vmul.f32 %v740, %v740
        %v749 = vmul.f32 %v741, %v741
        %v750 = vmul.f32 %v742, %v742
        %v751 = vmul.f32 %v743, %v743
        %v752 = vmul.f32 %v744, %v744
        %v753 = vsel %vm703, %v745, 0.0
        %754 = vadd.xlane.f32.xlu0 %v753
        %v755 = vpop.xlane.xlu0 %754
        %v756 = vsel %vm703, %v746, 0.0
        %757 = vadd.xlane.f32.xlu0 %v756
        %v758 = vpop.xlane.xlu0 %757
        %v759 = vsel %vm703, %v747, 0.0
        %760 = vadd.xlane.f32.xlu0 %v759
        %v761 = vpop.xlane.xlu0 %760
        %v762 = vsel %vm703, %v748, 0.0
        %763 = vadd.xlane.f32.xlu0 %v762
        %v764 = vpop.xlane.xlu0 %763
        %v765 = vsel %vm703, %v749, 0.0
        %766 = vadd.xlane.f32.xlu0 %v765
        %v767 = vpop.xlane.xlu0 %766
        %v768 = vsel %vm703, %v750, 0.0
        %769 = vadd.xlane.f32.xlu0 %v768
        %v770 = vpop.xlane.xlu0 %769
        %v771 = vsel %vm703, %v751, 0.0
        %772 = vadd.xlane.f32.xlu0 %v771
        %v773 = vpop.xlane.xlu0 %772
        %v774 = vsel %vm703, %v752, 0.0
        %775 = vadd.xlane.f32.xlu0 %v774
        %v776 = vpop.xlane.xlu0 %775
        %v777 = vmul.f32 %v755, %v728
        %v778 = vmul.f32 %v758, %v728
        %v779 = vmul.f32 %v761, %v728
        %v780 = vmul.f32 %v764, %v728
        %v781 = vmul.f32 %v767, %v728
        %v782 = vmul.f32 %v770, %v728
        %v783 = vmul.f32 %v773, %v728
        %v784 = vmul.f32 %v776, %v728
        %v785 = vadd.f32 %v777, 1e-05
        %v786 = vadd.f32 %v778, 1e-05
        %v787 = vadd.f32 %v779, 1e-05
        %v788 = vadd.f32 %v780, 1e-05
        %v789 = vadd.f32 %v781, 1e-05
        %v790 = vadd.f32 %v782, 1e-05
        %v791 = vadd.f32 %v783, 1e-05
        %v792 = vadd.f32 %v784, 1e-05
        %v793 = vrsqrt.pop %v785
        %v794 = vrsqrt.pop %v786
        %v795 = vrsqrt.pop %v787
        %v796 = vrsqrt.pop %v788
        %v797 = vrsqrt.pop %v789
        %v798 = vrsqrt.pop %v790
        %v799 = vrsqrt.pop %v791
        %v800 = vrsqrt.pop %v792
        %v801 = vmul.f32 %v737, %v793
        %v802 = vmul.f32 %v738, %v794
        %v803 = vmul.f32 %v739, %v795
        %v804 = vmul.f32 %v740, %v796
        %v805 = vmul.f32 %v741, %v797
        %v806 = vmul.f32 %v742, %v798
        %v807 = vmul.f32 %v743, %v799
        %v808 = vmul.f32 %v744, %v800
        %v810 = vlaneseq
        %v811 = vshrl.u32 %v810, 7
        %v812 = vsub.s32 0, %v811
        %v813 = vrot.slane %v701, %v812
        %v815 = vmul.f32 %v801, %v813
        %v816 = vmul.f32 %v802, %v813
        %v817 = vmul.f32 %v803, %v813
        %v818 = vmul.f32 %v804, %v813
        %v819 = vmul.f32 %v805, %v813
        %v820 = vmul.f32 %v806, %v813
        %v821 = vmul.f32 %v807, %v813
        %v822 = vmul.f32 %v808, %v813
        %v824 = vlaneseq
        %v825 = vshrl.u32 %v824, 7
        %v826 = vsub.s32 0, %v825
        %v827 = vrot.slane %v702, %v826
        %v829 = vadd.f32 %v815, %v827
        %v830 = vadd.f32 %v816, %v827
        %v831 = vadd.f32 %v817, %v827
        %v832 = vadd.f32 %v818, %v827
        %v833 = vadd.f32 %v819, %v827
        %v834 = vadd.f32 %v820, %v827
        %v835 = vadd.f32 %v821, %v827
        %v836 = vadd.f32 %v822, %v827
        %v837 = vsel %vm703, %v693, 0.0
        %838 = vadd.xlane.f32.xlu0 %v837
        %v839 = vpop.xlane.xlu0 %838
        %v840 = vsel %vm703, %v694, 0.0
        %841 = vadd.xlane.f32.xlu0 %v840
        %v842 = vpop.xlane.xlu0 %841
        %v843 = vsel %vm703, %v695, 0.0
        %844 = vadd.xlane.f32.xlu0 %v843
        %v845 = vpop.xlane.xlu0 %844
        %v846 = vsel %vm703, %v696, 0.0
        %847 = vadd.xlane.f32.xlu0 %v846
        %v848 = vpop.xlane.xlu0 %847
        %v849 = vsel %vm703, %v697, 0.0
        %850 = vadd.xlane.f32.xlu0 %v849
        %v851 = vpop.xlane.xlu0 %850
        %v852 = vsel %vm703, %v698, 0.0
        %853 = vadd.xlane.f32.xlu0 %v852
        %v854 = vpop.xlane.xlu0 %853
        %v855 = vsel %vm703, %v699, 0.0
        %856 = vadd.xlane.f32.xlu0 %v855
        %v857 = vpop.xlane.xlu0 %856
        %v858 = vsel %vm703, %v700, 0.0
        %859 = vadd.xlane.f32.xlu0 %v858
        %v860 = vpop.xlane.xlu0 %859
        %v861 = vmul.f32 %v839, %v728
        %v862 = vmul.f32 %v842, %v728
        %v863 = vmul.f32 %v845, %v728
        %v864 = vmul.f32 %v848, %v728
        %v865 = vmul.f32 %v851, %v728
        %v866 = vmul.f32 %v854, %v728
        %v867 = vmul.f32 %v857, %v728
        %v868 = vmul.f32 %v860, %v728
        %v869 = vsub.f32 %v693, %v861
        %v870 = vsub.f32 %v694, %v862
        %v871 = vsub.f32 %v695, %v863
        %v872 = vsub.f32 %v696, %v864
        %v873 = vsub.f32 %v697, %v865
        %v874 = vsub.f32 %v698, %v866
        %v875 = vsub.f32 %v699, %v867
        %v876 = vsub.f32 %v700, %v868
        %v877 = vmul.f32 %v869, %v869
        %v878 = vmul.f32 %v870, %v870
        %v879 = vmul.f32 %v871, %v871
        %v880 = vmul.f32 %v872, %v872
        %v881 = vmul.f32 %v873, %v873
        %v882 = vmul.f32 %v874, %v874
        %v883 = vmul.f32 %v875, %v875
        %v884 = vmul.f32 %v876, %v876
        %v885 = vsel %vm703, %v877, 0.0
        %886 = vadd.xlane.f32.xlu0 %v885
        %v887 = vpop.xlane.xlu0 %886
        %v888 = vsel %vm703, %v878, 0.0
        %889 = vadd.xlane.f32.xlu0 %v888
        %v890 = vpop.xlane.xlu0 %889
        %v891 = vsel %vm703, %v879, 0.0
        %892 = vadd.xlane.f32.xlu0 %v891
        %v893 = vpop.xlane.xlu0 %892
        %v894 = vsel %vm703, %v880, 0.0
        %895 = vadd.xlane.f32.xlu0 %v894
        %v896 = vpop.xlane.xlu0 %895
        %v897 = vsel %vm703, %v881, 0.0
        %898 = vadd.xlane.f32.xlu0 %v897
        %v899 = vpop.xlane.xlu0 %898
        %v900 = vsel %vm703, %v882, 0.0
        %901 = vadd.xlane.f32.xlu0 %v900
        %v902 = vpop.xlane.xlu0 %901
        %v903 = vsel %vm703, %v883, 0.0
        %904 = vadd.xlane.f32.xlu0 %v903
        %v905 = vpop.xlane.xlu0 %904
        %v906 = vsel %vm703, %v884, 0.0
        %907 = vadd.xlane.f32.xlu0 %v906
        %v908 = vpop.xlane.xlu0 %907
        %v909 = vmul.f32 %v887, %v728
        %v910 = vmul.f32 %v890, %v728
        %v911 = vmul.f32 %v893, %v728
        %v912 = vmul.f32 %v896, %v728
        %v913 = vmul.f32 %v899, %v728
        %v914 = vmul.f32 %v902, %v728
        %v915 = vmul.f32 %v905, %v728
        %v916 = vmul.f32 %v908, %v728
        %v917 = vadd.f32 %v909, 1e-05
        %v918 = vadd.f32 %v910, 1e-05
        %v919 = vadd.f32 %v911, 1e-05
        %v920 = vadd.f32 %v912, 1e-05
        %v921 = vadd.f32 %v913, 1e-05
        %v922 = vadd.f32 %v914, 1e-05
        %v923 = vadd.f32 %v915, 1e-05
        %v924 = vadd.f32 %v916, 1e-05
        %v925 = vrsqrt.pop %v917
        %v926 = vrsqrt.pop %v918
        %v927 = vrsqrt.pop %v919
        %v928 = vrsqrt.pop %v920
        %v929 = vrsqrt.pop %v921
        %v930 = vrsqrt.pop %v922
        %v931 = vrsqrt.pop %v923
        %v932 = vrsqrt.pop %v924
        %v933 = vmul.f32 %v869, %v925
        %v934 = vmul.f32 %v870, %v926
        %v935 = vmul.f32 %v871, %v927
        %v936 = vmul.f32 %v872, %v928
        %v937 = vmul.f32 %v873, %v929
        %v938 = vmul.f32 %v874, %v930
        %v939 = vmul.f32 %v875, %v931
        %v940 = vmul.f32 %v876, %v932
        %v941 = vmul.f32 %v933, %v813
        %v942 = vmul.f32 %v934, %v813
        %v943 = vmul.f32 %v935, %v813
        %v944 = vmul.f32 %v936, %v813
        %v945 = vmul.f32 %v937, %v813
        %v946 = vmul.f32 %v938, %v813
        %v947 = vmul.f32 %v939, %v813
        %v948 = vmul.f32 %v940, %v813
        %v949 = vadd.f32 %v941, %v827
        %v950 = vadd.f32 %v942, %v827
        %v951 = vadd.f32 %v943, %v827
        %v952 = vadd.f32 %v944, %v827
        %v953 = vadd.f32 %v945, %v827
        %v954 = vadd.f32 %v946, %v827
        %v955 = vadd.f32 %v947, %v827
        %v956 = vadd.f32 %v948, %v827
        %v957 = vsel %vm703, %v949, -inf
        %958 = vmax.xlane.f32.xlu0 %v957
        %v959 = vpop.xlane.xlu0 %958
        %v960 = vsel %vm703, %v950, -inf
        %961 = vmax.xlane.f32.xlu0 %v960
        %v962 = vpop.xlane.xlu0 %961
        %v963 = vsel %vm703, %v951, -inf
        %964 = vmax.xlane.f32.xlu0 %v963
        %v965 = vpop.xlane.xlu0 %964
        %v966 = vsel %vm703, %v952, -inf
        %967 = vmax.xlane.f32.xlu0 %v966
        %v968 = vpop.xlane.xlu0 %967
        %v969 = vsel %vm703, %v953, -inf
        %970 = vmax.xlane.f32.xlu0 %v969
        %v971 = vpop.xlane.xlu0 %970
        %v972 = vsel %vm703, %v954, -inf
        %973 = vmax.xlane.f32.xlu0 %v972
        %v974 = vpop.xlane.xlu0 %973
        %v975 = vsel %vm703, %v955, -inf
        %976 = vmax.xlane.f32.xlu0 %v975
        %v977 = vpop.xlane.xlu0 %976
        %v978 = vsel %vm703, %v956, -inf
        %979 = vmax.xlane.f32.xlu0 %v978
        %v980 = vpop.xlane.xlu0 %979
        %v981 = vsub.f32 %v949, %v959
        %v982 = vsub.f32 %v950, %v962
        %v983 = vsub.f32 %v951, %v965
        %v984 = vsub.f32 %v952, %v968
        %v985 = vsub.f32 %v953, %v971
        %v986 = vsub.f32 %v954, %v974
        %v987 = vsub.f32 %v955, %v977
        %v988 = vsub.f32 %v956, %v980
        %v989 = vmul.f32 %v981, 1.442695
        %v990 = vpow.pop %v989
        %v991 = vmul.f32 %v982, 1.442695
        %v992 = vpow.pop %v991
        %v993 = vmul.f32 %v983, 1.442695
        %v994 = vpow.pop %v993
        %v995 = vmul.f32 %v984, 1.442695
        %v996 = vpow.pop %v995
        %v997 = vmul.f32 %v985, 1.442695
        %v998 = vpow.pop %v997
        %v999 = vmul.f32 %v986, 1.442695
        %v1000 = vpow.pop %v999
        %v1001 = vmul.f32 %v987, 1.442695
        %v1002 = vpow.pop %v1001
        %v1003 = vmul.f32 %v988, 1.442695
        %v1004 = vpow.pop %v1003
        %v1005 = vsel %vm703, %v990, 0.0
        %1006 = vadd.xlane.f32.xlu0 %v1005
        %v1007 = vpop.xlane.xlu0 %1006
        %v1008 = vsel %vm703, %v992, 0.0
        %1009 = vadd.xlane.f32.xlu0 %v1008
        %v1010 = vpop.xlane.xlu0 %1009
        %v1011 = vsel %vm703, %v994, 0.0
        %1012 = vadd.xlane.f32.xlu0 %v1011
        %v1013 = vpop.xlane.xlu0 %1012
        %v1014 = vsel %vm703, %v996, 0.0
        %1015 = vadd.xlane.f32.xlu0 %v1014
        %v1016 = vpop.xlane.xlu0 %1015
        %v1017 = vsel %vm703, %v998, 0.0
        %1018 = vadd.xlane.f32.xlu0 %v1017
        %v1019 = vpop.xlane.xlu0 %1018
        %v1020 = vsel %vm703, %v1000, 0.0
        %1021 = vadd.xlane.f32.xlu0 %v1020
        %v1022 = vpop.xlane.xlu0 %1021
        %v1023 = vsel %vm703, %v1002, 0.0
        %1024 = vadd.xlane.f32.xlu0 %v1023
        %v1025 = vpop.xlane.xlu0 %1024
        %v1026 = vsel %vm703, %v1004, 0.0
        %1027 = vadd.xlane.f32.xlu0 %v1026
        %v1028 = vpop.xlane.xlu0 %1027
        %v1029 = vrcp.pop %v1007
        %v1030 = vrcp.pop %v1010
        %v1031 = vrcp.pop %v1013
        %v1032 = vrcp.pop %v1016
        %v1033 = vrcp.pop %v1019
        %v1034 = vrcp.pop %v1022
        %v1035 = vrcp.pop %v1025
        %v1036 = vrcp.pop %v1028
        %v1037 = vmul.f32 %v990, %v1029
        %v1038 = vmul.f32 %v992, %v1030
        %v1039 = vmul.f32 %v994, %v1031
        %v1040 = vmul.f32 %v996, %v1032
        %v1041 = vmul.f32 %v998, %v1033
        %v1042 = vmul.f32 %v1000, %v1034
        %v1043 = vmul.f32 %v1002, %v1035
        %v1044 = vmul.f32 %v1004, %v1036
        %v1045 = vmax.f32 %v957, %v969
        %v1046 = vmax.f32 %v960, %v972
        %v1047 = vmax.f32 %v963, %v975
        %v1048 = vmax.f32 %v966, %v978
        %v1049 = vmax.f32 %v1045, %v1046
        %v1050 = vmax.f32 %v1047, %v1048
        %v1051 = vmax.f32 %v1049, %v1050
        %v1052 = vrot.slane %v1051, 4
        %v1053 = vmax.f32 %v1051, %v1052
        %v1054 = vrot.slane %v1053, 2
        %v1055 = vmax.f32 %v1053, %v1054
        %v1056 = vrot.slane %v1055, 1
        %v1057 = vmax.f32 %v1055, %v1056
        %v1058 = vsub.f32 %v949, %v1057
        %v1059 = vsub.f32 %v950, %v1057
        %v1060 = vsub.f32 %v951, %v1057
        %v1061 = vsub.f32 %v952, %v1057
        %v1062 = vsub.f32 %v953, %v1057
        %v1063 = vsub.f32 %v954, %v1057
        %v1064 = vsub.f32 %v955, %v1057
        %v1065 = vsub.f32 %v956, %v1057
        %v1066 = vmul.f32 %v1058, 1.442695
        %v1067 = vpow.pop %v1066
        %v1068 = vmul.f32 %v1059, 1.442695
        %v1069 = vpow.pop %v1068
        %v1070 = vmul.f32 %v1060, 1.442695
        %v1071 = vpow.pop %v1070
        %v1072 = vmul.f32 %v1061, 1.442695
        %v1073 = vpow.pop %v1072
        %v1074 = vmul.f32 %v1062, 1.442695
        %v1075 = vpow.pop %v1074
        %v1076 = vmul.f32 %v1063, 1.442695
        %v1077 = vpow.pop %v1076
        %v1078 = vmul.f32 %v1064, 1.442695
        %v1079 = vpow.pop %v1078
        %v1080 = vmul.f32 %v1065, 1.442695
        %v1081 = vpow.pop %v1080
        %v1082 = vsel %vm703, %v1067, 0.0
        %v1083 = vsel %vm703, %v1069, 0.0
        %v1084 = vadd.f32 %v1082, %v1083
        %v1085 = vsel %vm703, %v1071, 0.0
        %v1086 = vadd.f32 %v1084, %v1085
        %v1087 = vsel %vm703, %v1073, 0.0
        %v1088 = vadd.f32 %v1086, %v1087
        %v1089 = vsel %vm703, %v1075, 0.0
        %v1090 = vadd.f32 %v1088, %v1089
        %v1091 = vsel %vm703, %v1077, 0.0
        %v1092 = vadd.f32 %v1090, %v1091
        %v1093 = vsel %vm703, %v1079, 0.0
        %v1094 = vadd.f32 %v1092, %v1093
        %v1095 = vsel %vm703, %v1081, 0.0
        %v1096 = vadd.f32 %v1094, %v1095
        %v1097 = vrot.slane %v1096, 4
        %v1098 = vadd.f32 %v1096, %v1097
        %v1099 = vrot.slane %v1098, 2
        %v1100 = vadd.f32 %v1098, %v1099
        %v1101 = vrot.slane %v1100, 1
        %v1102 = vadd.f32 %v1100, %v1101
        %v1103 = vrcp.pop %v1102
        %v1104 = vmul.f32 %v1067, %v1103
        %v1105 = vmul.f32 %v1069, %v1103
        %v1106 = vmul.f32 %v1071, %v1103
        %v1107 = vmul.f32 %v1073, %v1103
        %v1108 = vmul.f32 %v1075, %v1103
        %v1109 = vmul.f32 %v1077, %v1103
        %v1110 = vmul.f32 %v1079, %v1103
        %v1111 = vmul.f32 %v1081, %v1103
        %v1112 = vpack.c.bf16 %v1038, %v1037
        %v1113 = vpack.c.bf16 %v1040, %v1039
        %v1114 = vpack.c.bf16 %v1042, %v1041
        %v1115 = vpack.c.bf16 %v1044, %v1043
        %v1116 = vpack.c.bf16 %v1105, %v1104
        %v1117 = vpack.c.bf16 %v1107, %v1106
        %v1118 = vpack.c.bf16 %v1109, %v1108
        %v1119 = vpack.c.bf16 %v1111, %v1110
        %1120 = vxpose.xlu0.c.b16.start [1/8] %v1112, 128
        %1121 = vxpose.xlu0.c.b16.cont [2/8] %v1113, 128
        %1122 = vxpose.xlu0.c.b16.cont [3/8] %v1114, 128
        %1123 = vxpose.xlu0.c.b16.cont [4/8] %v1115, 128
        %1124 = vxpose.xlu0.c.b16.cont [5/8] 0, 128
        %1125 = vxpose.xlu0.c.b16.cont [6/8] 0, 128
        %1126 = vxpose.xlu0.c.b16.cont [7/8] 0, 128
        %1127 = vxpose.xlu0.c.b16.end [8/8] 0, 128
        %v1128 = vpop.trf.xlu0
        %v1129 = vpop.trf.xlu0
        %v1130 = vpop.trf.xlu0
        %v1131 = vpop.trf.xlu0
        %v1132 = vpop.trf.xlu0
        %v1133 = vpop.trf.xlu0
        %v1134 = vpop.trf.xlu0
        %v1135 = vpop.trf.xlu0
        %v1137 = vsel %vm703, %v1128, 0
        %v1140 = vsel %vm703, %v1129, 0
        %v1143 = vsel %vm703, %v1130, 0
        %v1146 = vsel %vm703, %v1131, 0
        %1148 = vmatprep.subr.bf16.mxu0 0
        %1149 = vmatpush1.bf16.msra.mxu0 %v1116
        %1150 = vmatprep.subr.bf16.mxu0 0
        %1151 = vmatpush1.bf16.msra.mxu0 %v1117
        %1152 = vmatprep.subr.bf16.mxu0 0
        %1153 = vmatpush1.bf16.msra.mxu0 %v1118
        %1154 = vmatprep.subr.bf16.mxu0 0
        %1155 = vmatpush1.bf16.msra.mxu0 %v1119
        %1156 = vmatprep.subr.bf16.mxu0 0
        %1157 = vmatpush1.bf16.msra.mxu0 0
        %1158 = vmatprep.subr.bf16.mxu0 0
        %1159 = vmatpush1.bf16.msra.mxu0 0
        %1160 = vmatprep.subr.bf16.mxu0 0
        %1161 = vmatpush1.bf16.msra.mxu0 0
        %1162 = vmatprep.subr.bf16.mxu0 0
        %1163 = vmatpush1.bf16.msra.mxu0 0
        %1164 = vmatprep.subr.bf16.mxu0 0
        %1165 = vmatpush1.bf16.msra.mxu0 0
        %1166 = vmatprep.subr.bf16.mxu0 0
        %1167 = vmatpush1.bf16.msra.mxu0 0
        %1168 = vmatprep.subr.bf16.mxu0 0
        %1169 = vmatpush1.bf16.msra.mxu0 0
        %1170 = vmatprep.subr.bf16.mxu0 0
        %1171 = vmatpush1.bf16.msra.mxu0 0
        %1172 = vmatprep.subr.bf16.mxu0 0
        %1173 = vmatpush1.bf16.msra.mxu0 0
        %1174 = vmatprep.subr.bf16.mxu0 0
        %1175 = vmatpush1.bf16.msra.mxu0 0
        %1176 = vmatprep.subr.bf16.mxu0 0
        %1177 = vmatpush1.bf16.msra.mxu0 0
        %1178 = vmatprep.subr.bf16.mxu0 0
        %1179 = vmatpush1.bf16.msra.mxu0 0
        %1180 = vmatprep.mubr.bf16.mxu0 0
        %1181 = vmatmul.mubr.bf16.gmra.mrb[0].mxu0 %v1137
        %v1182 = vpop.f32.mrb[0].mxu0
        %v1183 = vadd.f32 0.0, %v1182
        %v1184 = vpop.f32.mrb[0].mxu0
        %v1185 = vpop.f32.mrb[0].mxu0
        %v1186 = vadd.f32 0.0, %v1185
        %v1187 = vpop.f32.mrb[0].mxu0
        %1188 = vmatprep.mubr.bf16.mxu0 0
        %1189 = vmatmul.mubr.bf16.gmra.mrb[0].mxu0 %v1140
        %v1190 = vpop.f32.mrb[0].mxu0
        %v1191 = vadd.f32 0.0, %v1190
        %v1192 = vpop.f32.mrb[0].mxu0
        %v1193 = vpop.f32.mrb[0].mxu0
        %v1194 = vadd.f32 0.0, %v1193
        %v1195 = vpop.f32.mrb[0].mxu0
        %1196 = vmatprep.mubr.bf16.mxu0 0
        %1197 = vmatmul.mubr.bf16.gmra.mrb[0].mxu0 %v1143
        %v1198 = vpop.f32.mrb[0].mxu0
        %v1199 = vadd.f32 0.0, %v1198
        %v1200 = vpop.f32.mrb[0].mxu0
        %v1201 = vpop.f32.mrb[0].mxu0
        %v1202 = vadd.f32 0.0, %v1201
        %v1203 = vpop.f32.mrb[0].mxu0
        %1204 = vmatprep.mubr.bf16.mxu0 0
        %1205 = vmatmul.mubr.bf16.gmra.mrb[0].mxu0 %v1146
        %v1206 = vpop.f32.mrb[0].mxu0
        %v1207 = vadd.f32 0.0, %v1206
        %v1208 = vpop.f32.mrb[0].mxu0
        %v1209 = vpop.f32.mrb[0].mxu0
        %v1210 = vadd.f32 0.0, %v1209
        %v1211 = vpop.f32.mrb[0].mxu0
        %1212 = vdwg.mxu0
        %v1213 = vpack.c.bf16 %v830, %v829
        %v1214 = vpack.c.bf16 %v832, %v831
        %v1215 = vpack.c.bf16 %v834, %v833
        %v1216 = vpack.c.bf16 %v836, %v835
        %v1217 = vpack.c.bf16 %v1186, %v1183
        %v1218 = vpack.c.bf16 %v1194, %v1191
        %v1219 = vpack.c.bf16 %v1202, %v1199
        %v1220 = vpack.c.bf16 %v1210, %v1207
        %v1222 = vsel %vm703, %v1213, 0
        %v1225 = vsel %vm703, %v1214, 0
        %v1228 = vsel %vm703, %v1215, 0
        %v1231 = vsel %vm703, %v1216, 0
        %v1234 = vsel %vm703, %v1217, 0
        %v1237 = vsel %vm703, %v1218, 0
        %v1240 = vsel %vm703, %v1219, 0
        %v1243 = vsel %vm703, %v1220, 0
        %1245 = vmatprep.subr.bf16.mxu0 0
        %1246 = vmatpush1.bf16.xpose.msra.mxu0 %v1234
        %1247 = vmatprep.subr.bf16.mxu0 0
        %1248 = vmatpush1.bf16.xpose.msra.mxu0 %v1237
        %1249 = vmatprep.subr.bf16.mxu0 0
        %1250 = vmatpush1.bf16.xpose.msra.mxu0 %v1240
        %1251 = vmatprep.subr.bf16.mxu0 0
        %1252 = vmatpush1.bf16.xpose.msra.mxu0 %v1243
        %1253 = vmatprep.subr.bf16.mxu0 0
        %1254 = vmatpush1.bf16.xpose.msra.mxu0 0
        %1255 = vmatprep.subr.bf16.mxu0 0
        %1256 = vmatpush1.bf16.xpose.msra.mxu0 0
        %1257 = vmatprep.subr.bf16.mxu0 0
        %1258 = vmatpush1.bf16.xpose.msra.mxu0 0
        %1259 = vmatprep.subr.bf16.mxu0 0
        %1260 = vmatpush1.bf16.xpose.msra.mxu0 0
        %1261 = vmatprep.subr.bf16.mxu0 0
        %1262 = vmatpush1.bf16.xpose.msra.mxu0 0
        %1263 = vmatprep.subr.bf16.mxu0 0
        %1264 = vmatpush1.bf16.xpose.msra.mxu0 0
        %1265 = vmatprep.subr.bf16.mxu0 0
        %1266 = vmatpush1.bf16.xpose.msra.mxu0 0
        %1267 = vmatprep.subr.bf16.mxu0 0
        %1268 = vmatpush1.bf16.xpose.msra.mxu0 0
        %1269 = vmatprep.subr.bf16.mxu0 0
        %1270 = vmatpush1.bf16.xpose.msra.mxu0 0
        %1271 = vmatprep.subr.bf16.mxu0 0
        %1272 = vmatpush1.bf16.xpose.msra.mxu0 0
        %1273 = vmatprep.subr.bf16.mxu0 0
        %1274 = vmatpush1.bf16.xpose.msra.mxu0 0
        %1275 = vmatprep.subr.bf16.mxu0 0
        %1276 = vmatpush1.bf16.xpose.msra.mxu0 0
        %1277 = vmatprep.mubr.bf16.mxu0 0
        %1278 = vmatmul.mubr.bf16.gmra.mrb[0].mxu0 %v1222
        %v1279 = vpop.f32.mrb[0].mxu0
        %v1280 = vadd.f32 0.0, %v1279
        %v1281 = vpop.f32.mrb[0].mxu0
        %v1282 = vpop.f32.mrb[0].mxu0
        %v1283 = vadd.f32 0.0, %v1282
        %v1284 = vpop.f32.mrb[0].mxu0
        %1285 = vmatprep.mubr.bf16.mxu0 0
        %1286 = vmatmul.mubr.bf16.gmra.mrb[0].mxu0 %v1225
        %v1287 = vpop.f32.mrb[0].mxu0
        %v1288 = vadd.f32 0.0, %v1287
        %v1289 = vpop.f32.mrb[0].mxu0
        %v1290 = vpop.f32.mrb[0].mxu0
        %v1291 = vadd.f32 0.0, %v1290
        %v1292 = vpop.f32.mrb[0].mxu0
        %1293 = vmatprep.mubr.bf16.mxu0 0
        %1294 = vmatmul.mubr.bf16.gmra.mrb[0].mxu0 %v1228
        %v1295 = vpop.f32.mrb[0].mxu0
        %v1296 = vadd.f32 0.0, %v1295
        %v1297 = vpop.f32.mrb[0].mxu0
        %v1298 = vpop.f32.mrb[0].mxu0
        %v1299 = vadd.f32 0.0, %v1298
        %v1300 = vpop.f32.mrb[0].mxu0
        %1301 = vmatprep.mubr.bf16.mxu0 0
        %1302 = vmatmul.mubr.bf16.gmra.mrb[0].mxu0 %v1231
        %v1303 = vpop.f32.mrb[0].mxu0
        %v1304 = vadd.f32 0.0, %v1303
        %v1305 = vpop.f32.mrb[0].mxu0
        %v1306 = vpop.f32.mrb[0].mxu0
        %v1307 = vadd.f32 0.0, %v1306
        %v1308 = vpop.f32.mrb[0].mxu0
        %1309 = vdwg.mxu0
        %v1310 = vld [vmem:[%s4] sm:$0xf]
        %v1311 = vld [vmem:[%s4 + $0x4] sm:$0xf]
        %v1312 = vld [vmem:[%s4 + $0x8] sm:$0xf]
        %v1313 = vld [vmem:[%s4 + $0xc] sm:$0xf]
        %v1314 = vld [vmem:[%s4 + $0x10] sm:$0xf]
        %v1315 = vld [vmem:[%s4 + $0x14] sm:$0xf]
        %v1316 = vld [vmem:[%s4 + $0x18] sm:$0xf]
        %v1317 = vld [vmem:[%s4 + $0x1c] sm:$0xf]
        %v1318 = vpack.c.bf16 %v1283, %v1280
        %v1319 = vpack.c.bf16 %v1291, %v1288
        %v1320 = vpack.c.bf16 %v1299, %v1296
        %v1321 = vpack.c.bf16 %v1307, %v1304
        %v1322 = vld [vmem:[#allocation7] sm:$0x1]
        %v1324 = vlaneseq
        %v1325 = vshrl.u32 %v1324, 7
        %v1326 = vsub.s32 0, %v1325
        %v1327 = vrot.slane %v1322, %v1326
        %v1337 = vunpack.c.l.b16 %v1310
        %v1338 = vunpack.c.l.b16 %v1311
        %v1339 = vunpack.c.l.b16 %v1312
        %v1340 = vunpack.c.l.b16 %v1313
        %v1341 = vunpack.c.l.b16 %v1314
        %v1342 = vunpack.c.l.b16 %v1315
        %v1343 = vunpack.c.l.b16 %v1316
        %v1344 = vunpack.c.l.b16 %v1317
        %v1345 = vpack.c.b16 %v1338, %v1337
        %v1346 = vpack.c.b16 %v1340, %v1339
        %v1347 = vpack.c.b16 %v1342, %v1341
        %v1348 = vpack.c.b16 %v1344, %v1343
        %v1354 = vsel %vm703, %v1318, 0
        %v1357 = vsel %vm703, %v1319, 0
        %v1360 = vsel %vm703, %v1320, 0
        %v1363 = vsel %vm703, %v1321, 0
        %1365 = vmatprep.subr.bf16.mxu0 0
        %1366 = vmatpush1.bf16.msra.mxu0 %v1345
        %1367 = vmatprep.subr.bf16.mxu0 0
        %1368 = vmatpush1.bf16.msra.mxu0 %v1346
        %1369 = vmatprep.subr.bf16.mxu0 0
        %1370 = vmatpush1.bf16.msra.mxu0 %v1347
        %1371 = vmatprep.subr.bf16.mxu0 0
        %1372 = vmatpush1.bf16.msra.mxu0 %v1348
        %1373 = vmatprep.subr.bf16.mxu0 0
        %1374 = vmatpush1.bf16.msra.mxu0 0
        %1375 = vmatprep.subr.bf16.mxu0 0
        %1376 = vmatpush1.bf16.msra.mxu0 0
        %1377 = vmatprep.subr.bf16.mxu0 0
        %1378 = vmatpush1.bf16.msra.mxu0 0
        %1379 = vmatprep.subr.bf16.mxu0 0
        %1380 = vmatpush1.bf16.msra.mxu0 0
        %1381 = vmatprep.subr.bf16.mxu0 0
        %1382 = vmatpush1.bf16.msra.mxu0 0
        %1383 = vmatprep.subr.bf16.mxu0 0
        %1384 = vmatpush1.bf16.msra.mxu0 0
        %1385 = vmatprep.subr.bf16.mxu0 0
        %1386 = vmatpush1.bf16.msra.mxu0 0
        %1387 = vmatprep.subr.bf16.mxu0 0
        %1388 = vmatpush1.bf16.msra.mxu0 0
        %1389 = vmatprep.subr.bf16.mxu0 0
        %1390 = vmatpush1.bf16.msra.mxu0 0
        %1391 = vmatprep.subr.bf16.mxu0 0
        %1392 = vmatpush1.bf16.msra.mxu0 0
        %1393 = vmatprep.subr.bf16.mxu0 0
        %1394 = vmatpush1.bf16.msra.mxu0 0
        %1395 = vmatprep.subr.bf16.mxu0 0
        %1396 = vmatpush1.bf16.msra.mxu0 0
        %1397 = vmatprep.mubr.bf16.mxu0 0
        %1398 = vmatmul.mubr.bf16.gmra.mrb[0].mxu0 %v1354
        %v1399 = vpop.f32.mrb[0].mxu0
        %v1400 = vadd.f32 %v1327, %v1399
        %v1401 = vpop.f32.mrb[0].mxu0
        %v1402 = vpop.f32.mrb[0].mxu0
        %v1403 = vadd.f32 %v1327, %v1402
        %v1404 = vpop.f32.mrb[0].mxu0
        %1405 = vmatprep.mubr.bf16.mxu0 0
        %1406 = vmatmul.mubr.bf16.gmra.mrb[0].mxu0 %v1357
        %v1407 = vpop.f32.mrb[0].mxu0
        %v1408 = vadd.f32 %v1327, %v1407
        %v1409 = vpop.f32.mrb[0].mxu0
        %v1410 = vpop.f32.mrb[0].mxu0
        %v1411 = vadd.f32 %v1327, %v1410
        %v1412 = vpop.f32.mrb[0].mxu0
        %1413 = vmatprep.mubr.bf16.mxu0 0
        %1414 = vmatmul.mubr.bf16.gmra.mrb[0].mxu0 %v1360
        %v1415 = vpop.f32.mrb[0].mxu0
        %v1416 = vadd.f32 %v1327, %v1415
        %v1417 = vpop.f32.mrb[0].mxu0
        %v1418 = vpop.f32.mrb[0].mxu0
        %v1419 = vadd.f32 %v1327, %v1418
        %v1420 = vpop.f32.mrb[0].mxu0
        %1421 = vmatprep.mubr.bf16.mxu0 0
        %1422 = vmatmul.mubr.bf16.gmra.mrb[0].mxu0 %v1363
        %v1423 = vpop.f32.mrb[0].mxu0
        %v1424 = vadd.f32 %v1327, %v1423
        %v1425 = vpop.f32.mrb[0].mxu0
        %v1426 = vpop.f32.mrb[0].mxu0
        %v1427 = vadd.f32 %v1327, %v1426
        %v1428 = vpop.f32.mrb[0].mxu0
        %1429 = vdwg.mxu0
        %v1430 = vld [vmem:[#allocation8] sm:$0x1]
        %v1431 = vld [vmem:[#allocation10] sm:$0x1]
        %1432 = vadd.xlane.f32.xlu0 %v1400
        %v1433 = vpop.xlane.xlu0 %1432
        %1434 = vadd.xlane.f32.xlu0 %v1403
        %v1435 = vpop.xlane.xlu0 %1434
        %1436 = vadd.xlane.f32.xlu0 %v1408
        %v1437 = vpop.xlane.xlu0 %1436
        %1438 = vadd.xlane.f32.xlu0 %v1411
        %v1439 = vpop.xlane.xlu0 %1438
        %1440 = vadd.xlane.f32.xlu0 %v1416
        %v1441 = vpop.xlane.xlu0 %1440
        %1442 = vadd.xlane.f32.xlu0 %v1419
        %v1443 = vpop.xlane.xlu0 %1442
        %1444 = vadd.xlane.f32.xlu0 %v1424
        %v1445 = vpop.xlane.xlu0 %1444
        %1446 = vadd.xlane.f32.xlu0 %v1427
        %v1447 = vpop.xlane.xlu0 %1446
        %v1448 = vrcp.pop 128.0
        %v1449 = vmul.f32 %v1433, %v1448
        %v1450 = vmul.f32 %v1435, %v1448
        %v1451 = vmul.f32 %v1437, %v1448
        %v1452 = vmul.f32 %v1439, %v1448
        %v1453 = vmul.f32 %v1441, %v1448
        %v1454 = vmul.f32 %v1443, %v1448
        %v1455 = vmul.f32 %v1445, %v1448
        %v1456 = vmul.f32 %v1447, %v1448
        %v1457 = vsub.f32 %v1400, %v1449
        %v1458 = vsub.f32 %v1403, %v1450
        %v1459 = vsub.f32 %v1408, %v1451
        %v1460 = vsub.f32 %v1411, %v1452
        %v1461 = vsub.f32 %v1416, %v1453
        %v1462 = vsub.f32 %v1419, %v1454
        %v1463 = vsub.f32 %v1424, %v1455
        %v1464 = vsub.f32 %v1427, %v1456
        %v1465 = vmul.f32 %v1457, %v1457
        %v1466 = vmul.f32 %v1458, %v1458
        %v1467 = vmul.f32 %v1459, %v1459
        %v1468 = vmul.f32 %v1460, %v1460
        %v1469 = vmul.f32 %v1461, %v1461
        %v1470 = vmul.f32 %v1462, %v1462
        %v1471 = vmul.f32 %v1463, %v1463
        %v1472 = vmul.f32 %v1464, %v1464
        %1473 = vadd.xlane.f32.xlu0 %v1465
        %v1474 = vpop.xlane.xlu0 %1473
        %1475 = vadd.xlane.f32.xlu0 %v1466
        %v1476 = vpop.xlane.xlu0 %1475
        %1477 = vadd.xlane.f32.xlu0 %v1467
        %v1478 = vpop.xlane.xlu0 %1477
        %1479 = vadd.xlane.f32.xlu0 %v1468
        %v1480 = vpop.xlane.xlu0 %1479
        %1481 = vadd.xlane.f32.xlu0 %v1469
        %v1482 = vpop.xlane.xlu0 %1481
        %1483 = vadd.xlane.f32.xlu0 %v1470
        %v1484 = vpop.xlane.xlu0 %1483
        %1485 = vadd.xlane.f32.xlu0 %v1471
        %v1486 = vpop.xlane.xlu0 %1485
        %1487 = vadd.xlane.f32.xlu0 %v1472
        %v1488 = vpop.xlane.xlu0 %1487
        %v1489 = vmul.f32 %v1474, %v1448
        %v1490 = vmul.f32 %v1476, %v1448
        %v1491 = vmul.f32 %v1478, %v1448
        %v1492 = vmul.f32 %v1480, %v1448
        %v1493 = vmul.f32 %v1482, %v1448
        %v1494 = vmul.f32 %v1484, %v1448
        %v1495 = vmul.f32 %v1486, %v1448
        %v1496 = vmul.f32 %v1488, %v1448
        %v1497 = vadd.f32 %v1489, 1e-05
        %v1498 = vadd.f32 %v1490, 1e-05
        %v1499 = vadd.f32 %v1491, 1e-05
        %v1500 = vadd.f32 %v1492, 1e-05
        %v1501 = vadd.f32 %v1493, 1e-05
        %v1502 = vadd.f32 %v1494, 1e-05
        %v1503 = vadd.f32 %v1495, 1e-05
        %v1504 = vadd.f32 %v1496, 1e-05
        %v1505 = vrsqrt.pop %v1497
        %v1506 = vrsqrt.pop %v1498
        %v1507 = vrsqrt.pop %v1499
        %v1508 = vrsqrt.pop %v1500
        %v1509 = vrsqrt.pop %v1501
        %v1510 = vrsqrt.pop %v1502
        %v1511 = vrsqrt.pop %v1503
        %v1512 = vrsqrt.pop %v1504
        %v1513 = vmul.f32 %v1457, %v1505
        %v1514 = vmul.f32 %v1458, %v1506
        %v1515 = vmul.f32 %v1459, %v1507
        %v1516 = vmul.f32 %v1460, %v1508
        %v1517 = vmul.f32 %v1461, %v1509
        %v1518 = vmul.f32 %v1462, %v1510
        %v1519 = vmul.f32 %v1463, %v1511
        %v1520 = vmul.f32 %v1464, %v1512
        %v1522 = vlaneseq
        %v1523 = vshrl.u32 %v1522, 7
        %v1524 = vsub.s32 0, %v1523
        %v1525 = vrot.slane %v1430, %v1524
        %v1527 = vmul.f32 %v1513, %v1525
        %v1528 = vmul.f32 %v1514, %v1525
        %v1529 = vmul.f32 %v1515, %v1525
        %v1530 = vmul.f32 %v1516, %v1525
        %v1531 = vmul.f32 %v1517, %v1525
        %v1532 = vmul.f32 %v1518, %v1525
        %v1533 = vmul.f32 %v1519, %v1525
        %v1534 = vmul.f32 %v1520, %v1525
        %v1536 = vlaneseq
        %v1537 = vshrl.u32 %v1536, 7
        %v1538 = vsub.s32 0, %v1537
        %v1539 = vrot.slane %v1431, %v1538
        %v1541 = vadd.f32 %v1527, %v1539
        %v1542 = vadd.f32 %v1528, %v1539
        %v1543 = vadd.f32 %v1529, %v1539
        %v1544 = vadd.f32 %v1530, %v1539
        %v1545 = vadd.f32 %v1531, %v1539
        %v1546 = vadd.f32 %v1532, %v1539
        %v1547 = vadd.f32 %v1533, %v1539
        %v1548 = vadd.f32 %v1534, %v1539
        %1557 = vrot.lane.b32.xlu0 %v693, 64
        %v1558 = vpop.permute.xlu0 %1557
        %1559 = vrot.lane.b32.xlu0 %v694, 64
        %v1560 = vpop.permute.xlu0 %1559
        %1561 = vrot.lane.b32.xlu0 %v695, 64
        %v1562 = vpop.permute.xlu0 %1561
        %1563 = vrot.lane.b32.xlu0 %v696, 64
        %v1564 = vpop.permute.xlu0 %1563
        %1565 = vrot.lane.b32.xlu0 %v697, 64
        %v1566 = vpop.permute.xlu0 %1565
        %1567 = vrot.lane.b32.xlu0 %v698, 64
        %v1568 = vpop.permute.xlu0 %1567
        %1569 = vrot.lane.b32.xlu0 %v699, 64
        %v1570 = vpop.permute.xlu0 %1569
        %1571 = vrot.lane.b32.xlu0 %v700, 64
        %v1572 = vpop.permute.xlu0 %1571
        %v1581 = vsel %vm703, %v685, %v1558
        %v1582 = vsel %vm703, %v686, %v1560
        %v1583 = vsel %vm703, %v687, %v1562
        %v1584 = vsel %vm703, %v688, %v1564
        %v1585 = vsel %vm703, %v689, %v1566
        %v1586 = vsel %vm703, %v690, %v1568
        %v1587 = vsel %vm703, %v691, %v1570
        %v1588 = vsel %vm703, %v692, %v1572
        %v1589 = vadd.f32 %v1581, %v1541
        %v1590 = vadd.f32 %v1582, %v1542
        %v1591 = vadd.f32 %v1583, %v1543
        %v1592 = vadd.f32 %v1584, %v1544
        %v1593 = vadd.f32 %v1585, %v1545
        %v1594 = vadd.f32 %v1586, %v1546
        %v1595 = vadd.f32 %v1587, %v1547
        %v1596 = vadd.f32 %v1588, %v1548
        %v1597 = vld [vmem:[#allocation11] sm:$0x1]
        %v1598 = vld [vmem:[#allocation13] sm:$0x1]
        %1599 = vadd.xlane.f32.xlu0 %v1589
        %v1600 = vpop.xlane.xlu0 %1599
        %1601 = vadd.xlane.f32.xlu0 %v1590
        %v1602 = vpop.xlane.xlu0 %1601
        %1603 = vadd.xlane.f32.xlu0 %v1591
        %v1604 = vpop.xlane.xlu0 %1603
        %1605 = vadd.xlane.f32.xlu0 %v1592
        %v1606 = vpop.xlane.xlu0 %1605
        %1607 = vadd.xlane.f32.xlu0 %v1593
        %v1608 = vpop.xlane.xlu0 %1607
        %1609 = vadd.xlane.f32.xlu0 %v1594
        %v1610 = vpop.xlane.xlu0 %1609
        %1611 = vadd.xlane.f32.xlu0 %v1595
        %v1612 = vpop.xlane.xlu0 %1611
        %1613 = vadd.xlane.f32.xlu0 %v1596
        %v1614 = vpop.xlane.xlu0 %1613
        %v1615 = vmul.f32 %v1600, %v1448
        %v1616 = vmul.f32 %v1602, %v1448
        %v1617 = vmul.f32 %v1604, %v1448
        %v1618 = vmul.f32 %v1606, %v1448
        %v1619 = vmul.f32 %v1608, %v1448
        %v1620 = vmul.f32 %v1610, %v1448
        %v1621 = vmul.f32 %v1612, %v1448
        %v1622 = vmul.f32 %v1614, %v1448
        %v1623 = vsub.f32 %v1589, %v1615
        %v1624 = vsub.f32 %v1590, %v1616
        %v1625 = vsub.f32 %v1591, %v1617
        %v1626 = vsub.f32 %v1592, %v1618
        %v1627 = vsub.f32 %v1593, %v1619
        %v1628 = vsub.f32 %v1594, %v1620
        %v1629 = vsub.f32 %v1595, %v1621
        %v1630 = vsub.f32 %v1596, %v1622
        %v1631 = vmul.f32 %v1623, %v1623
        %v1632 = vmul.f32 %v1624, %v1624
        %v1633 = vmul.f32 %v1625, %v1625
        %v1634 = vmul.f32 %v1626, %v1626
        %v1635 = vmul.f32 %v1627, %v1627
        %v1636 = vmul.f32 %v1628, %v1628
        %v1637 = vmul.f32 %v1629, %v1629
        %v1638 = vmul.f32 %v1630, %v1630
        %1639 = vadd.xlane.f32.xlu0 %v1631
        %v1640 = vpop.xlane.xlu0 %1639
        %1641 = vadd.xlane.f32.xlu0 %v1632
        %v1642 = vpop.xlane.xlu0 %1641
        %1643 = vadd.xlane.f32.xlu0 %v1633
        %v1644 = vpop.xlane.xlu0 %1643
        %1645 = vadd.xlane.f32.xlu0 %v1634
        %v1646 = vpop.xlane.xlu0 %1645
        %1647 = vadd.xlane.f32.xlu0 %v1635
        %v1648 = vpop.xlane.xlu0 %1647
        %1649 = vadd.xlane.f32.xlu0 %v1636
        %v1650 = vpop.xlane.xlu0 %1649
        %1651 = vadd.xlane.f32.xlu0 %v1637
        %v1652 = vpop.xlane.xlu0 %1651
        %1653 = vadd.xlane.f32.xlu0 %v1638
        %v1654 = vpop.xlane.xlu0 %1653
        %v1655 = vmul.f32 %v1640, %v1448
        %v1656 = vmul.f32 %v1642, %v1448
        %v1657 = vmul.f32 %v1644, %v1448
        %v1658 = vmul.f32 %v1646, %v1448
        %v1659 = vmul.f32 %v1648, %v1448
        %v1660 = vmul.f32 %v1650, %v1448
        %v1661 = vmul.f32 %v1652, %v1448
        %v1662 = vmul.f32 %v1654, %v1448
        %v1663 = vadd.f32 %v1655, 1e-05
        %v1664 = vadd.f32 %v1656, 1e-05
        %v1665 = vadd.f32 %v1657, 1e-05
        %v1666 = vadd.f32 %v1658, 1e-05
        %v1667 = vadd.f32 %v1659, 1e-05
        %v1668 = vadd.f32 %v1660, 1e-05
        %v1669 = vadd.f32 %v1661, 1e-05
        %v1670 = vadd.f32 %v1662, 1e-05
        %v1671 = vrsqrt.pop %v1663
        %v1672 = vrsqrt.pop %v1664
        %v1673 = vrsqrt.pop %v1665
        %v1674 = vrsqrt.pop %v1666
        %v1675 = vrsqrt.pop %v1667
        %v1676 = vrsqrt.pop %v1668
        %v1677 = vrsqrt.pop %v1669
        %v1678 = vrsqrt.pop %v1670
        %v1679 = vmul.f32 %v1623, %v1671
        %v1680 = vmul.f32 %v1624, %v1672
        %v1681 = vmul.f32 %v1625, %v1673
        %v1682 = vmul.f32 %v1626, %v1674
        %v1683 = vmul.f32 %v1627, %v1675
        %v1684 = vmul.f32 %v1628, %v1676
        %v1685 = vmul.f32 %v1629, %v1677
        %v1686 = vmul.f32 %v1630, %v1678
        %v1688 = vlaneseq
        %v1689 = vshrl.u32 %v1688, 7
        %v1690 = vsub.s32 0, %v1689
        %v1691 = vrot.slane %v1597, %v1690
        %v1693 = vmul.f32 %v1679, %v1691
        %v1694 = vmul.f32 %v1680, %v1691
        %v1695 = vmul.f32 %v1681, %v1691
        %v1696 = vmul.f32 %v1682, %v1691
        %v1697 = vmul.f32 %v1683, %v1691
        %v1698 = vmul.f32 %v1684, %v1691
        %v1699 = vmul.f32 %v1685, %v1691
        %v1700 = vmul.f32 %v1686, %v1691
        %v1702 = vlaneseq
        %v1703 = vshrl.u32 %v1702, 7
        %v1704 = vsub.s32 0, %v1703
        %v1705 = vrot.slane %v1598, %v1704
        %v1707 = vadd.f32 %v1693, %v1705
        %v1708 = vadd.f32 %v1694, %v1705
        %v1709 = vadd.f32 %v1695, %v1705
        %v1710 = vadd.f32 %v1696, %v1705
        %v1711 = vadd.f32 %v1697, %v1705
        %v1712 = vadd.f32 %v1698, %v1705
        %v1713 = vadd.f32 %v1699, %v1705
        %v1714 = vadd.f32 %v1700, %v1705
        %v1715 = vld [vmem:[#allocation14] sm:$0xff]
        %v1716 = vld [vmem:[#allocation14 + $0x8] sm:$0xff]
        %v1717 = vld [vmem:[#allocation14 + $0x10] sm:$0xff]
        %v1718 = vld [vmem:[#allocation14 + $0x18] sm:$0xff]
        %v1719 = vld [vmem:[#allocation14 + $0x20] sm:$0xff]
        %v1720 = vld [vmem:[#allocation14 + $0x28] sm:$0xff]
        %v1721 = vld [vmem:[#allocation14 + $0x30] sm:$0xff]
        %v1722 = vld [vmem:[#allocation14 + $0x38] sm:$0xff]
        %v1723 = vld [vmem:[#allocation14 + $0x40] sm:$0xff]
        %v1724 = vld [vmem:[#allocation14 + $0x48] sm:$0xff]
        %v1725 = vld [vmem:[#allocation14 + $0x50] sm:$0xff]
        %v1726 = vld [vmem:[#allocation14 + $0x58] sm:$0xff]
        %v1727 = vld [vmem:[#allocation14 + $0x60] sm:$0xff]
        %v1728 = vld [vmem:[#allocation14 + $0x68] sm:$0xff]
        %v1729 = vld [vmem:[#allocation14 + $0x70] sm:$0xff]
        %v1730 = vld [vmem:[#allocation14 + $0x78] sm:$0xff]
        %v1731 = vpack.c.bf16 %v1708, %v1707
        %v1732 = vpack.c.bf16 %v1710, %v1709
        %v1733 = vpack.c.bf16 %v1712, %v1711
        %v1734 = vpack.c.bf16 %v1714, %v1713
        %v1735 = vld [vmem:[%s11] sm:$0x3]
        %v1737 = vlaneseq
        %v1738 = vshrl.u32 %v1737, 7
        %v1739 = vsub.s32 0, %v1738
        %v1740 = vrot.slane %v1735, %v1739
        %v1741 = vlaneseq
        %v1742 = vshrl.u32 %v1741, 7
        %v1743 = vsub.s32 1, %v1742
        %v1744 = vrot.slane %v1735, %v1743
        %v1763 = vunpack.c.l.b16 %v1715
        %v1764 = vunpack.c.h.b16 %v1715
        %v1765 = vunpack.c.l.b16 %v1716
        %v1766 = vunpack.c.h.b16 %v1716
        %v1767 = vunpack.c.l.b16 %v1717
        %v1768 = vunpack.c.h.b16 %v1717
        %v1769 = vunpack.c.l.b16 %v1718
        %v1770 = vunpack.c.h.b16 %v1718
        %v1771 = vunpack.c.l.b16 %v1719
        %v1772 = vunpack.c.h.b16 %v1719
        %v1773 = vunpack.c.l.b16 %v1720
        %v1774 = vunpack.c.h.b16 %v1720
        %v1775 = vunpack.c.l.b16 %v1721
        %v1776 = vunpack.c.h.b16 %v1721
        %v1777 = vunpack.c.l.b16 %v1722
        %v1778 = vunpack.c.h.b16 %v1722
        %v1779 = vunpack.c.l.b16 %v1723
        %v1780 = vunpack.c.h.b16 %v1723
        %v1781 = vunpack.c.l.b16 %v1724
        %v1782 = vunpack.c.h.b16 %v1724
        %v1783 = vunpack.c.l.b16 %v1725
        %v1784 = vunpack.c.h.b16 %v1725
        %v1785 = vunpack.c.l.b16 %v1726
        %v1786 = vunpack.c.h.b16 %v1726
        %v1787 = vunpack.c.l.b16 %v1727
        %v1788 = vunpack.c.h.b16 %v1727
        %v1789 = vunpack.c.l.b16 %v1728
        %v1790 = vunpack.c.h.b16 %v1728
        %v1791 = vunpack.c.l.b16 %v1729
        %v1792 = vunpack.c.h.b16 %v1729
        %v1793 = vunpack.c.l.b16 %v1730
        %v1794 = vunpack.c.h.b16 %v1730
        %v1795 = vpack.c.b16 %v1765, %v1763
        %v1796 = vpack.c.b16 %v1766, %v1764
        %v1797 = vpack.c.b16 %v1769, %v1767
        %v1798 = vpack.c.b16 %v1770, %v1768
        %v1799 = vpack.c.b16 %v1773, %v1771
        %v1800 = vpack.c.b16 %v1774, %v1772
        %v1801 = vpack.c.b16 %v1777, %v1775
        %v1802 = vpack.c.b16 %v1778, %v1776
        %v1803 = vpack.c.b16 %v1781, %v1779
        %v1804 = vpack.c.b16 %v1782, %v1780
        %v1805 = vpack.c.b16 %v1785, %v1783
        %v1806 = vpack.c.b16 %v1786, %v1784
        %v1807 = vpack.c.b16 %v1789, %v1787
        %v1808 = vpack.c.b16 %v1790, %v1788
        %v1809 = vpack.c.b16 %v1793, %v1791
        %v1810 = vpack.c.b16 %v1794, %v1792
        %1827 = vmatprep.subr.bf16.mxu0 %v1796
        %1828 = vmatpush1.bf16.msra.mxu0 %v1795
        %1829 = vmatprep.subr.bf16.mxu0 %v1798
        %1830 = vmatpush1.bf16.msra.mxu0 %v1797
        %1831 = vmatprep.subr.bf16.mxu0 %v1800
        %1832 = vmatpush1.bf16.msra.mxu0 %v1799
        %1833 = vmatprep.subr.bf16.mxu0 %v1802
        %1834 = vmatpush1.bf16.msra.mxu0 %v1801
        %1835 = vmatprep.subr.bf16.mxu0 %v1804
        %1836 = vmatpush1.bf16.msra.mxu0 %v1803
        %1837 = vmatprep.subr.bf16.mxu0 %v1806
        %1838 = vmatpush1.bf16.msra.mxu0 %v1805
        %1839 = vmatprep.subr.bf16.mxu0 %v1808
        %1840 = vmatpush1.bf16.msra.mxu0 %v1807
        %1841 = vmatprep.subr.bf16.mxu0 %v1810
        %1842 = vmatpush1.bf16.msra.mxu0 %v1809
        %1843 = vmatprep.subr.bf16.mxu0 0
        %1844 = vmatpush1.bf16.msra.mxu0 0
        %1845 = vmatprep.subr.bf16.mxu0 0
        %1846 = vmatpush1.bf16.msra.mxu0 0
        %1847 = vmatprep.subr.bf16.mxu0 0
        %1848 = vmatpush1.bf16.msra.mxu0 0
        %1849 = vmatprep.subr.bf16.mxu0 0
        %1850 = vmatpush1.bf16.msra.mxu0 0
        %1851 = vmatprep.subr.bf16.mxu0 0
        %1852 = vmatpush1.bf16.msra.mxu0 0
        %1853 = vmatprep.subr.bf16.mxu0 0
        %1854 = vmatpush1.bf16.msra.mxu0 0
        %1855 = vmatprep.subr.bf16.mxu0 0
        %1856 = vmatpush1.bf16.msra.mxu0 0
        %1857 = vmatprep.subr.bf16.mxu0 0
        %1858 = vmatpush1.bf16.msra.mxu0 0
        %1859 = vmatprep.mubr.bf16.mxu0 0
        %1860 = vmatmul.mubr.bf16.gmra.mrb[0].mxu0 %v1731
        %v1861 = vpop.f32.mrb[0].mxu0
        %v1862 = vadd.f32 %v1740, %v1861
        %v1863 = vpop.f32.mrb[0].mxu0
        %v1864 = vadd.f32 %v1744, %v1863
        %v1865 = vpop.f32.mrb[0].mxu0
        %v1866 = vadd.f32 %v1740, %v1865
        %v1867 = vpop.f32.mrb[0].mxu0
        %v1868 = vadd.f32 %v1744, %v1867
        %1869 = vmatprep.mubr.bf16.mxu0 0
        %1870 = vmatmul.mubr.bf16.gmra.mrb[0].mxu0 %v1732
        %v1871 = vpop.f32.mrb[0].mxu0
        %v1872 = vadd.f32 %v1740, %v1871
        %v1873 = vpop.f32.mrb[0].mxu0
        %v1874 = vadd.f32 %v1744, %v1873
        %v1875 = vpop.f32.mrb[0].mxu0
        %v1876 = vadd.f32 %v1740, %v1875
        %v1877 = vpop.f32.mrb[0].mxu0
        %v1878 = vadd.f32 %v1744, %v1877
        %1879 = vmatprep.mubr.bf16.mxu0 0
        %1880 = vmatmul.mubr.bf16.gmra.mrb[0].mxu0 %v1733
        %v1881 = vpop.f32.mrb[0].mxu0
        %v1882 = vadd.f32 %v1740, %v1881
        %v1883 = vpop.f32.mrb[0].mxu0
        %v1884 = vadd.f32 %v1744, %v1883
        %v1885 = vpop.f32.mrb[0].mxu0
        %v1886 = vadd.f32 %v1740, %v1885
        %v1887 = vpop.f32.mrb[0].mxu0
        %v1888 = vadd.f32 %v1744, %v1887
        %1889 = vmatprep.mubr.bf16.mxu0 0
        %1890 = vmatmul.mubr.bf16.gmra.mrb[0].mxu0 %v1734
        %v1891 = vpop.f32.mrb[0].mxu0
        %v1892 = vadd.f32 %v1740, %v1891
        %v1893 = vpop.f32.mrb[0].mxu0
        %v1894 = vadd.f32 %v1744, %v1893
        %v1895 = vpop.f32.mrb[0].mxu0
        %v1896 = vadd.f32 %v1740, %v1895
        %v1897 = vpop.f32.mrb[0].mxu0
        %v1898 = vadd.f32 %v1744, %v1897
        %1899 = vdwg.mxu0
        %v1900 = vld [vmem:[%s12] sm:$0xff]
        %v1901 = vld [vmem:[%s12 + $0x8] sm:$0xff]
        %v1902 = vld [vmem:[%s12 + $0x10] sm:$0x1]
        %v1903 = vld [vmem:[%s12 + $0x18] sm:$0x1]
        %v1904 = vpack.c.bf16 %v1902, %v1900
        %v1905 = vpack.c.bf16 %v1903, %v1901
        %v1906 = vld [vmem:[%s16] sm:$0xf]
        %v1907 = vld [vmem:[%s16 + $0x4] sm:$0xf]
        %v1908 = vld [vmem:[%s16 + $0x8] sm:$0xf]
        %v1909 = vld [vmem:[%s16 + $0xc] sm:$0xf]
        %v1910 = vld [vmem:[%s16 + $0x10] sm:$0xf]
        %v1911 = vld [vmem:[%s16 + $0x14] sm:$0xf]
        %v1912 = vld [vmem:[%s16 + $0x18] sm:$0xf]
        %v1913 = vld [vmem:[%s16 + $0x1c] sm:$0xf]
        %v1914 = vld [vmem:[%s16 + $0x20] sm:$0xf]
        %v1915 = vld [vmem:[%s16 + $0x24] sm:$0xf]
        %v1916 = vld [vmem:[%s16 + $0x28] sm:$0xf]
        %v1917 = vld [vmem:[%s16 + $0x2c] sm:$0xf]
        %v1918 = vld [vmem:[%s16 + $0x30] sm:$0xf]
        %v1919 = vld [vmem:[%s16 + $0x34] sm:$0xf]
        %v1920 = vld [vmem:[%s16 + $0x38] sm:$0xf]
        %v1921 = vld [vmem:[%s16 + $0x3c] sm:$0xf]
        %v1922 = vld [vmem:[%s16 + $0x40] sm:$0xf]
        %v1923 = vld [vmem:[%s16 + $0x44] sm:$0xf]
        %v1924 = vld [vmem:[%s16 + $0x48] sm:$0xf]
        %v1925 = vld [vmem:[%s16 + $0x4c] sm:$0xf]
        %v1926 = vld [vmem:[%s16 + $0x50] sm:$0xf]
        %v1927 = vld [vmem:[%s16 + $0x54] sm:$0xf]
        %v1928 = vld [vmem:[%s16 + $0x58] sm:$0xf]
        %v1929 = vld [vmem:[%s16 + $0x5c] sm:$0xf]
        %v1930 = vld [vmem:[%s16 + $0x60] sm:$0xf]
        %v1931 = vld [vmem:[%s16 + $0x64] sm:$0xf]
        %v1932 = vld [vmem:[%s16 + $0x68] sm:$0xf]
        %v1933 = vld [vmem:[%s16 + $0x6c] sm:$0xf]
        %v1934 = vld [vmem:[%s16 + $0x70] sm:$0xf]
        %v1935 = vld [vmem:[%s16 + $0x74] sm:$0xf]
        %v1936 = vld [vmem:[%s16 + $0x78] sm:$0xf]
        %v1937 = vld [vmem:[%s16 + $0x7c] sm:$0xf]
        %v1938 = vld [vmem:[%s16 + $0xa0] sm:$0xf]
        %v1939 = vld [vmem:[%s16 + $0xa4] sm:$0xf]
        %v1940 = vld [vmem:[%s16 + $0xa8] sm:$0xf]
        %v1941 = vld [vmem:[%s16 + $0xac] sm:$0xf]
        %v1942 = vld [vmem:[%s16 + $0xb0] sm:$0xf]
        %v1943 = vld [vmem:[%s16 + $0xb4] sm:$0xf]
        %v1944 = vld [vmem:[%s16 + $0xb8] sm:$0xf]
        %v1945 = vld [vmem:[%s16 + $0xbc] sm:$0xf]
        %v1946 = vld [vmem:[%s16 + $0xc0] sm:$0xf]
        %v1947 = vld [vmem:[%s16 + $0xc4] sm:$0xf]
        %v1948 = vld [vmem:[%s16 + $0xc8] sm:$0xf]
        %v1949 = vld [vmem:[%s16 + $0xcc] sm:$0xf]
        %v1950 = vld [vmem:[%s16 + $0xd0] sm:$0xf]
        %v1951 = vld [vmem:[%s16 + $0xd4] sm:$0xf]
        %v1952 = vld [vmem:[%s16 + $0xd8] sm:$0xf]
        %v1953 = vld [vmem:[%s16 + $0xdc] sm:$0xf]
        %v1954 = vld [vmem:[%s16 + $0xe0] sm:$0xf]
        %v1955 = vld [vmem:[%s16 + $0xe4] sm:$0xf]
        %v1956 = vld [vmem:[%s16 + $0xe8] sm:$0xf]
        %v1957 = vld [vmem:[%s16 + $0xec] sm:$0xf]
        %v1958 = vld [vmem:[%s16 + $0xf0] sm:$0xf]
        %v1959 = vld [vmem:[%s16 + $0xf4] sm:$0xf]
        %v1960 = vld [vmem:[%s16 + $0xf8] sm:$0xf]
        %v1961 = vld [vmem:[%s16 + $0xfc] sm:$0xf]
        %v1962 = vld [vmem:[%s16 + $0x100] sm:$0xf]
        %v1963 = vld [vmem:[%s16 + $0x104] sm:$0xf]
        %v1964 = vld [vmem:[%s16 + $0x108] sm:$0xf]
        %v1965 = vld [vmem:[%s16 + $0x10c] sm:$0xf]
        %v1966 = vld [vmem:[%s16 + $0x110] sm:$0xf]
        %v1967 = vld [vmem:[%s16 + $0x114] sm:$0xf]
        %v1968 = vld [vmem:[%s16 + $0x118] sm:$0xf]
        %v1969 = vld [vmem:[%s16 + $0x11c] sm:$0xf]
        %v1970 = vpack.c.bf16 %v1866, %v1862
        %v1971 = vpack.c.bf16 %v1868, %v1864
        %v1972 = vpack.c.bf16 %v1876, %v1872
        %v1973 = vpack.c.bf16 %v1878, %v1874
        %v1974 = vpack.c.bf16 %v1886, %v1882
        %v1975 = vpack.c.bf16 %v1888, %v1884
        %v1976 = vpack.c.bf16 %v1896, %v1892
        %v1977 = vpack.c.bf16 %v1898, %v1894
        %v1979 = vpack.i.b16 %v1904, %v1904
        %v1981 = vlaneseq
        %v1982 = vshrl.u32 %v1981, 7
        %v1983 = vsub.s32 2, %v1982
        %v1984 = vrot.slane %v1979, %v1983
        %v1986 = vpack.i.b16 %v1905, %v1905
        %v1988 = vlaneseq
        %v1989 = vshrl.u32 %v1988, 7
        %v1990 = vsub.s32 2, %v1989
        %v1991 = vrot.slane %v1986, %v1990
        %v1992 = vmul.bf16 %v1970, %v1984
        %v1993 = vmul.bf16 %v1971, %v1991
        %v1994 = vmul.bf16 %v1972, %v1984
        %v1995 = vmul.bf16 %v1973, %v1991
        %v1996 = vmul.bf16 %v1974, %v1984
        %v1997 = vmul.bf16 %v1975, %v1991
        %v1998 = vmul.bf16 %v1976, %v1984
        %v1999 = vmul.bf16 %v1977, %v1991
        %v2000 = vrot.slane %v1862, 7
        %v2001 = vrot.slane %v1864, 7
        %v2002 = vrot.slane %v1866, 7
        %v2003 = vrot.slane %v1868, 7
        %v2004 = vrot.slane %v1872, 7
        %v2005 = vrot.slane %v1874, 7
        %v2006 = vrot.slane %v1876, 7
        %v2007 = vrot.slane %v1878, 7
        %v2008 = vrot.slane %v1882, 7
        %v2009 = vrot.slane %v1884, 7
        %v2010 = vrot.slane %v1886, 7
        %v2011 = vrot.slane %v1888, 7
        %v2012 = vrot.slane %v1892, 7
        %v2013 = vrot.slane %v1894, 7
        %v2014 = vrot.slane %v1896, 7
        %v2015 = vrot.slane %v1898, 7
        %v2016 = vlaneseq
        %v2017 = vshrl.u32 %v2016, 7
        %vm2018 = vcmp.lt.s32.totalorder %v2017, 1
        %v2019 = vsel %vm2018, %v2012, %v2014
        %v2020 = vsel %vm2018, %v2013, %v2015
        %v2021 = vsel %vm2018, %v2010, %v2012
        %v2022 = vsel %vm2018, %v2011, %v2013
        %v2023 = vsel %vm2018, %v2008, %v2010
        %v2024 = vsel %vm2018, %v2009, %v2011
        %v2025 = vsel %vm2018, %v2006, %v2008
        %v2026 = vsel %vm2018, %v2007, %v2009
        %v2027 = vsel %vm2018, %v2004, %v2006
        %v2028 = vsel %vm2018, %v2005, %v2007
        %v2029 = vsel %vm2018, %v2002, %v2004
        %v2030 = vsel %vm2018, %v2003, %v2005
        %v2031 = vsel %vm2018, %v2000, %v2002
        %v2032 = vsel %vm2018, %v2001, %v2003
        %v2033 = vsel %vm2018, %v2014, %v2000
        %v2034 = vsel %vm2018, %v2015, %v2001
        %v2035 = vpack.c.bf16 %v2033, %v2019
        %v2036 = vpack.c.bf16 %v2034, %v2020
        %v2037 = vpack.c.bf16 %v2029, %v2031
        %v2038 = vpack.c.bf16 %v2030, %v2032
        %v2039 = vpack.c.bf16 %v2025, %v2027
        %v2040 = vpack.c.bf16 %v2026, %v2028
        %v2041 = vpack.c.bf16 %v2021, %v2023
        %v2042 = vpack.c.bf16 %v2022, %v2024
        %2044 = vset.pattern.permute.xlu0 0
        %2045 = vperm.xlu0 %2044, %v1906
        %v2046 = vpop.permute.xlu0 %2045
        %v2049 = vunpack.c.l.s4 839922192
        %v2050 = vunpack.c.0.s8 %v2049
        %v2051 = vlaneseq
        %v2052 = vshrl.u32 %v2051, 7
        %v2053 = vsub.s32 %v2050, %v2052
        %v2054 = vrot.slane %v2046, %v2053
        %2056 = vset.pattern.permute.xlu0 0
        %2057 = vperm.xlu0 %2056, %v1907
        %v2058 = vpop.permute.xlu0 %2057
        %v2061 = vunpack.c.l.s4 839922192
        %v2062 = vunpack.c.0.s8 %v2061
        %v2063 = vlaneseq
        %v2064 = vshrl.u32 %v2063, 7
        %v2065 = vsub.s32 %v2062, %v2064
        %v2066 = vrot.slane %v2058, %v2065
        %2068 = vset.pattern.permute.xlu0 0
        %2069 = vperm.xlu0 %2068, %v1908
        %v2070 = vpop.permute.xlu0 %2069
        %v2073 = vunpack.c.l.s4 839922192
        %v2074 = vunpack.c.0.s8 %v2073
        %v2075 = vlaneseq
        %v2076 = vshrl.u32 %v2075, 7
        %v2077 = vsub.s32 %v2074, %v2076
        %v2078 = vrot.slane %v2070, %v2077
        %2080 = vset.pattern.permute.xlu0 0
        %2081 = vperm.xlu0 %2080, %v1909
        %v2082 = vpop.permute.xlu0 %2081
        %v2085 = vunpack.c.l.s4 839922192
        %v2086 = vunpack.c.0.s8 %v2085
        %v2087 = vlaneseq
        %v2088 = vshrl.u32 %v2087, 7
        %v2089 = vsub.s32 %v2086, %v2088
        %v2090 = vrot.slane %v2082, %v2089
        %2092 = vset.pattern.permute.xlu0 0
        %2093 = vperm.xlu0 %2092, %v1910
        %v2094 = vpop.permute.xlu0 %2093
        %v2097 = vunpack.c.l.s4 839922192
        %v2098 = vunpack.c.0.s8 %v2097
        %v2099 = vlaneseq
        %v2100 = vshrl.u32 %v2099, 7
        %v2101 = vsub.s32 %v2098, %v2100
        %v2102 = vrot.slane %v2094, %v2101
        %2104 = vset.pattern.permute.xlu0 0
        %2105 = vperm.xlu0 %2104, %v1911
        %v2106 = vpop.permute.xlu0 %2105
        %v2109 = vunpack.c.l.s4 839922192
        %v2110 = vunpack.c.0.s8 %v2109
        %v2111 = vlaneseq
        %v2112 = vshrl.u32 %v2111, 7
        %v2113 = vsub.s32 %v2110, %v2112
        %v2114 = vrot.slane %v2106, %v2113
        %2116 = vset.pattern.permute.xlu0 0
        %2117 = vperm.xlu0 %2116, %v1912
        %v2118 = vpop.permute.xlu0 %2117
        %v2121 = vunpack.c.l.s4 839922192
        %v2122 = vunpack.c.0.s8 %v2121
        %v2123 = vlaneseq
        %v2124 = vshrl.u32 %v2123, 7
        %v2125 = vsub.s32 %v2122, %v2124
        %v2126 = vrot.slane %v2118, %v2125
        %2128 = vset.pattern.permute.xlu0 0
        %2129 = vperm.xlu0 %2128, %v1913
        %v2130 = vpop.permute.xlu0 %2129
        %v2133 = vunpack.c.l.s4 839922192
        %v2134 = vunpack.c.0.s8 %v2133
        %v2135 = vlaneseq
        %v2136 = vshrl.u32 %v2135, 7
        %v2137 = vsub.s32 %v2134, %v2136
        %v2138 = vrot.slane %v2130, %v2137
        %v2147 = vunpack.c.l.b16 %v2054
        %v2148 = vunpack.c.l.b16 %v2066
        %v2149 = vunpack.c.l.b16 %v2078
        %v2150 = vunpack.c.l.b16 %v2090
        %v2151 = vunpack.c.l.b16 %v2102
        %v2152 = vunpack.c.l.b16 %v2114
        %v2153 = vunpack.c.l.b16 %v2126
        %v2154 = vunpack.c.l.b16 %v2138
        %v2155 = vpack.c.b16 %v2148, %v2147
        %v2156 = vpack.c.b16 %v2150, %v2149
        %v2157 = vpack.c.b16 %v2152, %v2151
        %v2158 = vpack.c.b16 %v2154, %v2153
        %v2163 = vmul.bf16 %v2035, %v2155
        %v2164 = vmul.bf16 %v2036, %v2155
        %v2165 = vmul.bf16 %v2037, %v2156
        %v2166 = vmul.bf16 %v2038, %v2156
        %v2167 = vmul.bf16 %v2039, %v2157
        %v2168 = vmul.bf16 %v2040, %v2157
        %v2169 = vmul.bf16 %v2041, %v2158
        %v2170 = vmul.bf16 %v2042, %v2158
        %v2171 = vlaneseq
        %v2172 = vshrl.u32 %v2171, 7
        %v2173 = vsub.s32 0, %v2172
        %v2174 = vrot.slane %v1979, %v2173
        %v2175 = vlaneseq
        %v2176 = vshrl.u32 %v2175, 7
        %v2177 = vsub.s32 0, %v2176
        %v2178 = vrot.slane %v1986, %v2177
        %v2179 = vmul.bf16 %v2163, %v2174
        %v2180 = vmul.bf16 %v2164, %v2178
        %v2181 = vmul.bf16 %v2165, %v2174
        %v2182 = vmul.bf16 %v2166, %v2178
        %v2183 = vmul.bf16 %v2167, %v2174
        %v2184 = vmul.bf16 %v2168, %v2178
        %v2185 = vmul.bf16 %v2169, %v2174
        %v2186 = vmul.bf16 %v2170, %v2178
        %v2187 = vadd.bf16 %v1992, %v2179
        %v2188 = vadd.bf16 %v1993, %v2180
        %v2189 = vadd.bf16 %v1994, %v2181
        %v2190 = vadd.bf16 %v1995, %v2182
        %v2191 = vadd.bf16 %v1996, %v2183
        %v2192 = vadd.bf16 %v1997, %v2184
        %v2193 = vadd.bf16 %v1998, %v2185
        %v2194 = vadd.bf16 %v1999, %v2186
        %v2195 = vpack.c.bf16 %v1862, %v1896
        %v2196 = vpack.c.bf16 %v1864, %v1898
        %v2197 = vpack.c.bf16 %v1872, %v1866
        %v2198 = vpack.c.bf16 %v1874, %v1868
        %v2199 = vpack.c.bf16 %v1882, %v1876
        %v2200 = vpack.c.bf16 %v1884, %v1878
        %v2201 = vpack.c.bf16 %v1892, %v1886
        %v2202 = vpack.c.bf16 %v1894, %v1888
        %2204 = vset.pattern.permute.xlu0 0
        %2205 = vperm.xlu0 %2204, %v1914
        %v2206 = vpop.permute.xlu0 %2205
        %v2209 = vunpack.c.l.s4 839922192
        %v2210 = vunpack.c.0.s8 %v2209
        %v2211 = vlaneseq
        %v2212 = vshrl.u32 %v2211, 7
        %v2213 = vsub.s32 %v2210, %v2212
        %v2214 = vrot.slane %v2206, %v2213
        %2216 = vset.pattern.permute.xlu0 0
        %2217 = vperm.xlu0 %2216, %v1915
        %v2218 = vpop.permute.xlu0 %2217
        %v2221 = vunpack.c.l.s4 839922192
        %v2222 = vunpack.c.0.s8 %v2221
        %v2223 = vlaneseq
        %v2224 = vshrl.u32 %v2223, 7
        %v2225 = vsub.s32 %v2222, %v2224
        %v2226 = vrot.slane %v2218, %v2225
        %2228 = vset.pattern.permute.xlu0 0
        %2229 = vperm.xlu0 %2228, %v1916
        %v2230 = vpop.permute.xlu0 %2229
        %v2233 = vunpack.c.l.s4 839922192
        %v2234 = vunpack.c.0.s8 %v2233
        %v2235 = vlaneseq
        %v2236 = vshrl.u32 %v2235, 7
        %v2237 = vsub.s32 %v2234, %v2236
        %v2238 = vrot.slane %v2230, %v2237
        %2240 = vset.pattern.permute.xlu0 0
        %2241 = vperm.xlu0 %2240, %v1917
        %v2242 = vpop.permute.xlu0 %2241
        %v2245 = vunpack.c.l.s4 839922192
        %v2246 = vunpack.c.0.s8 %v2245
        %v2247 = vlaneseq
        %v2248 = vshrl.u32 %v2247, 7
        %v2249 = vsub.s32 %v2246, %v2248
        %v2250 = vrot.slane %v2242, %v2249
        %2252 = vset.pattern.permute.xlu0 0
        %2253 = vperm.xlu0 %2252, %v1918
        %v2254 = vpop.permute.xlu0 %2253
        %v2257 = vunpack.c.l.s4 839922192
        %v2258 = vunpack.c.0.s8 %v2257
        %v2259 = vlaneseq
        %v2260 = vshrl.u32 %v2259, 7
        %v2261 = vsub.s32 %v2258, %v2260
        %v2262 = vrot.slane %v2254, %v2261
        %2264 = vset.pattern.permute.xlu0 0
        %2265 = vperm.xlu0 %2264, %v1919
        %v2266 = vpop.permute.xlu0 %2265
        %v2269 = vunpack.c.l.s4 839922192
        %v2270 = vunpack.c.0.s8 %v2269
        %v2271 = vlaneseq
        %v2272 = vshrl.u32 %v2271, 7
        %v2273 = vsub.s32 %v2270, %v2272
        %v2274 = vrot.slane %v2266, %v2273
        %2276 = vset.pattern.permute.xlu0 0
        %2277 = vperm.xlu0 %2276, %v1920
        %v2278 = vpop.permute.xlu0 %2277
        %v2281 = vunpack.c.l.s4 839922192
        %v2282 = vunpack.c.0.s8 %v2281
        %v2283 = vlaneseq
        %v2284 = vshrl.u32 %v2283, 7
        %v2285 = vsub.s32 %v2282, %v2284
        %v2286 = vrot.slane %v2278, %v2285
        %2288 = vset.pattern.permute.xlu0 0
        %2289 = vperm.xlu0 %2288, %v1921
        %v2290 = vpop.permute.xlu0 %2289
        %v2293 = vunpack.c.l.s4 839922192
        %v2294 = vunpack.c.0.s8 %v2293
        %v2295 = vlaneseq
        %v2296 = vshrl.u32 %v2295, 7
        %v2297 = vsub.s32 %v2294, %v2296
        %v2298 = vrot.slane %v2290, %v2297
        %v2307 = vunpack.c.l.b16 %v2214
        %v2308 = vunpack.c.l.b16 %v2226
        %v2309 = vunpack.c.l.b16 %v2238
        %v2310 = vunpack.c.l.b16 %v2250
        %v2311 = vunpack.c.l.b16 %v2262
        %v2312 = vunpack.c.l.b16 %v2274
        %v2313 = vunpack.c.l.b16 %v2286
        %v2314 = vunpack.c.l.b16 %v2298
        %v2315 = vpack.c.b16 %v2308, %v2307
        %v2316 = vpack.c.b16 %v2310, %v2309
        %v2317 = vpack.c.b16 %v2312, %v2311
        %v2318 = vpack.c.b16 %v2314, %v2313
        %v2323 = vmul.bf16 %v2195, %v2315
        %v2324 = vmul.bf16 %v2196, %v2315
        %v2325 = vmul.bf16 %v2197, %v2316
        %v2326 = vmul.bf16 %v2198, %v2316
        %v2327 = vmul.bf16 %v2199, %v2317
        %v2328 = vmul.bf16 %v2200, %v2317
        %v2329 = vmul.bf16 %v2201, %v2318
        %v2330 = vmul.bf16 %v2202, %v2318
        %v2331 = vshrl.u32 %v1904, 16
        %v2332 = vpack.i.b16 %v2331, %v2331
        %v2334 = vlaneseq
        %v2335 = vshrl.u32 %v2334, 7
        %v2336 = vsub.s32 0, %v2335
        %v2337 = vrot.slane %v2332, %v2336
        %v2338 = vshrl.u32 %v1905, 16
        %v2339 = vpack.i.b16 %v2338, %v2338
        %v2341 = vlaneseq
        %v2342 = vshrl.u32 %v2341, 7
        %v2343 = vsub.s32 0, %v2342
        %v2344 = vrot.slane %v2339, %v2343
        %v2345 = vmul.bf16 %v2323, %v2337
        %v2346 = vmul.bf16 %v2324, %v2344
        %v2347 = vmul.bf16 %v2325, %v2337
        %v2348 = vmul.bf16 %v2326, %v2344
        %v2349 = vmul.bf16 %v2327, %v2337
        %v2350 = vmul.bf16 %v2328, %v2344
        %v2351 = vmul.bf16 %v2329, %v2337
        %v2352 = vmul.bf16 %v2330, %v2344
        %v2353 = vadd.bf16 %v2187, %v2345
        %v2354 = vadd.bf16 %v2188, %v2346
        %v2355 = vadd.bf16 %v2189, %v2347
        %v2356 = vadd.bf16 %v2190, %v2348
        %v2357 = vadd.bf16 %v2191, %v2349
        %v2358 = vadd.bf16 %v2192, %v2350
        %v2359 = vadd.bf16 %v2193, %v2351
        %v2360 = vadd.bf16 %v2194, %v2352
        %v2361 = vrot.slane %v1862, 1
        %v2362 = vrot.slane %v1864, 1
        %v2363 = vrot.slane %v1866, 1
        %v2364 = vrot.slane %v1868, 1
        %v2365 = vrot.slane %v1872, 1
        %v2366 = vrot.slane %v1874, 1
        %v2367 = vrot.slane %v1876, 1
        %v2368 = vrot.slane %v1878, 1
        %v2369 = vrot.slane %v1882, 1
        %v2370 = vrot.slane %v1884, 1
        %v2371 = vrot.slane %v1886, 1
        %v2372 = vrot.slane %v1888, 1
        %v2373 = vrot.slane %v1892, 1
        %v2374 = vrot.slane %v1894, 1
        %v2375 = vrot.slane %v1896, 1
        %v2376 = vrot.slane %v1898, 1
        %vm2377 = vcmp.lt.s32.totalorder %v2017, 7
        %v2378 = vsel %vm2377, %v2373, %v2375
        %v2379 = vsel %vm2377, %v2374, %v2376
        %v2380 = vsel %vm2377, %v2371, %v2373
        %v2381 = vsel %vm2377, %v2372, %v2374
        %v2382 = vsel %vm2377, %v2369, %v2371
        %v2383 = vsel %vm2377, %v2370, %v2372
        %v2384 = vsel %vm2377, %v2367, %v2369
        %v2385 = vsel %vm2377, %v2368, %v2370
        %v2386 = vsel %vm2377, %v2365, %v2367
        %v2387 = vsel %vm2377, %v2366, %v2368
        %v2388 = vsel %vm2377, %v2363, %v2365
        %v2389 = vsel %vm2377, %v2364, %v2366
        %v2390 = vsel %vm2377, %v2361, %v2363
        %v2391 = vsel %vm2377, %v2362, %v2364
        %v2392 = vsel %vm2377, %v2375, %v2361
        %v2393 = vsel %vm2377, %v2376, %v2362
        %v2394 = vpack.c.bf16 %v2390, %v2392
        %v2395 = vpack.c.bf16 %v2391, %v2393
        %v2396 = vpack.c.bf16 %v2386, %v2388
        %v2397 = vpack.c.bf16 %v2387, %v2389
        %v2398 = vpack.c.bf16 %v2382, %v2384
        %v2399 = vpack.c.bf16 %v2383, %v2385
        %v2400 = vpack.c.bf16 %v2378, %v2380
        %v2401 = vpack.c.bf16 %v2379, %v2381
        %2403 = vset.pattern.permute.xlu0 0
        %2404 = vperm.xlu0 %2403, %v1922
        %v2405 = vpop.permute.xlu0 %2404
        %v2408 = vunpack.c.l.s4 839922192
        %v2409 = vunpack.c.0.s8 %v2408
        %v2410 = vlaneseq
        %v2411 = vshrl.u32 %v2410, 7
        %v2412 = vsub.s32 %v2409, %v2411
        %v2413 = vrot.slane %v2405, %v2412
        %2415 = vset.pattern.permute.xlu0 0
        %2416 = vperm.xlu0 %2415, %v1923
        %v2417 = vpop.permute.xlu0 %2416
        %v2420 = vunpack.c.l.s4 839922192
        %v2421 = vunpack.c.0.s8 %v2420
        %v2422 = vlaneseq
        %v2423 = vshrl.u32 %v2422, 7
        %v2424 = vsub.s32 %v2421, %v2423
        %v2425 = vrot.slane %v2417, %v2424
        %2427 = vset.pattern.permute.xlu0 0
        %2428 = vperm.xlu0 %2427, %v1924
        %v2429 = vpop.permute.xlu0 %2428
        %v2432 = vunpack.c.l.s4 839922192
        %v2433 = vunpack.c.0.s8 %v2432
        %v2434 = vlaneseq
        %v2435 = vshrl.u32 %v2434, 7
        %v2436 = vsub.s32 %v2433, %v2435
        %v2437 = vrot.slane %v2429, %v2436
        %2439 = vset.pattern.permute.xlu0 0
        %2440 = vperm.xlu0 %2439, %v1925
        %v2441 = vpop.permute.xlu0 %2440
        %v2444 = vunpack.c.l.s4 839922192
        %v2445 = vunpack.c.0.s8 %v2444
        %v2446 = vlaneseq
        %v2447 = vshrl.u32 %v2446, 7
        %v2448 = vsub.s32 %v2445, %v2447
        %v2449 = vrot.slane %v2441, %v2448
        %2451 = vset.pattern.permute.xlu0 0
        %2452 = vperm.xlu0 %2451, %v1926
        %v2453 = vpop.permute.xlu0 %2452
        %v2456 = vunpack.c.l.s4 839922192
        %v2457 = vunpack.c.0.s8 %v2456
        %v2458 = vlaneseq
        %v2459 = vshrl.u32 %v2458, 7
        %v2460 = vsub.s32 %v2457, %v2459
        %v2461 = vrot.slane %v2453, %v2460
        %2463 = vset.pattern.permute.xlu0 0
        %2464 = vperm.xlu0 %2463, %v1927
        %v2465 = vpop.permute.xlu0 %2464
        %v2468 = vunpack.c.l.s4 839922192
        %v2469 = vunpack.c.0.s8 %v2468
        %v2470 = vlaneseq
        %v2471 = vshrl.u32 %v2470, 7
        %v2472 = vsub.s32 %v2469, %v2471
        %v2473 = vrot.slane %v2465, %v2472
        %2475 = vset.pattern.permute.xlu0 0
        %2476 = vperm.xlu0 %2475, %v1928
        %v2477 = vpop.permute.xlu0 %2476
        %v2480 = vunpack.c.l.s4 839922192
        %v2481 = vunpack.c.0.s8 %v2480
        %v2482 = vlaneseq
        %v2483 = vshrl.u32 %v2482, 7
        %v2484 = vsub.s32 %v2481, %v2483
        %v2485 = vrot.slane %v2477, %v2484
        %2487 = vset.pattern.permute.xlu0 0
        %2488 = vperm.xlu0 %2487, %v1929
        %v2489 = vpop.permute.xlu0 %2488
        %v2492 = vunpack.c.l.s4 839922192
        %v2493 = vunpack.c.0.s8 %v2492
        %v2494 = vlaneseq
        %v2495 = vshrl.u32 %v2494, 7
        %v2496 = vsub.s32 %v2493, %v2495
        %v2497 = vrot.slane %v2489, %v2496
        %v2506 = vunpack.c.l.b16 %v2413
        %v2507 = vunpack.c.l.b16 %v2425
        %v2508 = vunpack.c.l.b16 %v2437
        %v2509 = vunpack.c.l.b16 %v2449
        %v2510 = vunpack.c.l.b16 %v2461
        %v2511 = vunpack.c.l.b16 %v2473
        %v2512 = vunpack.c.l.b16 %v2485
        %v2513 = vunpack.c.l.b16 %v2497
        %v2514 = vpack.c.b16 %v2507, %v2506
        %v2515 = vpack.c.b16 %v2509, %v2508
        %v2516 = vpack.c.b16 %v2511, %v2510
        %v2517 = vpack.c.b16 %v2513, %v2512
        %v2522 = vmul.bf16 %v2394, %v2514
        %v2523 = vmul.bf16 %v2395, %v2514
        %v2524 = vmul.bf16 %v2396, %v2515
        %v2525 = vmul.bf16 %v2397, %v2515
        %v2526 = vmul.bf16 %v2398, %v2516
        %v2527 = vmul.bf16 %v2399, %v2516
        %v2528 = vmul.bf16 %v2400, %v2517
        %v2529 = vmul.bf16 %v2401, %v2517
        %v2530 = vlaneseq
        %v2531 = vshrl.u32 %v2530, 7
        %v2532 = vsub.s32 1, %v2531
        %v2533 = vrot.slane %v1979, %v2532
        %v2534 = vlaneseq
        %v2535 = vshrl.u32 %v2534, 7
        %v2536 = vsub.s32 1, %v2535
        %v2537 = vrot.slane %v1986, %v2536
        %v2538 = vmul.bf16 %v2522, %v2533
        %v2539 = vmul.bf16 %v2523, %v2537
        %v2540 = vmul.bf16 %v2524, %v2533
        %v2541 = vmul.bf16 %v2525, %v2537
        %v2542 = vmul.bf16 %v2526, %v2533
        %v2543 = vmul.bf16 %v2527, %v2537
        %v2544 = vmul.bf16 %v2528, %v2533
        %v2545 = vmul.bf16 %v2529, %v2537
        %v2546 = vadd.bf16 %v2353, %v2538
        %v2547 = vadd.bf16 %v2354, %v2539
        %v2548 = vadd.bf16 %v2355, %v2540
        %v2549 = vadd.bf16 %v2356, %v2541
        %v2550 = vadd.bf16 %v2357, %v2542
        %v2551 = vadd.bf16 %v2358, %v2543
        %v2552 = vadd.bf16 %v2359, %v2544
        %v2553 = vadd.bf16 %v2360, %v2545
        %v2554 = vpack.c.bf16 %v2031, %v2033
        %v2555 = vpack.c.bf16 %v2032, %v2034
        %v2556 = vpack.c.bf16 %v2027, %v2029
        %v2557 = vpack.c.bf16 %v2028, %v2030
        %v2558 = vpack.c.bf16 %v2023, %v2025
        %v2559 = vpack.c.bf16 %v2024, %v2026
        %v2560 = vpack.c.bf16 %v2019, %v2021
        %v2561 = vpack.c.bf16 %v2020, %v2022
        %2563 = vset.pattern.permute.xlu0 0
        %2564 = vperm.xlu0 %2563, %v1930
        %v2565 = vpop.permute.xlu0 %2564
        %v2568 = vunpack.c.l.s4 839922192
        %v2569 = vunpack.c.0.s8 %v2568
        %v2570 = vlaneseq
        %v2571 = vshrl.u32 %v2570, 7
        %v2572 = vsub.s32 %v2569, %v2571
        %v2573 = vrot.slane %v2565, %v2572
        %2575 = vset.pattern.permute.xlu0 0
        %2576 = vperm.xlu0 %2575, %v1931
        %v2577 = vpop.permute.xlu0 %2576
        %v2580 = vunpack.c.l.s4 839922192
        %v2581 = vunpack.c.0.s8 %v2580
        %v2582 = vlaneseq
        %v2583 = vshrl.u32 %v2582, 7
        %v2584 = vsub.s32 %v2581, %v2583
        %v2585 = vrot.slane %v2577, %v2584
        %2587 = vset.pattern.permute.xlu0 0
        %2588 = vperm.xlu0 %2587, %v1932
        %v2589 = vpop.permute.xlu0 %2588
        %v2592 = vunpack.c.l.s4 839922192
        %v2593 = vunpack.c.0.s8 %v2592
        %v2594 = vlaneseq
        %v2595 = vshrl.u32 %v2594, 7
        %v2596 = vsub.s32 %v2593, %v2595
        %v2597 = vrot.slane %v2589, %v2596
        %2599 = vset.pattern.permute.xlu0 0
        %2600 = vperm.xlu0 %2599, %v1933
        %v2601 = vpop.permute.xlu0 %2600
        %v2604 = vunpack.c.l.s4 839922192
        %v2605 = vunpack.c.0.s8 %v2604
        %v2606 = vlaneseq
        %v2607 = vshrl.u32 %v2606, 7
        %v2608 = vsub.s32 %v2605, %v2607
        %v2609 = vrot.slane %v2601, %v2608
        %2611 = vset.pattern.permute.xlu0 0
        %2612 = vperm.xlu0 %2611, %v1934
        %v2613 = vpop.permute.xlu0 %2612
        %v2616 = vunpack.c.l.s4 839922192
        %v2617 = vunpack.c.0.s8 %v2616
        %v2618 = vlaneseq
        %v2619 = vshrl.u32 %v2618, 7
        %v2620 = vsub.s32 %v2617, %v2619
        %v2621 = vrot.slane %v2613, %v2620
        %2623 = vset.pattern.permute.xlu0 0
        %2624 = vperm.xlu0 %2623, %v1935
        %v2625 = vpop.permute.xlu0 %2624
        %v2628 = vunpack.c.l.s4 839922192
        %v2629 = vunpack.c.0.s8 %v2628
        %v2630 = vlaneseq
        %v2631 = vshrl.u32 %v2630, 7
        %v2632 = vsub.s32 %v2629, %v2631
        %v2633 = vrot.slane %v2625, %v2632
        %2635 = vset.pattern.permute.xlu0 0
        %2636 = vperm.xlu0 %2635, %v1936
        %v2637 = vpop.permute.xlu0 %2636
        %v2640 = vunpack.c.l.s4 839922192
        %v2641 = vunpack.c.0.s8 %v2640
        %v2642 = vlaneseq
        %v2643 = vshrl.u32 %v2642, 7
        %v2644 = vsub.s32 %v2641, %v2643
        %v2645 = vrot.slane %v2637, %v2644
        %2647 = vset.pattern.permute.xlu0 0
        %2648 = vperm.xlu0 %2647, %v1937
        %v2649 = vpop.permute.xlu0 %2648
        %v2652 = vunpack.c.l.s4 839922192
        %v2653 = vunpack.c.0.s8 %v2652
        %v2654 = vlaneseq
        %v2655 = vshrl.u32 %v2654, 7
        %v2656 = vsub.s32 %v2653, %v2655
        %v2657 = vrot.slane %v2649, %v2656
        %v2666 = vunpack.c.l.b16 %v2573
        %v2667 = vunpack.c.l.b16 %v2585
        %v2668 = vunpack.c.l.b16 %v2597
        %v2669 = vunpack.c.l.b16 %v2609
        %v2670 = vunpack.c.l.b16 %v2621
        %v2671 = vunpack.c.l.b16 %v2633
        %v2672 = vunpack.c.l.b16 %v2645
        %v2673 = vunpack.c.l.b16 %v2657
        %v2674 = vpack.c.b16 %v2667, %v2666
        %v2675 = vpack.c.b16 %v2669, %v2668
        %v2676 = vpack.c.b16 %v2671, %v2670
        %v2677 = vpack.c.b16 %v2673, %v2672
        %v2682 = vmul.bf16 %v2554, %v2674
        %v2683 = vmul.bf16 %v2555, %v2674
        %v2684 = vmul.bf16 %v2556, %v2675
        %v2685 = vmul.bf16 %v2557, %v2675
        %v2686 = vmul.bf16 %v2558, %v2676
        %v2687 = vmul.bf16 %v2559, %v2676
        %v2688 = vmul.bf16 %v2560, %v2677
        %v2689 = vmul.bf16 %v2561, %v2677
        %v2690 = vlaneseq
        %v2691 = vshrl.u32 %v2690, 7
        %v2692 = vsub.s32 1, %v2691
        %v2693 = vrot.slane %v2332, %v2692
        %v2694 = vlaneseq
        %v2695 = vshrl.u32 %v2694, 7
        %v2696 = vsub.s32 1, %v2695
        %v2697 = vrot.slane %v2339, %v2696
        %v2698 = vmul.bf16 %v2682, %v2693
        %v2699 = vmul.bf16 %v2683, %v2697
        %v2700 = vmul.bf16 %v2684, %v2693
        %v2701 = vmul.bf16 %v2685, %v2697
        %v2702 = vmul.bf16 %v2686, %v2693
        %v2703 = vmul.bf16 %v2687, %v2697
        %v2704 = vmul.bf16 %v2688, %v2693
        %v2705 = vmul.bf16 %v2689, %v2697
        %v2706 = vadd.bf16 %v2546, %v2698
        %v2707 = vadd.bf16 %v2547, %v2699
        %v2708 = vadd.bf16 %v2548, %v2700
        %v2709 = vadd.bf16 %v2549, %v2701
        %v2710 = vadd.bf16 %v2550, %v2702
        %v2711 = vadd.bf16 %v2551, %v2703
        %v2712 = vadd.bf16 %v2552, %v2704
        %v2713 = vadd.bf16 %v2553, %v2705
        %v2714 = vpack.c.bf16 %v2388, %v2390
        %v2715 = vpack.c.bf16 %v2389, %v2391
        %v2716 = vpack.c.bf16 %v2384, %v2386
        %v2717 = vpack.c.bf16 %v2385, %v2387
        %v2718 = vpack.c.bf16 %v2380, %v2382
        %v2719 = vpack.c.bf16 %v2381, %v2383
        %v2720 = vpack.c.bf16 %v2392, %v2378
        %v2721 = vpack.c.bf16 %v2393, %v2379
        %2723 = vset.pattern.permute.xlu0 0
        %2724 = vperm.xlu0 %2723, %v1938
        %v2725 = vpop.permute.xlu0 %2724
        %v2728 = vunpack.c.l.s4 839922192
        %v2729 = vunpack.c.0.s8 %v2728
        %v2730 = vlaneseq
        %v2731 = vshrl.u32 %v2730, 7
        %v2732 = vsub.s32 %v2729, %v2731
        %v2733 = vrot.slane %v2725, %v2732
        %2735 = vset.pattern.permute.xlu0 0
        %2736 = vperm.xlu0 %2735, %v1939
        %v2737 = vpop.permute.xlu0 %2736
        %v2740 = vunpack.c.l.s4 839922192
        %v2741 = vunpack.c.0.s8 %v2740
        %v2742 = vlaneseq
        %v2743 = vshrl.u32 %v2742, 7
        %v2744 = vsub.s32 %v2741, %v2743
        %v2745 = vrot.slane %v2737, %v2744
        %2747 = vset.pattern.permute.xlu0 0
        %2748 = vperm.xlu0 %2747, %v1940
        %v2749 = vpop.permute.xlu0 %2748
        %v2752 = vunpack.c.l.s4 839922192
        %v2753 = vunpack.c.0.s8 %v2752
        %v2754 = vlaneseq
        %v2755 = vshrl.u32 %v2754, 7
        %v2756 = vsub.s32 %v2753, %v2755
        %v2757 = vrot.slane %v2749, %v2756
        %2759 = vset.pattern.permute.xlu0 0
        %2760 = vperm.xlu0 %2759, %v1941
        %v2761 = vpop.permute.xlu0 %2760
        %v2764 = vunpack.c.l.s4 839922192
        %v2765 = vunpack.c.0.s8 %v2764
        %v2766 = vlaneseq
        %v2767 = vshrl.u32 %v2766, 7
        %v2768 = vsub.s32 %v2765, %v2767
        %v2769 = vrot.slane %v2761, %v2768
        %2771 = vset.pattern.permute.xlu0 0
        %2772 = vperm.xlu0 %2771, %v1942
        %v2773 = vpop.permute.xlu0 %2772
        %v2776 = vunpack.c.l.s4 839922192
        %v2777 = vunpack.c.0.s8 %v2776
        %v2778 = vlaneseq
        %v2779 = vshrl.u32 %v2778, 7
        %v2780 = vsub.s32 %v2777, %v2779
        %v2781 = vrot.slane %v2773, %v2780
        %2783 = vset.pattern.permute.xlu0 0
        %2784 = vperm.xlu0 %2783, %v1943
        %v2785 = vpop.permute.xlu0 %2784
        %v2788 = vunpack.c.l.s4 839922192
        %v2789 = vunpack.c.0.s8 %v2788
        %v2790 = vlaneseq
        %v2791 = vshrl.u32 %v2790, 7
        %v2792 = vsub.s32 %v2789, %v2791
        %v2793 = vrot.slane %v2785, %v2792
        %2795 = vset.pattern.permute.xlu0 0
        %2796 = vperm.xlu0 %2795, %v1944
        %v2797 = vpop.permute.xlu0 %2796
        %v2800 = vunpack.c.l.s4 839922192
        %v2801 = vunpack.c.0.s8 %v2800
        %v2802 = vlaneseq
        %v2803 = vshrl.u32 %v2802, 7
        %v2804 = vsub.s32 %v2801, %v2803
        %v2805 = vrot.slane %v2797, %v2804
        %2807 = vset.pattern.permute.xlu0 0
        %2808 = vperm.xlu0 %2807, %v1945
        %v2809 = vpop.permute.xlu0 %2808
        %v2812 = vunpack.c.l.s4 839922192
        %v2813 = vunpack.c.0.s8 %v2812
        %v2814 = vlaneseq
        %v2815 = vshrl.u32 %v2814, 7
        %v2816 = vsub.s32 %v2813, %v2815
        %v2817 = vrot.slane %v2809, %v2816
        %v2826 = vunpack.c.l.b16 %v2733
        %v2827 = vunpack.c.l.b16 %v2745
        %v2828 = vunpack.c.l.b16 %v2757
        %v2829 = vunpack.c.l.b16 %v2769
        %v2830 = vunpack.c.l.b16 %v2781
        %v2831 = vunpack.c.l.b16 %v2793
        %v2832 = vunpack.c.l.b16 %v2805
        %v2833 = vunpack.c.l.b16 %v2817
        %v2834 = vpack.c.b16 %v2827, %v2826
        %v2835 = vpack.c.b16 %v2829, %v2828
        %v2836 = vpack.c.b16 %v2831, %v2830
        %v2837 = vpack.c.b16 %v2833, %v2832
        %v2842 = vmul.bf16 %v2714, %v2834
        %v2843 = vmul.bf16 %v2715, %v2834
        %v2844 = vmul.bf16 %v2716, %v2835
        %v2845 = vmul.bf16 %v2717, %v2835
        %v2846 = vmul.bf16 %v2718, %v2836
        %v2847 = vmul.bf16 %v2719, %v2836
        %v2848 = vmul.bf16 %v2720, %v2837
        %v2849 = vmul.bf16 %v2721, %v2837
        %v2850 = vlaneseq
        %v2851 = vshrl.u32 %v2850, 7
        %v2852 = vsub.s32 2, %v2851
        %v2853 = vrot.slane %v2332, %v2852
        %v2854 = vlaneseq
        %v2855 = vshrl.u32 %v2854, 7
        %v2856 = vsub.s32 2, %v2855
        %v2857 = vrot.slane %v2339, %v2856
        %v2858 = vmul.bf16 %v2842, %v2853
        %v2859 = vmul.bf16 %v2843, %v2857
        %v2860 = vmul.bf16 %v2844, %v2853
        %v2861 = vmul.bf16 %v2845, %v2857
        %v2862 = vmul.bf16 %v2846, %v2853
        %v2863 = vmul.bf16 %v2847, %v2857
        %v2864 = vmul.bf16 %v2848, %v2853
        %v2865 = vmul.bf16 %v2849, %v2857
        %v2866 = vadd.bf16 %v2706, %v2858
        %v2867 = vadd.bf16 %v2707, %v2859
        %v2868 = vadd.bf16 %v2708, %v2860
        %v2869 = vadd.bf16 %v2709, %v2861
        %v2870 = vadd.bf16 %v2710, %v2862
        %v2871 = vadd.bf16 %v2711, %v2863
        %v2872 = vadd.bf16 %v2712, %v2864
        %v2873 = vadd.bf16 %v2713, %v2865
        %2875 = vset.pattern.permute.xlu0 0
        %2876 = vperm.xlu0 %2875, %v1946
        %v2877 = vpop.permute.xlu0 %2876
        %v2880 = vunpack.c.l.s4 839922192
        %v2881 = vunpack.c.0.s8 %v2880
        %v2882 = vlaneseq
        %v2883 = vshrl.u32 %v2882, 7
        %v2884 = vsub.s32 %v2881, %v2883
        %v2885 = vrot.slane %v2877, %v2884
        %2887 = vset.pattern.permute.xlu0 0
        %2888 = vperm.xlu0 %2887, %v1947
        %v2889 = vpop.permute.xlu0 %2888
        %v2892 = vunpack.c.l.s4 839922192
        %v2893 = vunpack.c.0.s8 %v2892
        %v2894 = vlaneseq
        %v2895 = vshrl.u32 %v2894, 7
        %v2896 = vsub.s32 %v2893, %v2895
        %v2897 = vrot.slane %v2889, %v2896
        %2899 = vset.pattern.permute.xlu0 0
        %2900 = vperm.xlu0 %2899, %v1948
        %v2901 = vpop.permute.xlu0 %2900
        %v2904 = vunpack.c.l.s4 839922192
        %v2905 = vunpack.c.0.s8 %v2904
        %v2906 = vlaneseq
        %v2907 = vshrl.u32 %v2906, 7
        %v2908 = vsub.s32 %v2905, %v2907
        %v2909 = vrot.slane %v2901, %v2908
        %2911 = vset.pattern.permute.xlu0 0
        %2912 = vperm.xlu0 %2911, %v1949
        %v2913 = vpop.permute.xlu0 %2912
        %v2916 = vunpack.c.l.s4 839922192
        %v2917 = vunpack.c.0.s8 %v2916
        %v2918 = vlaneseq
        %v2919 = vshrl.u32 %v2918, 7
        %v2920 = vsub.s32 %v2917, %v2919
        %v2921 = vrot.slane %v2913, %v2920
        %2923 = vset.pattern.permute.xlu0 0
        %2924 = vperm.xlu0 %2923, %v1950
        %v2925 = vpop.permute.xlu0 %2924
        %v2928 = vunpack.c.l.s4 839922192
        %v2929 = vunpack.c.0.s8 %v2928
        %v2930 = vlaneseq
        %v2931 = vshrl.u32 %v2930, 7
        %v2932 = vsub.s32 %v2929, %v2931
        %v2933 = vrot.slane %v2925, %v2932
        %2935 = vset.pattern.permute.xlu0 0
        %2936 = vperm.xlu0 %2935, %v1951
        %v2937 = vpop.permute.xlu0 %2936
        %v2940 = vunpack.c.l.s4 839922192
        %v2941 = vunpack.c.0.s8 %v2940
        %v2942 = vlaneseq
        %v2943 = vshrl.u32 %v2942, 7
        %v2944 = vsub.s32 %v2941, %v2943
        %v2945 = vrot.slane %v2937, %v2944
        %2947 = vset.pattern.permute.xlu0 0
        %2948 = vperm.xlu0 %2947, %v1952
        %v2949 = vpop.permute.xlu0 %2948
        %v2952 = vunpack.c.l.s4 839922192
        %v2953 = vunpack.c.0.s8 %v2952
        %v2954 = vlaneseq
        %v2955 = vshrl.u32 %v2954, 7
        %v2956 = vsub.s32 %v2953, %v2955
        %v2957 = vrot.slane %v2949, %v2956
        %2959 = vset.pattern.permute.xlu0 0
        %2960 = vperm.xlu0 %2959, %v1953
        %v2961 = vpop.permute.xlu0 %2960
        %v2964 = vunpack.c.l.s4 839922192
        %v2965 = vunpack.c.0.s8 %v2964
        %v2966 = vlaneseq
        %v2967 = vshrl.u32 %v2966, 7
        %v2968 = vsub.s32 %v2965, %v2967
        %v2969 = vrot.slane %v2961, %v2968
        %v2978 = vunpack.c.l.b16 %v2885
        %v2979 = vunpack.c.l.b16 %v2897
        %v2980 = vunpack.c.l.b16 %v2909
        %v2981 = vunpack.c.l.b16 %v2921
        %v2982 = vunpack.c.l.b16 %v2933
        %v2983 = vunpack.c.l.b16 %v2945
        %v2984 = vunpack.c.l.b16 %v2957
        %v2985 = vunpack.c.l.b16 %v2969
        %v2986 = vpack.c.b16 %v2979, %v2978
        %v2987 = vpack.c.b16 %v2981, %v2980
        %v2988 = vpack.c.b16 %v2983, %v2982
        %v2989 = vpack.c.b16 %v2985, %v2984
        %v2994 = vmul.bf16 %v2037, %v2986
        %v2995 = vmul.bf16 %v2038, %v2986
        %v2996 = vmul.bf16 %v2039, %v2987
        %v2997 = vmul.bf16 %v2040, %v2987
        %v2998 = vmul.bf16 %v2041, %v2988
        %v2999 = vmul.bf16 %v2042, %v2988
        %v3000 = vmul.bf16 %v2035, %v2989
        %v3001 = vmul.bf16 %v2036, %v2989
        %v3002 = vlaneseq
        %v3003 = vshrl.u32 %v3002, 7
        %v3004 = vsub.s32 3, %v3003
        %v3005 = vrot.slane %v1979, %v3004
        %v3006 = vlaneseq
        %v3007 = vshrl.u32 %v3006, 7
        %v3008 = vsub.s32 3, %v3007
        %v3009 = vrot.slane %v1986, %v3008
        %v3010 = vmul.bf16 %v2994, %v3005
        %v3011 = vmul.bf16 %v2995, %v3009
        %v3012 = vmul.bf16 %v2996, %v3005
        %v3013 = vmul.bf16 %v2997, %v3009
        %v3014 = vmul.bf16 %v2998, %v3005
        %v3015 = vmul.bf16 %v2999, %v3009
        %v3016 = vmul.bf16 %v3000, %v3005
        %v3017 = vmul.bf16 %v3001, %v3009
        %v3018 = vadd.bf16 %v2866, %v3010
        %v3019 = vadd.bf16 %v2867, %v3011
        %v3020 = vadd.bf16 %v2868, %v3012
        %v3021 = vadd.bf16 %v2869, %v3013
        %v3022 = vadd.bf16 %v2870, %v3014
        %v3023 = vadd.bf16 %v2871, %v3015
        %v3024 = vadd.bf16 %v2872, %v3016
        %v3025 = vadd.bf16 %v2873, %v3017
        %3027 = vset.pattern.permute.xlu0 0
        %3028 = vperm.xlu0 %3027, %v1954
        %v3029 = vpop.permute.xlu0 %3028
        %v3032 = vunpack.c.l.s4 839922192
        %v3033 = vunpack.c.0.s8 %v3032
        %v3034 = vlaneseq
        %v3035 = vshrl.u32 %v3034, 7
        %v3036 = vsub.s32 %v3033, %v3035
        %v3037 = vrot.slane %v3029, %v3036
        %3039 = vset.pattern.permute.xlu0 0
        %3040 = vperm.xlu0 %3039, %v1955
        %v3041 = vpop.permute.xlu0 %3040
        %v3044 = vunpack.c.l.s4 839922192
        %v3045 = vunpack.c.0.s8 %v3044
        %v3046 = vlaneseq
        %v3047 = vshrl.u32 %v3046, 7
        %v3048 = vsub.s32 %v3045, %v3047
        %v3049 = vrot.slane %v3041, %v3048
        %3051 = vset.pattern.permute.xlu0 0
        %3052 = vperm.xlu0 %3051, %v1956
        %v3053 = vpop.permute.xlu0 %3052
        %v3056 = vunpack.c.l.s4 839922192
        %v3057 = vunpack.c.0.s8 %v3056
        %v3058 = vlaneseq
        %v3059 = vshrl.u32 %v3058, 7
        %v3060 = vsub.s32 %v3057, %v3059
        %v3061 = vrot.slane %v3053, %v3060
        %3063 = vset.pattern.permute.xlu0 0
        %3064 = vperm.xlu0 %3063, %v1957
        %v3065 = vpop.permute.xlu0 %3064
        %v3068 = vunpack.c.l.s4 839922192
        %v3069 = vunpack.c.0.s8 %v3068
        %v3070 = vlaneseq
        %v3071 = vshrl.u32 %v3070, 7
        %v3072 = vsub.s32 %v3069, %v3071
        %v3073 = vrot.slane %v3065, %v3072
        %3075 = vset.pattern.permute.xlu0 0
        %3076 = vperm.xlu0 %3075, %v1958
        %v3077 = vpop.permute.xlu0 %3076
        %v3080 = vunpack.c.l.s4 839922192
        %v3081 = vunpack.c.0.s8 %v3080
        %v3082 = vlaneseq
        %v3083 = vshrl.u32 %v3082, 7
        %v3084 = vsub.s32 %v3081, %v3083
        %v3085 = vrot.slane %v3077, %v3084
        %3087 = vset.pattern.permute.xlu0 0
        %3088 = vperm.xlu0 %3087, %v1959
        %v3089 = vpop.permute.xlu0 %3088
        %v3092 = vunpack.c.l.s4 839922192
        %v3093 = vunpack.c.0.s8 %v3092
        %v3094 = vlaneseq
        %v3095 = vshrl.u32 %v3094, 7
        %v3096 = vsub.s32 %v3093, %v3095
        %v3097 = vrot.slane %v3089, %v3096
        %3099 = vset.pattern.permute.xlu0 0
        %3100 = vperm.xlu0 %3099, %v1960
        %v3101 = vpop.permute.xlu0 %3100
        %v3104 = vunpack.c.l.s4 839922192
        %v3105 = vunpack.c.0.s8 %v3104
        %v3106 = vlaneseq
        %v3107 = vshrl.u32 %v3106, 7
        %v3108 = vsub.s32 %v3105, %v3107
        %v3109 = vrot.slane %v3101, %v3108
        %3111 = vset.pattern.permute.xlu0 0
        %3112 = vperm.xlu0 %3111, %v1961
        %v3113 = vpop.permute.xlu0 %3112
        %v3116 = vunpack.c.l.s4 839922192
        %v3117 = vunpack.c.0.s8 %v3116
        %v3118 = vlaneseq
        %v3119 = vshrl.u32 %v3118, 7
        %v3120 = vsub.s32 %v3117, %v3119
        %v3121 = vrot.slane %v3113, %v3120
        %v3130 = vunpack.c.l.b16 %v3037
        %v3131 = vunpack.c.l.b16 %v3049
        %v3132 = vunpack.c.l.b16 %v3061
        %v3133 = vunpack.c.l.b16 %v3073
        %v3134 = vunpack.c.l.b16 %v3085
        %v3135 = vunpack.c.l.b16 %v3097
        %v3136 = vunpack.c.l.b16 %v3109
        %v3137 = vunpack.c.l.b16 %v3121
        %v3138 = vpack.c.b16 %v3131, %v3130
        %v3139 = vpack.c.b16 %v3133, %v3132
        %v3140 = vpack.c.b16 %v3135, %v3134
        %v3141 = vpack.c.b16 %v3137, %v3136
        %v3146 = vmul.bf16 %v2197, %v3138
        %v3147 = vmul.bf16 %v2198, %v3138
        %v3148 = vmul.bf16 %v2199, %v3139
        %v3149 = vmul.bf16 %v2200, %v3139
        %v3150 = vmul.bf16 %v2201, %v3140
        %v3151 = vmul.bf16 %v2202, %v3140
        %v3152 = vmul.bf16 %v2195, %v3141
        %v3153 = vmul.bf16 %v2196, %v3141
        %v3154 = vlaneseq
        %v3155 = vshrl.u32 %v3154, 7
        %v3156 = vsub.s32 3, %v3155
        %v3157 = vrot.slane %v2332, %v3156
        %v3158 = vlaneseq
        %v3159 = vshrl.u32 %v3158, 7
        %v3160 = vsub.s32 3, %v3159
        %v3161 = vrot.slane %v2339, %v3160
        %v3162 = vmul.bf16 %v3146, %v3157
        %v3163 = vmul.bf16 %v3147, %v3161
        %v3164 = vmul.bf16 %v3148, %v3157
        %v3165 = vmul.bf16 %v3149, %v3161
        %v3166 = vmul.bf16 %v3150, %v3157
        %v3167 = vmul.bf16 %v3151, %v3161
        %v3168 = vmul.bf16 %v3152, %v3157
        %v3169 = vmul.bf16 %v3153, %v3161
        %v3170 = vadd.bf16 %v3018, %v3162
        %v3171 = vadd.bf16 %v3019, %v3163
        %v3172 = vadd.bf16 %v3020, %v3164
        %v3173 = vadd.bf16 %v3021, %v3165
        %v3174 = vadd.bf16 %v3022, %v3166
        %v3175 = vadd.bf16 %v3023, %v3167
        %v3176 = vadd.bf16 %v3024, %v3168
        %v3177 = vadd.bf16 %v3025, %v3169
        %3179 = vset.pattern.permute.xlu0 0
        %3180 = vperm.xlu0 %3179, %v1962
        %v3181 = vpop.permute.xlu0 %3180
        %v3184 = vunpack.c.l.s4 839922192
        %v3185 = vunpack.c.0.s8 %v3184
        %v3186 = vlaneseq
        %v3187 = vshrl.u32 %v3186, 7
        %v3188 = vsub.s32 %v3185, %v3187
        %v3189 = vrot.slane %v3181, %v3188
        %3191 = vset.pattern.permute.xlu0 0
        %3192 = vperm.xlu0 %3191, %v1963
        %v3193 = vpop.permute.xlu0 %3192
        %v3196 = vunpack.c.l.s4 839922192
        %v3197 = vunpack.c.0.s8 %v3196
        %v3198 = vlaneseq
        %v3199 = vshrl.u32 %v3198, 7
        %v3200 = vsub.s32 %v3197, %v3199
        %v3201 = vrot.slane %v3193, %v3200
        %3203 = vset.pattern.permute.xlu0 0
        %3204 = vperm.xlu0 %3203, %v1964
        %v3205 = vpop.permute.xlu0 %3204
        %v3208 = vunpack.c.l.s4 839922192
        %v3209 = vunpack.c.0.s8 %v3208
        %v3210 = vlaneseq
        %v3211 = vshrl.u32 %v3210, 7
        %v3212 = vsub.s32 %v3209, %v3211
        %v3213 = vrot.slane %v3205, %v3212
        %3215 = vset.pattern.permute.xlu0 0
        %3216 = vperm.xlu0 %3215, %v1965
        %v3217 = vpop.permute.xlu0 %3216
        %v3220 = vunpack.c.l.s4 839922192
        %v3221 = vunpack.c.0.s8 %v3220
        %v3222 = vlaneseq
        %v3223 = vshrl.u32 %v3222, 7
        %v3224 = vsub.s32 %v3221, %v3223
        %v3225 = vrot.slane %v3217, %v3224
        %3227 = vset.pattern.permute.xlu0 0
        %3228 = vperm.xlu0 %3227, %v1966
        %v3229 = vpop.permute.xlu0 %3228
        %v3232 = vunpack.c.l.s4 839922192
        %v3233 = vunpack.c.0.s8 %v3232
        %v3234 = vlaneseq
        %v3235 = vshrl.u32 %v3234, 7
        %v3236 = vsub.s32 %v3233, %v3235
        %v3237 = vrot.slane %v3229, %v3236
        %3239 = vset.pattern.permute.xlu0 0
        %3240 = vperm.xlu0 %3239, %v1967
        %v3241 = vpop.permute.xlu0 %3240
        %v3244 = vunpack.c.l.s4 839922192
        %v3245 = vunpack.c.0.s8 %v3244
        %v3246 = vlaneseq
        %v3247 = vshrl.u32 %v3246, 7
        %v3248 = vsub.s32 %v3245, %v3247
        %v3249 = vrot.slane %v3241, %v3248
        %3251 = vset.pattern.permute.xlu0 0
        %3252 = vperm.xlu0 %3251, %v1968
        %v3253 = vpop.permute.xlu0 %3252
        %v3256 = vunpack.c.l.s4 839922192
        %v3257 = vunpack.c.0.s8 %v3256
        %v3258 = vlaneseq
        %v3259 = vshrl.u32 %v3258, 7
        %v3260 = vsub.s32 %v3257, %v3259
        %v3261 = vrot.slane %v3253, %v3260
        %3263 = vset.pattern.permute.xlu0 0
        %3264 = vperm.xlu0 %3263, %v1969
        %v3265 = vpop.permute.xlu0 %3264
        %v3268 = vunpack.c.l.s4 839922192
        %v3269 = vunpack.c.0.s8 %v3268
        %v3270 = vlaneseq
        %v3271 = vshrl.u32 %v3270, 7
        %v3272 = vsub.s32 %v3269, %v3271
        %v3273 = vrot.slane %v3265, %v3272
        %v3282 = vunpack.c.l.b16 %v3189
        %v3283 = vunpack.c.l.b16 %v3201
        %v3284 = vunpack.c.l.b16 %v3213
        %v3285 = vunpack.c.l.b16 %v3225
        %v3286 = vunpack.c.l.b16 %v3237
        %v3287 = vunpack.c.l.b16 %v3249
        %v3288 = vunpack.c.l.b16 %v3261
        %v3289 = vunpack.c.l.b16 %v3273
        %v3290 = vpack.c.b16 %v3283, %v3282
        %v3291 = vpack.c.b16 %v3285, %v3284
        %v3292 = vpack.c.b16 %v3287, %v3286
        %v3293 = vpack.c.b16 %v3289, %v3288
        %v3298 = vmul.bf16 %v2396, %v3290
        %v3299 = vmul.bf16 %v2397, %v3290
        %v3300 = vmul.bf16 %v2398, %v3291
        %v3301 = vmul.bf16 %v2399, %v3291
        %v3302 = vmul.bf16 %v2400, %v3292
        %v3303 = vmul.bf16 %v2401, %v3292
        %v3304 = vmul.bf16 %v2394, %v3293
        %v3305 = vmul.bf16 %v2395, %v3293
        %v3306 = vlaneseq
        %v3307 = vshrl.u32 %v3306, 7
        %v3308 = vsub.s32 4, %v3307
        %v3309 = vrot.slane %v1979, %v3308
        %v3310 = vlaneseq
        %v3311 = vshrl.u32 %v3310, 7
        %v3312 = vsub.s32 4, %v3311
        %v3313 = vrot.slane %v1986, %v3312
        %v3314 = vmul.bf16 %v3298, %v3309
        %v3315 = vmul.bf16 %v3299, %v3313
        %v3316 = vmul.bf16 %v3300, %v3309
        %v3317 = vmul.bf16 %v3301, %v3313
        %v3318 = vmul.bf16 %v3302, %v3309
        %v3319 = vmul.bf16 %v3303, %v3313
        %v3320 = vmul.bf16 %v3304, %v3309
        %v3321 = vmul.bf16 %v3305, %v3313
        %v3322 = vadd.bf16 %v3170, %v3314
        %v3323 = vadd.bf16 %v3171, %v3315
        %v3324 = vadd.bf16 %v3172, %v3316
        %v3325 = vadd.bf16 %v3173, %v3317
        %v3326 = vadd.bf16 %v3174, %v3318
        %v3327 = vadd.bf16 %v3175, %v3319
        %v3328 = vadd.bf16 %v3176, %v3320
        %v3329 = vadd.bf16 %v3177, %v3321
        %v3330 = vunpack.c.l.bf16 %v3322
        %v3331 = vunpack.c.l.bf16 %v3323
        %v3332 = vunpack.c.h.bf16 %v3322
        %v3333 = vunpack.c.h.bf16 %v3323
        %v3334 = vunpack.c.l.bf16 %v3324
        %v3335 = vunpack.c.l.bf16 %v3325
        %v3336 = vunpack.c.h.bf16 %v3324
        %v3337 = vunpack.c.h.bf16 %v3325
        %v3338 = vunpack.c.l.bf16 %v3326
        %v3339 = vunpack.c.l.bf16 %v3327
        %v3340 = vunpack.c.h.bf16 %v3326
        %v3341 = vunpack.c.h.bf16 %v3327
        %v3342 = vunpack.c.l.bf16 %v3328
        %v3343 = vunpack.c.l.bf16 %v3329
        %v3344 = vunpack.c.h.bf16 %v3328
        %v3345 = vunpack.c.h.bf16 %v3329
        %v3346 = vld [vmem:[%s13] sm:$0x3]
        %v3348 = vlaneseq
        %v3349 = vshrl.u32 %v3348, 7
        %v3350 = vsub.s32 0, %v3349
        %v3351 = vrot.slane %v3346, %v3350
        %v3352 = vlaneseq
        %v3353 = vshrl.u32 %v3352, 7
        %v3354 = vsub.s32 1, %v3353
        %v3355 = vrot.slane %v3346, %v3354
        %v3358 = vadd.f32 %v3330, %v3351
        %v3359 = vadd.f32 %v3331, %v3355
        %v3360 = vadd.f32 %v3332, %v3351
        %v3361 = vadd.f32 %v3333, %v3355
        %v3362 = vadd.f32 %v3334, %v3351
        %v3363 = vadd.f32 %v3335, %v3355
        %v3364 = vadd.f32 %v3336, %v3351
        %v3365 = vadd.f32 %v3337, %v3355
        %v3366 = vadd.f32 %v3338, %v3351
        %v3367 = vadd.f32 %v3339, %v3355
        %v3368 = vadd.f32 %v3340, %v3351
        %v3369 = vadd.f32 %v3341, %v3355
        %v3370 = vadd.f32 %v3342, %v3351
        %v3371 = vadd.f32 %v3343, %v3355
        %v3372 = vadd.f32 %v3344, %v3351
        %v3373 = vadd.f32 %v3345, %v3355
        %v3374 = vmul.f32 %v3358, %v3358
        %v3375 = vmul.f32 %v3359, %v3359
        %v3376 = vmul.f32 %v3360, %v3360
        %v3377 = vmul.f32 %v3361, %v3361
        %v3378 = vmul.f32 %v3362, %v3362
        %v3379 = vmul.f32 %v3363, %v3363
        %v3380 = vmul.f32 %v3364, %v3364
        %v3381 = vmul.f32 %v3365, %v3365
        %v3382 = vmul.f32 %v3366, %v3366
        %v3383 = vmul.f32 %v3367, %v3367
        %v3384 = vmul.f32 %v3368, %v3368
        %v3385 = vmul.f32 %v3369, %v3369
        %v3386 = vmul.f32 %v3370, %v3370
        %v3387 = vmul.f32 %v3371, %v3371
        %v3388 = vmul.f32 %v3372, %v3372
        %v3389 = vmul.f32 %v3373, %v3373
        %v3390 = vmul.f32 %v3358, %v3374
        %v3391 = vmul.f32 %v3359, %v3375
        %v3392 = vmul.f32 %v3360, %v3376
        %v3393 = vmul.f32 %v3361, %v3377
        %v3394 = vmul.f32 %v3362, %v3378
        %v3395 = vmul.f32 %v3363, %v3379
        %v3396 = vmul.f32 %v3364, %v3380
        %v3397 = vmul.f32 %v3365, %v3381
        %v3398 = vmul.f32 %v3366, %v3382
        %v3399 = vmul.f32 %v3367, %v3383
        %v3400 = vmul.f32 %v3368, %v3384
        %v3401 = vmul.f32 %v3369, %v3385
        %v3402 = vmul.f32 %v3370, %v3386
        %v3403 = vmul.f32 %v3371, %v3387
        %v3404 = vmul.f32 %v3372, %v3388
        %v3405 = vmul.f32 %v3373, %v3389
        %v3406 = vmul.f32 %v3390, 0.044715
        %v3407 = vmul.f32 %v3391, 0.044715
        %v3408 = vmul.f32 %v3392, 0.044715
        %v3409 = vmul.f32 %v3393, 0.044715
        %v3410 = vmul.f32 %v3394, 0.044715
        %v3411 = vmul.f32 %v3395, 0.044715
        %v3412 = vmul.f32 %v3396, 0.044715
        %v3413 = vmul.f32 %v3397, 0.044715
        %v3414 = vmul.f32 %v3398, 0.044715
        %v3415 = vmul.f32 %v3399, 0.044715
        %v3416 = vmul.f32 %v3400, 0.044715
        %v3417 = vmul.f32 %v3401, 0.044715
        %v3418 = vmul.f32 %v3402, 0.044715
        %v3419 = vmul.f32 %v3403, 0.044715
        %v3420 = vmul.f32 %v3404, 0.044715
        %v3421 = vmul.f32 %v3405, 0.044715
        %v3422 = vadd.f32 %v3358, %v3406
        %v3423 = vadd.f32 %v3359, %v3407
        %v3424 = vadd.f32 %v3360, %v3408
        %v3425 = vadd.f32 %v3361, %v3409
        %v3426 = vadd.f32 %v3362, %v3410
        %v3427 = vadd.f32 %v3363, %v3411
        %v3428 = vadd.f32 %v3364, %v3412
        %v3429 = vadd.f32 %v3365, %v3413
        %v3430 = vadd.f32 %v3366, %v3414
        %v3431 = vadd.f32 %v3367, %v3415
        %v3432 = vadd.f32 %v3368, %v3416
        %v3433 = vadd.f32 %v3369, %v3417
        %v3434 = vadd.f32 %v3370, %v3418
        %v3435 = vadd.f32 %v3371, %v3419
        %v3436 = vadd.f32 %v3372, %v3420
        %v3437 = vadd.f32 %v3373, %v3421
        %v3438 = vmul.f32 %v3422, 0.7978846
        %v3439 = vmul.f32 %v3423, 0.7978846
        %v3440 = vmul.f32 %v3424, 0.7978846
        %v3441 = vmul.f32 %v3425, 0.7978846
        %v3442 = vmul.f32 %v3426, 0.7978846
        %v3443 = vmul.f32 %v3427, 0.7978846
        %v3444 = vmul.f32 %v3428, 0.7978846
        %v3445 = vmul.f32 %v3429, 0.7978846
        %v3446 = vmul.f32 %v3430, 0.7978846
        %v3447 = vmul.f32 %v3431, 0.7978846
        %v3448 = vmul.f32 %v3432, 0.7978846
        %v3449 = vmul.f32 %v3433, 0.7978846
        %v3450 = vmul.f32 %v3434, 0.7978846
        %v3451 = vmul.f32 %v3435, 0.7978846
        %v3452 = vmul.f32 %v3436, 0.7978846
        %v3453 = vmul.f32 %v3437, 0.7978846
        %v3454 = vtanh.pop %v3438
        %v3455 = vtanh.pop %v3439
        %v3456 = vtanh.pop %v3440
        %v3457 = vtanh.pop %v3441
        %v3458 = vtanh.pop %v3442
        %v3459 = vtanh.pop %v3443
        %v3460 = vtanh.pop %v3444
        %v3461 = vtanh.pop %v3445
        %v3462 = vtanh.pop %v3446
        %v3463 = vtanh.pop %v3447
        %v3464 = vtanh.pop %v3448
        %v3465 = vtanh.pop %v3449
        %v3466 = vtanh.pop %v3450
        %v3467 = vtanh.pop %v3451
        %v3468 = vtanh.pop %v3452
        %v3469 = vtanh.pop %v3453
        %v3470 = vadd.f32 %v3454, 1.0
        %v3471 = vadd.f32 %v3455, 1.0
        %v3472 = vadd.f32 %v3456, 1.0
        %v3473 = vadd.f32 %v3457, 1.0
        %v3474 = vadd.f32 %v3458, 1.0
        %v3475 = vadd.f32 %v3459, 1.0
        %v3476 = vadd.f32 %v3460, 1.0
        %v3477 = vadd.f32 %v3461, 1.0
        %v3478 = vadd.f32 %v3462, 1.0
        %v3479 = vadd.f32 %v3463, 1.0
        %v3480 = vadd.f32 %v3464, 1.0
        %v3481 = vadd.f32 %v3465, 1.0
        %v3482 = vadd.f32 %v3466, 1.0
        %v3483 = vadd.f32 %v3467, 1.0
        %v3484 = vadd.f32 %v3468, 1.0
        %v3485 = vadd.f32 %v3469, 1.0
        %v3486 = vmul.f32 %v3470, 0.5
        %v3487 = vmul.f32 %v3471, 0.5
        %v3488 = vmul.f32 %v3472, 0.5
        %v3489 = vmul.f32 %v3473, 0.5
        %v3490 = vmul.f32 %v3474, 0.5
        %v3491 = vmul.f32 %v3475, 0.5
        %v3492 = vmul.f32 %v3476, 0.5
        %v3493 = vmul.f32 %v3477, 0.5
        %v3494 = vmul.f32 %v3478, 0.5
        %v3495 = vmul.f32 %v3479, 0.5
        %v3496 = vmul.f32 %v3480, 0.5
        %v3497 = vmul.f32 %v3481, 0.5
        %v3498 = vmul.f32 %v3482, 0.5
        %v3499 = vmul.f32 %v3483, 0.5
        %v3500 = vmul.f32 %v3484, 0.5
        %v3501 = vmul.f32 %v3485, 0.5
        %v3502 = vmul.f32 %v3358, %v3486
        %v3503 = vmul.f32 %v3359, %v3487
        %v3504 = vmul.f32 %v3360, %v3488
        %v3505 = vmul.f32 %v3361, %v3489
        %v3506 = vmul.f32 %v3362, %v3490
        %v3507 = vmul.f32 %v3363, %v3491
        %v3508 = vmul.f32 %v3364, %v3492
        %v3509 = vmul.f32 %v3365, %v3493
        %v3510 = vmul.f32 %v3366, %v3494
        %v3511 = vmul.f32 %v3367, %v3495
        %v3512 = vmul.f32 %v3368, %v3496
        %v3513 = vmul.f32 %v3369, %v3497
        %v3514 = vmul.f32 %v3370, %v3498
        %v3515 = vmul.f32 %v3371, %v3499
        %v3516 = vmul.f32 %v3372, %v3500
        %v3517 = vmul.f32 %v3373, %v3501
        %v3518 = vld [vmem:[#allocation16] sm:$0xf]
        %v3519 = vld [vmem:[#allocation16 + $0x4] sm:$0xf]
        %v3520 = vld [vmem:[#allocation16 + $0x8] sm:$0xf]
        %v3521 = vld [vmem:[#allocation16 + $0xc] sm:$0xf]
        %v3522 = vld [vmem:[#allocation16 + $0x10] sm:$0xf]
        %v3523 = vld [vmem:[#allocation16 + $0x14] sm:$0xf]
        %v3524 = vld [vmem:[#allocation16 + $0x18] sm:$0xf]
        %v3525 = vld [vmem:[#allocation16 + $0x1c] sm:$0xf]
        %v3526 = vld [vmem:[#allocation16 + $0x20] sm:$0xf]
        %v3527 = vld [vmem:[#allocation16 + $0x24] sm:$0xf]
        %v3528 = vld [vmem:[#allocation16 + $0x28] sm:$0xf]
        %v3529 = vld [vmem:[#allocation16 + $0x2c] sm:$0xf]
        %v3530 = vld [vmem:[#allocation16 + $0x30] sm:$0xf]
        %v3531 = vld [vmem:[#allocation16 + $0x34] sm:$0xf]
        %v3532 = vld [vmem:[#allocation16 + $0x38] sm:$0xf]
        %v3533 = vld [vmem:[#allocation16 + $0x3c] sm:$0xf]
        %v3534 = vld [vmem:[#allocation16 + $0x40] sm:$0xf]
        %v3535 = vld [vmem:[#allocation16 + $0x44] sm:$0xf]
        %v3536 = vld [vmem:[#allocation16 + $0x48] sm:$0xf]
        %v3537 = vld [vmem:[#allocation16 + $0x4c] sm:$0xf]
        %v3538 = vld [vmem:[#allocation16 + $0x50] sm:$0xf]
        %v3539 = vld [vmem:[#allocation16 + $0x54] sm:$0xf]
        %v3540 = vld [vmem:[#allocation16 + $0x58] sm:$0xf]
        %v3541 = vld [vmem:[#allocation16 + $0x5c] sm:$0xf]
        %v3542 = vld [vmem:[#allocation16 + $0x60] sm:$0xf]
        %v3543 = vld [vmem:[#allocation16 + $0x64] sm:$0xf]
        %v3544 = vld [vmem:[#allocation16 + $0x68] sm:$0xf]
        %v3545 = vld [vmem:[#allocation16 + $0x6c] sm:$0xf]
        %v3546 = vld [vmem:[#allocation16 + $0x70] sm:$0xf]
        %v3547 = vld [vmem:[#allocation16 + $0x74] sm:$0xf]
        %v3548 = vld [vmem:[#allocation16 + $0x78] sm:$0xf]
        %v3549 = vld [vmem:[#allocation16 + $0x7c] sm:$0xf]
        %v3550 = vpack.c.bf16 %v3504, %v3502
        %v3551 = vpack.c.bf16 %v3505, %v3503
        %v3552 = vpack.c.bf16 %v3508, %v3506
        %v3553 = vpack.c.bf16 %v3509, %v3507
        %v3554 = vpack.c.bf16 %v3512, %v3510
        %v3555 = vpack.c.bf16 %v3513, %v3511
        %v3556 = vpack.c.bf16 %v3516, %v3514
        %v3557 = vpack.c.bf16 %v3517, %v3515
        %v3558 = vld [vmem:[%s15] sm:$0x1]
        %v3560 = vlaneseq
        %v3561 = vshrl.u32 %v3560, 7
        %v3562 = vsub.s32 0, %v3561
        %v3563 = vrot.slane %v3558, %v3562
        %v3597 = vunpack.c.l.b16 %v3518
        %v3598 = vunpack.c.l.b16 %v3519
        %v3599 = vunpack.c.l.b16 %v3520
        %v3600 = vunpack.c.l.b16 %v3521
        %v3601 = vunpack.c.l.b16 %v3522
        %v3602 = vunpack.c.l.b16 %v3523
        %v3603 = vunpack.c.l.b16 %v3524
        %v3604 = vunpack.c.l.b16 %v3525
        %v3605 = vunpack.c.l.b16 %v3526
        %v3606 = vunpack.c.l.b16 %v3527
        %v3607 = vunpack.c.l.b16 %v3528
        %v3608 = vunpack.c.l.b16 %v3529
        %v3609 = vunpack.c.l.b16 %v3530
        %v3610 = vunpack.c.l.b16 %v3531
        %v3611 = vunpack.c.l.b16 %v3532
        %v3612 = vunpack.c.l.b16 %v3533
        %v3613 = vunpack.c.l.b16 %v3534
        %v3614 = vunpack.c.l.b16 %v3535
        %v3615 = vunpack.c.l.b16 %v3536
        %v3616 = vunpack.c.l.b16 %v3537
        %v3617 = vunpack.c.l.b16 %v3538
        %v3618 = vunpack.c.l.b16 %v3539
        %v3619 = vunpack.c.l.b16 %v3540
        %v3620 = vunpack.c.l.b16 %v3541
        %v3621 = vunpack.c.l.b16 %v3542
        %v3622 = vunpack.c.l.b16 %v3543
        %v3623 = vunpack.c.l.b16 %v3544
        %v3624 = vunpack.c.l.b16 %v3545
        %v3625 = vunpack.c.l.b16 %v3546
        %v3626 = vunpack.c.l.b16 %v3547
        %v3627 = vunpack.c.l.b16 %v3548
        %v3628 = vunpack.c.l.b16 %v3549
        %v3629 = vpack.c.b16 %v3598, %v3597
        %v3630 = vpack.c.b16 %v3600, %v3599
        %v3631 = vpack.c.b16 %v3602, %v3601
        %v3632 = vpack.c.b16 %v3604, %v3603
        %v3633 = vpack.c.b16 %v3606, %v3605
        %v3634 = vpack.c.b16 %v3608, %v3607
        %v3635 = vpack.c.b16 %v3610, %v3609
        %v3636 = vpack.c.b16 %v3612, %v3611
        %v3637 = vpack.c.b16 %v3614, %v3613
        %v3638 = vpack.c.b16 %v3616, %v3615
        %v3639 = vpack.c.b16 %v3618, %v3617
        %v3640 = vpack.c.b16 %v3620, %v3619
        %v3641 = vpack.c.b16 %v3622, %v3621
        %v3642 = vpack.c.b16 %v3624, %v3623
        %v3643 = vpack.c.b16 %v3626, %v3625
        %v3644 = vpack.c.b16 %v3628, %v3627
        %3661 = vmatprep.subr.bf16.mxu0 0
        %3662 = vmatpush1.bf16.msra.mxu0 %v3629
        %3663 = vmatprep.subr.bf16.mxu0 0
        %3664 = vmatpush1.bf16.msra.mxu0 %v3630
        %3665 = vmatprep.subr.bf16.mxu0 0
        %3666 = vmatpush1.bf16.msra.mxu0 %v3631
        %3667 = vmatprep.subr.bf16.mxu0 0
        %3668 = vmatpush1.bf16.msra.mxu0 %v3632
        %3669 = vmatprep.subr.bf16.mxu0 0
        %3670 = vmatpush1.bf16.msra.mxu0 %v3633
        %3671 = vmatprep.subr.bf16.mxu0 0
        %3672 = vmatpush1.bf16.msra.mxu0 %v3634
        %3673 = vmatprep.subr.bf16.mxu0 0
        %3674 = vmatpush1.bf16.msra.mxu0 %v3635
        %3675 = vmatprep.subr.bf16.mxu0 0
        %3676 = vmatpush1.bf16.msra.mxu0 %v3636
        %3677 = vmatprep.subr.bf16.mxu0 0
        %3678 = vmatpush1.bf16.msra.mxu0 %v3637
        %3679 = vmatprep.subr.bf16.mxu0 0
        %3680 = vmatpush1.bf16.msra.mxu0 %v3638
        %3681 = vmatprep.subr.bf16.mxu0 0
        %3682 = vmatpush1.bf16.msra.mxu0 %v3639
        %3683 = vmatprep.subr.bf16.mxu0 0
        %3684 = vmatpush1.bf16.msra.mxu0 %v3640
        %3685 = vmatprep.subr.bf16.mxu0 0
        %3686 = vmatpush1.bf16.msra.mxu0 %v3641
        %3687 = vmatprep.subr.bf16.mxu0 0
        %3688 = vmatpush1.bf16.msra.mxu0 %v3642
        %3689 = vmatprep.subr.bf16.mxu0 0
        %3690 = vmatpush1.bf16.msra.mxu0 %v3643
        %3691 = vmatprep.subr.bf16.mxu0 0
        %3692 = vmatpush1.bf16.msra.mxu0 %v3644
        %3693 = vmatprep.mubr.bf16.mxu0 %v3551
        %3694 = vmatmul.mubr.bf16.gmra.mrb[0].mxu0 %v3550
        %v3695 = vpop.f32.mrb[0].mxu0
        %v3696 = vadd.f32 %v3563, %v3695
        %v3697 = vpop.f32.mrb[0].mxu0
        %v3698 = vpop.f32.mrb[0].mxu0
        %v3699 = vadd.f32 %v3563, %v3698
        %v3700 = vpop.f32.mrb[0].mxu0
        %3701 = vmatprep.mubr.bf16.mxu0 %v3553
        %3702 = vmatmul.mubr.bf16.gmra.mrb[0].mxu0 %v3552
        %v3703 = vpop.f32.mrb[0].mxu0
        %v3704 = vadd.f32 %v3563, %v3703
        %v3705 = vpop.f32.mrb[0].mxu0
        %v3706 = vpop.f32.mrb[0].mxu0
        %v3707 = vadd.f32 %v3563, %v3706
        %v3708 = vpop.f32.mrb[0].mxu0
        %3709 = vmatprep.mubr.bf16.mxu0 %v3555
        %3710 = vmatmul.mubr.bf16.gmra.mrb[0].mxu0 %v3554
        %v3711 = vpop.f32.mrb[0].mxu0
        %v3712 = vadd.f32 %v3563, %v3711
        %v3713 = vpop.f32.mrb[0].mxu0
        %v3714 = vpop.f32.mrb[0].mxu0
        %v3715 = vadd.f32 %v3563, %v3714
        %v3716 = vpop.f32.mrb[0].mxu0
        %3717 = vmatprep.mubr.bf16.mxu0 %v3557
        %3718 = vmatmul.mubr.bf16.gmra.mrb[0].mxu0 %v3556
        %v3719 = vpop.f32.mrb[0].mxu0
        %v3720 = vadd.f32 %v3563, %v3719
        %v3721 = vpop.f32.mrb[0].mxu0
        %v3722 = vpop.f32.mrb[0].mxu0
        %v3723 = vadd.f32 %v3563, %v3722
        %v3724 = vpop.f32.mrb[0].mxu0
        %3725 = vdwg.mxu0
        %v3726 = vadd.f32 %v1589, %v3696
        %v3727 = vadd.f32 %v1590, %v3699
        %v3728 = vadd.f32 %v1591, %v3704
        %v3729 = vadd.f32 %v1592, %v3707
        %v3730 = vadd.f32 %v1593, %v3712
        %v3731 = vadd.f32 %v1594, %v3715
        %v3732 = vadd.f32 %v1595, %v3720
        %v3733 = vadd.f32 %v1596, %v3723
        %3734 = vst [vmem:[%s673] sm:$0xff] %v3726
        %3735 = vst [vmem:[%s673 + $0x8] sm:$0xff] %v3727
        %3736 = vst [vmem:[%s673 + $0x10] sm:$0xff] %v3728
        %3737 = vst [vmem:[%s673 + $0x18] sm:$0xff] %v3729
        %3738 = vst [vmem:[%s673 + $0x20] sm:$0xff] %v3730
        %3739 = vst [vmem:[%s673 + $0x28] sm:$0xff] %v3731
        %3740 = vst [vmem:[%s673 + $0x30] sm:$0xff] %v3732
        %3741 = vst [vmem:[%s673 + $0x38] sm:$0xff] %v3733
        %s3742 = sand.u32 %s411, 1
        %s3743 = scalar_lea.sflag [#allocation4], %s3742
        %s3744 = sand.u32 %s411, 1
        %s3745 = smul.addr %s3744, 64
        %s3746 = scalar_lea.vmem [#allocation17], %s3745
        // Predicated region
        $region125: #{tpu_custom_call.1} parent=87 // pred_check
          %p3747 = pneg %p421
        $region126: #{tpu_custom_call.1} parent=87 // pred_check_branch
          %3749 = sbr.rel (%p3747) target = $region128
        $region127: #{tpu_custom_call.1} parent=87 // pred_region
          %s3751 = ssub.s32 1024, 1024
          %3752 = vsyncadd %s3743, %s3751
          %s3753 = smul.addr %s36, 8
          %s3754 = smul.addr %s3753, 128
          %s3755 = scalar_lea.hbm %s17, %s3754
          %s3756 = sshll.u32 %s3746, 4
          %s3757 = int_to_ptr.vmem [resolvable:$true] %s3756
          %3762 = dma.vmem_to_hbm [thread:$0]  %s3757, 1024, %s3755, %s3743, 128, 128, 8
        $region128: #{tpu_custom_call.1} parent=87 // pred_fallthru
          _
      $region88: #{tpu_custom_call.1} parent=5 // pred_fallthru
        _
      %p3763 = scmp.le.s32.totalorder 2, %s31
      // Predicated region
      $region129: #{tpu_custom_call.1} parent=5 // pred_check
        %p3764 = pneg %p3763
      $region130: #{tpu_custom_call.1} parent=5 // pred_check_branch
        %3766 = sbr.rel (%p3764) target = $region132
      $region131: #{tpu_custom_call.1} parent=5 // pred_region
        %s3767 = ssub.s32 %s31, 2
        // Predicated region
        $region133: #{tpu_custom_call.1} parent=131 // pred_check
          %p3768 = pneg %p427
        $region134: #{tpu_custom_call.1} parent=131 // pred_check_branch
          %3770 = sbr.rel (%p3768) target = $region136
        $region135: #{tpu_custom_call.1} parent=131 // pred_region
          %s3771 = sand.u32 %s412, 1
          %s3772 = scalar_lea.sflag [#allocation4], %s3771
          %s3773 = sand.u32 %s412, 1
          %s3774 = smul.addr %s3773, 64
          %s3775 = scalar_lea.vmem [#allocation17], %s3774
          %3776 = dma.done %s3772, 1024
        $region136: #{tpu_custom_call.1} parent=131 // pred_fallthru
          _
      $region132: #{tpu_custom_call.1} parent=5 // pred_fallthru
        _
    $region6: #{tpu_custom_call.1} parent=1 // loop_footer
      %s35 = sadd.s32 1, %s31
    $region7: #{tpu_custom_call.1} parent=1 // loop_footer_branch
      %30 = sbr.rel target = $region3
    $region8: #{tpu_custom_call.1} parent=1 // loop_exit
      _
    %3777 = vsyncpa [#allocation3], 1
    %s3778 = scalar_lea.sflag [#allocation3], 1
    %3779 = vsyncpa %s3778, 1
    %3780 = vsyncpa [#allocation6], 1
    %3781 = vsyncpa [#allocation9], 1
    %3782 = vsyncpa [#allocation12], 1
    %3783 = vsyncpa [#allocation15], 1
    %3784 = vsyncpa [#allocation4], 1
    %s3785 = scalar_lea.sflag [#allocation4], 1
    %3786 = vsyncpa %s3785, 1

</llo_original>
